<compile_context>
chip_gen: v6e
topology: v6e:2x2x1
jax: 0.10.0
libtpu: 0.0.40
codegen_flags: <defaults>
</compile_context>

<pallas_src>
import jax
import jax.numpy as jnp
import numpy as np
from jax import lax
from jax.experimental import pallas as pl
from jax.experimental.pallas import tpu as pltpu

# ----------------------------- model dims (small) -----------------------------
NO_LAYERS = 2          # kernel below is written for exactly 2 layers
VOCAB_SIZE = 100       # synthetic vocab (len(vocab)+1 in the original)
EMBEDDING_DIM = 64
HIDDEN_DIM = 128
OUTPUT_DIM = 1
BATCH = 8
SEQ = 8


# ------------------ fused embedding + 2-layer LSTM + FC kernel ------------------
def sentiment_lstm_kernel(tok_ref, emb_ref, wih0_ref, whh0_ref, b0_ref,
                          w1_ref, b1_ref, fcw_ref, fcb_ref, hinit_ref, cinit_ref,
                          sig_ref, hN_ref, cN_ref,
                          xemb_scr, pre0_scr):
    """tok: (B,T) i32 SMEM; emb: (V,E) f32; wih0: (E,4H) bf16; whh0: (H,4H) bf16;
    w1: (2H,4H) bf16 = [W_ih1; W_hh1]; b0/b1: (1,4H) f32; fcw: (1,H) f32;
    fcb: (1,1) f32 SMEM; hinit/cinit: (2,B,H) f32.
    Outputs: sig (B,1), hN/cN (2,B,H). Scratch: xemb (T*B,E) f32, pre0 (T*B,4H) f32."""
    B, T = tok_ref.shape
    H = hinit_ref.shape[-1]

    # ---- fused embedding lookup + time-major transpose (row gather into VMEM) ----
    for t in range(T):
        base = t * B
        for b in range(B):
            xemb_scr[pl.ds(base + b, 1), :] = emb_ref[pl.ds(tok_ref[b, t], 1), :]

    # ---- hoisted layer-0 input projection: one (T*B,E)@(E,4H) bf16 MXU matmul ----
    pre0 = jnp.dot(xemb_scr[...].astype(jnp.bfloat16), wih0_ref[...],
                   preferred_element_type=jnp.float32) + b0_ref[...]
    pre0_scr[...] = pre0   # stage in VMEM so the unrolled loop holds few live vregs

    def gates_to_hc(gates, c):
        i = jax.nn.sigmoid(gates[:, 0 * H:1 * H])
        f = jax.nn.sigmoid(gates[:, 1 * H:2 * H])
        g = jnp.tanh(gates[:, 2 * H:3 * H])
        o = jax.nn.sigmoid(gates[:, 3 * H:4 * H])
        c_new = f * c + i * g
        return o * jnp.tanh(c_new), c_new

    h0 = hinit_ref[0]
    c0 = cinit_ref[0]
    h1 = hinit_ref[1]
    c1 = cinit_ref[1]

    # ---- wavefront: wave step s runs layer-0 time s and layer-1 time s-1 ----
    for s in range(T + 1):
        h0_prev = h0                                   # layer-0 hidden after time s-1
        if s < T:                                      # layer 0, time step s
            g0 = (pre0_scr[s * B:(s + 1) * B, :]
                  + jnp.dot(h0_prev.astype(jnp.bfloat16), whh0_ref[...],
                            preferred_element_type=jnp.float32))
            h0, c0 = gates_to_hc(g0, c0)
        if s >= 1:                                     # layer 1, time step s-1
            inp1 = jnp.concatenate([h0_prev.astype(jnp.bfloat16),
                                    h1.astype(jnp.bfloat16)], axis=-1)   # (B, 2H)
            g1 = jnp.dot(inp1, w1_ref[...],
                         preferred_element_type=jnp.float32) + b1_ref[...]
            h1, c1 = gates_to_hc(g1, c1)

    hN_ref[0] = h0
    cN_ref[0] = c0
    hN_ref[1] = h1
    cN_ref[1] = c1

    # ---- FC + sigmoid on the last top-layer hidden only (VPU mul + lane reduce) ----
    # nn.Dropout(0.3) is identity in eval mode.
    # TODO(synk): training-mode dropout masking not implemented (inference path).
    logits = jnp.sum(h1 * fcw_ref[...], axis=-1, keepdims=True) + fcb_ref[0, 0]
    sig_ref[...] = jax.nn.sigmoid(logits)


def sentiment_lstm(x_tokens, params, h0, c0):
    """x_tokens: (B,T) int32; h0/c0: (L,B,H) f32. Returns (sig (B,1), hN, cN)."""
    B, T = x_tokens.shape
    L, _, H = h0.shape
    VMEM_SPEC = pl.BlockSpec(memory_space=pltpu.MemorySpace.VMEM)
    SMEM_SPEC = pl.BlockSpec(memory_space=pltpu.MemorySpace.SMEM)
    return pl.pallas_call(
        sentiment_lstm_kernel,
        out_shape=(jax.ShapeDtypeStruct((B, OUTPUT_DIM), jnp.float32),
                   jax.ShapeDtypeStruct((L, B, H), jnp.float32),
                   jax.ShapeDtypeStruct((L, B, H), jnp.float32)),
        in_specs=[
            SMEM_SPEC,   # token ids
            VMEM_SPEC,   # embedding table (V, E) f32
            VMEM_SPEC,   # w_ih_0 (E, 4H) bf16
            VMEM_SPEC,   # w_hh_0 (H, 4H) bf16
            VMEM_SPEC,   # b_0 (1, 4H) f32
            VMEM_SPEC,   # w1 stacked (2H, 4H) bf16
            VMEM_SPEC,   # b_1 (1, 4H) f32
            VMEM_SPEC,   # fc_w row (1, H) f32
            SMEM_SPEC,   # fc_b (1, 1) f32
            VMEM_SPEC,   # h0 (L, B, H)
            VMEM_SPEC,   # c0 (L, B, H)
        ],
        scratch_shapes=[pltpu.VMEM((T * B, EMBEDDING_DIM), jnp.float32),
                        pltpu.VMEM((T * B, 4 * H), jnp.float32)],
    )(x_tokens, params["embedding"],
      params["w_ih_0_bf16"], params["w_hh_0_bf16"], params["b_0"],
      params["w1_bf16"], params["b_1"],
      params["fc_w_row"], params["fc_b"], h0, c0)


# ------------------------------- full forward ----------------------------------
@jax.jit
def sentiment_rnn_forward(params, x_tokens, hidden):
    h0, c0 = hidden                                          # each (L, B, H)
    sig, h_fin, c_fin = sentiment_lstm(x_tokens, params, h0, c0)
    return sig.reshape(x_tokens.shape[0]), (h_fin, c_fin)


# --------------------------- pure-JAX reference --------------------------------
# Mirrors PyTorch semantics; uses the same bf16 matmul operands / f32 accumulation
# numerics as the kernel so the comparison is tight.
def lstm_layer_ref(x_seq, w_ih_t, w_hh_t, bias, h0, c0):
    H = h0.shape[-1]

    def step(carry, x):
        h, c = carry
        gates = (jnp.dot(x.astype(jnp.bfloat16), w_ih_t,
                         preferred_element_type=jnp.float32)
                 + jnp.dot(h.astype(jnp.bfloat16), w_hh_t,
                           preferred_element_type=jnp.float32)
                 + bias)
        i = jax.nn.sigmoid(gates[:, 0 * H:1 * H])
        f = jax.nn.sigmoid(gates[:, 1 * H:2 * H])
        g = jnp.tanh(gates[:, 2 * H:3 * H])
        o = jax.nn.sigmoid(gates[:, 3 * H:4 * H])
        c_new = f * c + i * g
        h_new = o * jnp.tanh(c_new)
        return (h_new, c_new), h_new

    (hf, cf), hseq = lax.scan(step, (h0, c0), x_seq)
    return hseq, hf, cf


def forward_ref(params, x_tokens, hidden):
    h0, c0 = hidden
    H = HIDDEN_DIM
    embeds = jnp.take(params["embedding"], x_tokens, axis=0)   # (B, T, E)
    x_seq = jnp.transpose(embeds, (1, 0, 2))                   # (T, B, E)
    seq0, h0f, c0f = lstm_layer_ref(x_seq, params["w_ih_0_bf16"],
                                    params["w_hh_0_bf16"], params["b_0"],
                                    h0[0], c0[0])
    w1 = params["w1_bf16"]
    seq1, h1f, c1f = lstm_layer_ref(seq0, w1[:H], w1[H:], params["b_1"],
                                    h0[1], c0[1])
    # full-sequence FC then [:, -1] == FC on the last hidden of the top layer
    h_last = seq1[-1]                                          # (B, H)
    out = jax.nn.sigmoid(jnp.sum(h_last * params["fc_w_row"], axis=-1)
                         + params["fc_b"][0, 0])
    return out, (jnp.stack([h0f, h1f], 0), jnp.stack([c0f, c1f], 0))


# --------------------------------- params --------------------------------------
def init_params(key):
    H, E, V = HIDDEN_DIM, EMBEDDING_DIM, VOCAB_SIZE
    ks = jax.random.split(key, 10)
    p = {}
    p["embedding"] = 0.1 * jax.random.normal(ks[0], (V, E), jnp.float32)

    w_ih0 = 0.1 * jax.random.normal(ks[1], (E, 4 * H), jnp.float32)
    w_hh0 = 0.1 * jax.random.normal(ks[2], (H, 4 * H), jnp.float32)
    b0 = (0.1 * jax.random.normal(ks[3], (4 * H,), jnp.float32)
          + 0.1 * jax.random.normal(ks[4], (4 * H,), jnp.float32))
    w_ih1 = 0.1 * jax.random.normal(ks[5], (H, 4 * H), jnp.float32)
    w_hh1 = 0.1 * jax.random.normal(ks[6], (H, 4 * H), jnp.float32)
    b1 = (0.1 * jax.random.normal(ks[7], (4 * H,), jnp.float32)
          + 0.1 * jax.random.normal(ks[8], (4 * H,), jnp.float32))
    fc_w = 0.1 * jax.random.normal(ks[9], (H, OUTPUT_DIM), jnp.float32)

    p["w_ih_0_bf16"] = w_ih0.astype(jnp.bfloat16)
    p["w_hh_0_bf16"] = w_hh0.astype(jnp.bfloat16)
    p["b_0"] = b0.reshape(1, 4 * H)
    # layer-1 weights stacked [W_ih1; W_hh1] -> (2H, 4H) for the fused wavefront matmul
    p["w1_bf16"] = jnp.concatenate([w_ih1, w_hh1], axis=0).astype(jnp.bfloat16)
    p["b_1"] = b1.reshape(1, 4 * H)
    p["fc_w_row"] = fc_w.reshape(1, H)
    p["fc_b"] = jnp.zeros((1, 1), jnp.float32)
    return p


# ---------------------------------- main ----------------------------------------
if __name__ == "__main__":
    key = jax.random.PRNGKey(0)
    pkey, xkey = jax.random.split(key)
    params = init_params(pkey)

    x_tokens = jax.random.randint(xkey, (BATCH, SEQ), 0, VOCAB_SIZE, dtype=jnp.int32)
    hidden = (jnp.zeros((NO_LAYERS, BATCH, HIDDEN_DIM), jnp.float32),
              jnp.zeros((NO_LAYERS, BATCH, HIDDEN_DIM), jnp.float32))

    sig_out, hidden_out = sentiment_rnn_forward(params, x_tokens, hidden)
    sig_out = jax.block_until_ready(sig_out)
    hidden_out = jax.block_until_ready(hidden_out)

    ref_sig, ref_hidden = forward_ref(params, x_tokens, hidden)
    np.testing.assert_allclose(np.asarray(sig_out), np.asarray(ref_sig),
                               rtol=2e-4, atol=2e-4)
    np.testing.assert_allclose(np.asarray(hidden_out[0]), np.asarray(ref_hidden[0]),
                               rtol=2e-4, atol=2e-4)
    np.testing.assert_allclose(np.asarray(hidden_out[1]), np.asarray(ref_hidden[1]),
                               rtol=2e-4, atol=2e-4)
    assert sig_out.shape == (BATCH,)
    assert hidden_out[0].shape == (NO_LAYERS, BATCH, HIDDEN_DIM)
    assert hidden_out[1].shape == (NO_LAYERS, BATCH, HIDDEN_DIM)

    print("KERNEL_OK")
</pallas_src>

<mosaic_0001>
module attributes {stable_mosaic.version = 11 : i64} {
  func.func @sentiment_lstm_kernel(%arg0: memref<8x8xi32, #tpu.memory_space<smem>>, %arg1: memref<100x64xf32, #tpu.memory_space<vmem>>, %arg2: memref<64x512xbf16, #tpu.memory_space<vmem>>, %arg3: memref<128x512xbf16, #tpu.memory_space<vmem>>, %arg4: memref<1x512xf32, #tpu.memory_space<vmem>>, %arg5: memref<256x512xbf16, #tpu.memory_space<vmem>>, %arg6: memref<1x512xf32, #tpu.memory_space<vmem>>, %arg7: memref<1x128xf32, #tpu.memory_space<vmem>>, %arg8: memref<1x1xf32, #tpu.memory_space<smem>>, %arg9: memref<2x8x128xf32, #tpu.memory_space<vmem>>, %arg10: memref<2x8x128xf32, #tpu.memory_space<vmem>>, %arg11: memref<8x1xf32, #tpu.memory_space<vmem>>, %arg12: memref<2x8x128xf32, #tpu.memory_space<vmem>>, %arg13: memref<2x8x128xf32, #tpu.memory_space<vmem>>, %arg14: memref<64x64xf32, #tpu.memory_space<vmem>>, %arg15: memref<64x512xf32, #tpu.memory_space<vmem>>) attributes {dimension_semantics = [], scalar_prefetch = 0 : i64, scratch_operands = 2 : i64, tpu.core_type = #tpu.core_type<tc>} {
    %c0 = arith.constant 0 : index
    %c0_0 = arith.constant 0 : index
    %0 = memref.load %arg0[%c0, %c0_0] : memref<8x8xi32, #tpu.memory_space<smem>>
    %1 = arith.index_cast %0 : i32 to index
    %c0_1 = arith.constant 0 : index
    %2 = vector.load %arg1[%1, %c0_1] : memref<100x64xf32, #tpu.memory_space<vmem>>, vector<1x64xf32>
    %c0_2 = arith.constant 0 : index
    %c0_3 = arith.constant 0 : index
    %3 = vector.load %arg14[%c0_2, %c0_3] : memref<64x64xf32, #tpu.memory_space<vmem>>, vector<1x64xf32>
    tpu.vector_store %arg14[%c0_2, %c0_3], %2 {strides = array<i32>} : memref<64x64xf32, #tpu.memory_space<vmem>>, vector<1x64xf32>,
    %c1 = arith.constant 1 : index
    %c0_4 = arith.constant 0 : index
    %4 = memref.load %arg0[%c1, %c0_4] : memref<8x8xi32, #tpu.memory_space<smem>>
    %5 = arith.index_cast %4 : i32 to index
    %c0_5 = arith.constant 0 : index
    %6 = vector.load %arg1[%5, %c0_5] : memref<100x64xf32, #tpu.memory_space<vmem>>, vector<1x64xf32>
    %c1_6 = arith.constant 1 : index
    %c0_7 = arith.constant 0 : index
    %7 = vector.load %arg14[%c1_6, %c0_7] : memref<64x64xf32, #tpu.memory_space<vmem>>, vector<1x64xf32>
    tpu.vector_store %arg14[%c1_6, %c0_7], %6 {strides = array<i32>} : memref<64x64xf32, #tpu.memory_space<vmem>>, vector<1x64xf32>,
    %c2 = arith.constant 2 : index
    %c0_8 = arith.constant 0 : index
    %8 = memref.load %arg0[%c2, %c0_8] : memref<8x8xi32, #tpu.memory_space<smem>>
    %9 = arith.index_cast %8 : i32 to index
    %c0_9 = arith.constant 0 : index
    %10 = vector.load %arg1[%9, %c0_9] : memref<100x64xf32, #tpu.memory_space<vmem>>, vector<1x64xf32>
    %c2_10 = arith.constant 2 : index
    %c0_11 = arith.constant 0 : index
    %11 = vector.load %arg14[%c2_10, %c0_11] : memref<64x64xf32, #tpu.memory_space<vmem>>, vector<1x64xf32>
    tpu.vector_store %arg14[%c2_10, %c0_11], %10 {strides = array<i32>} : memref<64x64xf32, #tpu.memory_space<vmem>>, vector<1x64xf32>,
    %c3 = arith.constant 3 : index
    %c0_12 = arith.constant 0 : index
    %12 = memref.load %arg0[%c3, %c0_12] : memref<8x8xi32, #tpu.memory_space<smem>>
    %13 = arith.index_cast %12 : i32 to index
    %c0_13 = arith.constant 0 : index
    %14 = vector.load %arg1[%13, %c0_13] : memref<100x64xf32, #tpu.memory_space<vmem>>, vector<1x64xf32>
    %c3_14 = arith.constant 3 : index
    %c0_15 = arith.constant 0 : index
    %15 = vector.load %arg14[%c3_14, %c0_15] : memref<64x64xf32, #tpu.memory_space<vmem>>, vector<1x64xf32>
    tpu.vector_store %arg14[%c3_14, %c0_15], %14 {strides = array<i32>} : memref<64x64xf32, #tpu.memory_space<vmem>>, vector<1x64xf32>,
    %c4 = arith.constant 4 : index
    %c0_16 = arith.constant 0 : index
    %16 = memref.load %arg0[%c4, %c0_16] : memref<8x8xi32, #tpu.memory_space<smem>>
    %17 = arith.index_cast %16 : i32 to index
    %c0_17 = arith.constant 0 : index
    %18 = vector.load %arg1[%17, %c0_17] : memref<100x64xf32, #tpu.memory_space<vmem>>, vector<1x64xf32>
    %c4_18 = arith.constant 4 : index
    %c0_19 = arith.constant 0 : index
    %19 = vector.load %arg14[%c4_18, %c0_19] : memref<64x64xf32, #tpu.memory_space<vmem>>, vector<1x64xf32>
    tpu.vector_store %arg14[%c4_18, %c0_19], %18 {strides = array<i32>} : memref<64x64xf32, #tpu.memory_space<vmem>>, vector<1x64xf32>,
    %c5 = arith.constant 5 : index
    %c0_20 = arith.constant 0 : index
    %20 = memref.load %arg0[%c5, %c0_20] : memref<8x8xi32, #tpu.memory_space<smem>>
    %21 = arith.index_cast %20 : i32 to index
    %c0_21 = arith.constant 0 : index
    %22 = vector.load %arg1[%21, %c0_21] : memref<100x64xf32, #tpu.memory_space<vmem>>, vector<1x64xf32>
    %c5_22 = arith.constant 5 : index
    %c0_23 = arith.constant 0 : index
    %23 = vector.load %arg14[%c5_22, %c0_23] : memref<64x64xf32, #tpu.memory_space<vmem>>, vector<1x64xf32>
    tpu.vector_store %arg14[%c5_22, %c0_23], %22 {strides = array<i32>} : memref<64x64xf32, #tpu.memory_space<vmem>>, vector<1x64xf32>,
    %c6 = arith.constant 6 : index
    %c0_24 = arith.constant 0 : index
    %24 = memref.load %arg0[%c6, %c0_24] : memref<8x8xi32, #tpu.memory_space<smem>>
    %25 = arith.index_cast %24 : i32 to index
    %c0_25 = arith.constant 0 : index
    %26 = vector.load %arg1[%25, %c0_25] : memref<100x64xf32, #tpu.memory_space<vmem>>, vector<1x64xf32>
    %c6_26 = arith.constant 6 : index
    %c0_27 = arith.constant 0 : index
    %27 = vector.load %arg14[%c6_26, %c0_27] : memref<64x64xf32, #tpu.memory_space<vmem>>, vector<1x64xf32>
    tpu.vector_store %arg14[%c6_26, %c0_27], %26 {strides = array<i32>} : memref<64x64xf32, #tpu.memory_space<vmem>>, vector<1x64xf32>,
    %c7 = arith.constant 7 : index
    %c0_28 = arith.constant 0 : index
    %28 = memref.load %arg0[%c7, %c0_28] : memref<8x8xi32, #tpu.memory_space<smem>>
    %29 = arith.index_cast %28 : i32 to index
    %c0_29 = arith.constant 0 : index
    %30 = vector.load %arg1[%29, %c0_29] : memref<100x64xf32, #tpu.memory_space<vmem>>, vector<1x64xf32>
    %c7_30 = arith.constant 7 : index
    %c0_31 = arith.constant 0 : index
    %31 = vector.load %arg14[%c7_30, %c0_31] : memref<64x64xf32, #tpu.memory_space<vmem>>, vector<1x64xf32>
    tpu.vector_store %arg14[%c7_30, %c0_31], %30 {strides = array<i32>} : memref<64x64xf32, #tpu.memory_space<vmem>>, vector<1x64xf32>,
    %c0_32 = arith.constant 0 : index
    %c1_33 = arith.constant 1 : index
    %32 = memref.load %arg0[%c0_32, %c1_33] : memref<8x8xi32, #tpu.memory_space<smem>>
    %33 = arith.index_cast %32 : i32 to index
    %c0_34 = arith.constant 0 : index
    %34 = vector.load %arg1[%33, %c0_34] : memref<100x64xf32, #tpu.memory_space<vmem>>, vector<1x64xf32>
    %c8 = arith.constant 8 : index
    %c0_35 = arith.constant 0 : index
    %35 = vector.load %arg14[%c8, %c0_35] : memref<64x64xf32, #tpu.memory_space<vmem>>, vector<1x64xf32>
    tpu.vector_store %arg14[%c8, %c0_35], %34 {strides = array<i32>} : memref<64x64xf32, #tpu.memory_space<vmem>>, vector<1x64xf32>,
    %c1_36 = arith.constant 1 : index
    %c1_37 = arith.constant 1 : index
    %36 = memref.load %arg0[%c1_36, %c1_37] : memref<8x8xi32, #tpu.memory_space<smem>>
    %37 = arith.index_cast %36 : i32 to index
    %c0_38 = arith.constant 0 : index
    %38 = vector.load %arg1[%37, %c0_38] : memref<100x64xf32, #tpu.memory_space<vmem>>, vector<1x64xf32>
    %c9 = arith.constant 9 : index
    %c0_39 = arith.constant 0 : index
    %39 = vector.load %arg14[%c9, %c0_39] : memref<64x64xf32, #tpu.memory_space<vmem>>, vector<1x64xf32>
    tpu.vector_store %arg14[%c9, %c0_39], %38 {strides = array<i32>} : memref<64x64xf32, #tpu.memory_space<vmem>>, vector<1x64xf32>,
    %c2_40 = arith.constant 2 : index
    %c1_41 = arith.constant 1 : index
    %40 = memref.load %arg0[%c2_40, %c1_41] : memref<8x8xi32, #tpu.memory_space<smem>>
    %41 = arith.index_cast %40 : i32 to index
    %c0_42 = arith.constant 0 : index
    %42 = vector.load %arg1[%41, %c0_42] : memref<100x64xf32, #tpu.memory_space<vmem>>, vector<1x64xf32>
    %c10 = arith.constant 10 : index
    %c0_43 = arith.constant 0 : index
    %43 = vector.load %arg14[%c10, %c0_43] : memref<64x64xf32, #tpu.memory_space<vmem>>, vector<1x64xf32>
    tpu.vector_store %arg14[%c10, %c0_43], %42 {strides = array<i32>} : memref<64x64xf32, #tpu.memory_space<vmem>>, vector<1x64xf32>,
    %c3_44 = arith.constant 3 : index
    %c1_45 = arith.constant 1 : index
    %44 = memref.load %arg0[%c3_44, %c1_45] : memref<8x8xi32, #tpu.memory_space<smem>>
    %45 = arith.index_cast %44 : i32 to index
    %c0_46 = arith.constant 0 : index
    %46 = vector.load %arg1[%45, %c0_46] : memref<100x64xf32, #tpu.memory_space<vmem>>, vector<1x64xf32>
    %c11 = arith.constant 11 : index
    %c0_47 = arith.constant 0 : index
    %47 = vector.load %arg14[%c11, %c0_47] : memref<64x64xf32, #tpu.memory_space<vmem>>, vector<1x64xf32>
    tpu.vector_store %arg14[%c11, %c0_47], %46 {strides = array<i32>} : memref<64x64xf32, #tpu.memory_space<vmem>>, vector<1x64xf32>,
    %c4_48 = arith.constant 4 : index
    %c1_49 = arith.constant 1 : index
    %48 = memref.load %arg0[%c4_48, %c1_49] : memref<8x8xi32, #tpu.memory_space<smem>>
    %49 = arith.index_cast %48 : i32 to index
    %c0_50 = arith.constant 0 : index
    %50 = vector.load %arg1[%49, %c0_50] : memref<100x64xf32, #tpu.memory_space<vmem>>, vector<1x64xf32>
    %c12 = arith.constant 12 : index
    %c0_51 = arith.constant 0 : index
    %51 = vector.load %arg14[%c12, %c0_51] : memref<64x64xf32, #tpu.memory_space<vmem>>, vector<1x64xf32>
    tpu.vector_store %arg14[%c12, %c0_51], %50 {strides = array<i32>} : memref<64x64xf32, #tpu.memory_space<vmem>>, vector<1x64xf32>,
    %c5_52 = arith.constant 5 : index
    %c1_53 = arith.constant 1 : index
    %52 = memref.load %arg0[%c5_52, %c1_53] : memref<8x8xi32, #tpu.memory_space<smem>>
    %53 = arith.index_cast %52 : i32 to index
    %c0_54 = arith.constant 0 : index
    %54 = vector.load %arg1[%53, %c0_54] : memref<100x64xf32, #tpu.memory_space<vmem>>, vector<1x64xf32>
    %c13 = arith.constant 13 : index
    %c0_55 = arith.constant 0 : index
    %55 = vector.load %arg14[%c13, %c0_55] : memref<64x64xf32, #tpu.memory_space<vmem>>, vector<1x64xf32>
    tpu.vector_store %arg14[%c13, %c0_55], %54 {strides = array<i32>} : memref<64x64xf32, #tpu.memory_space<vmem>>, vector<1x64xf32>,
    %c6_56 = arith.constant 6 : index
    %c1_57 = arith.constant 1 : index
    %56 = memref.load %arg0[%c6_56, %c1_57] : memref<8x8xi32, #tpu.memory_space<smem>>
    %57 = arith.index_cast %56 : i32 to index
    %c0_58 = arith.constant 0 : index
    %58 = vector.load %arg1[%57, %c0_58] : memref<100x64xf32, #tpu.memory_space<vmem>>, vector<1x64xf32>
    %c14 = arith.constant 14 : index
    %c0_59 = arith.constant 0 : index
    %59 = vector.load %arg14[%c14, %c0_59] : memref<64x64xf32, #tpu.memory_space<vmem>>, vector<1x64xf32>
    tpu.vector_store %arg14[%c14, %c0_59], %58 {strides = array<i32>} : memref<64x64xf32, #tpu.memory_space<vmem>>, vector<1x64xf32>,
    %c7_60 = arith.constant 7 : index
    %c1_61 = arith.constant 1 : index
    %60 = memref.load %arg0[%c7_60, %c1_61] : memref<8x8xi32, #tpu.memory_space<smem>>
    %61 = arith.index_cast %60 : i32 to index
    %c0_62 = arith.constant 0 : index
    %62 = vector.load %arg1[%61, %c0_62] : memref<100x64xf32, #tpu.memory_space<vmem>>, vector<1x64xf32>
    %c15 = arith.constant 15 : index
    %c0_63 = arith.constant 0 : index
    %63 = vector.load %arg14[%c15, %c0_63] : memref<64x64xf32, #tpu.memory_space<vmem>>, vector<1x64xf32>
    tpu.vector_store %arg14[%c15, %c0_63], %62 {strides = array<i32>} : memref<64x64xf32, #tpu.memory_space<vmem>>, vector<1x64xf32>,
    %c0_64 = arith.constant 0 : index
    %c2_65 = arith.constant 2 : index
    %64 = memref.load %arg0[%c0_64, %c2_65] : memref<8x8xi32, #tpu.memory_space<smem>>
    %65 = arith.index_cast %64 : i32 to index
    %c0_66 = arith.constant 0 : index
    %66 = vector.load %arg1[%65, %c0_66] : memref<100x64xf32, #tpu.memory_space<vmem>>, vector<1x64xf32>
    %c16 = arith.constant 16 : index
    %c0_67 = arith.constant 0 : index
    %67 = vector.load %arg14[%c16, %c0_67] : memref<64x64xf32, #tpu.memory_space<vmem>>, vector<1x64xf32>
    tpu.vector_store %arg14[%c16, %c0_67], %66 {strides = array<i32>} : memref<64x64xf32, #tpu.memory_space<vmem>>, vector<1x64xf32>,
    %c1_68 = arith.constant 1 : index
    %c2_69 = arith.constant 2 : index
    %68 = memref.load %arg0[%c1_68, %c2_69] : memref<8x8xi32, #tpu.memory_space<smem>>
    %69 = arith.index_cast %68 : i32 to index
    %c0_70 = arith.constant 0 : index
    %70 = vector.load %arg1[%69, %c0_70] : memref<100x64xf32, #tpu.memory_space<vmem>>, vector<1x64xf32>
    %c17 = arith.constant 17 : index
    %c0_71 = arith.constant 0 : index
    %71 = vector.load %arg14[%c17, %c0_71] : memref<64x64xf32, #tpu.memory_space<vmem>>, vector<1x64xf32>
    tpu.vector_store %arg14[%c17, %c0_71], %70 {strides = array<i32>} : memref<64x64xf32, #tpu.memory_space<vmem>>, vector<1x64xf32>,
    %c2_72 = arith.constant 2 : index
    %c2_73 = arith.constant 2 : index
    %72 = memref.load %arg0[%c2_72, %c2_73] : memref<8x8xi32, #tpu.memory_space<smem>>
    %73 = arith.index_cast %72 : i32 to index
    %c0_74 = arith.constant 0 : index
    %74 = vector.load %arg1[%73, %c0_74] : memref<100x64xf32, #tpu.memory_space<vmem>>, vector<1x64xf32>
    %c18 = arith.constant 18 : index
    %c0_75 = arith.constant 0 : index
    %75 = vector.load %arg14[%c18, %c0_75] : memref<64x64xf32, #tpu.memory_space<vmem>>, vector<1x64xf32>
    tpu.vector_store %arg14[%c18, %c0_75], %74 {strides = array<i32>} : memref<64x64xf32, #tpu.memory_space<vmem>>, vector<1x64xf32>,
    %c3_76 = arith.constant 3 : index
    %c2_77 = arith.constant 2 : index
    %76 = memref.load %arg0[%c3_76, %c2_77] : memref<8x8xi32, #tpu.memory_space<smem>>
    %77 = arith.index_cast %76 : i32 to index
    %c0_78 = arith.constant 0 : index
    %78 = vector.load %arg1[%77, %c0_78] : memref<100x64xf32, #tpu.memory_space<vmem>>, vector<1x64xf32>
    %c19 = arith.constant 19 : index
    %c0_79 = arith.constant 0 : index
    %79 = vector.load %arg14[%c19, %c0_79] : memref<64x64xf32, #tpu.memory_space<vmem>>, vector<1x64xf32>
    tpu.vector_store %arg14[%c19, %c0_79], %78 {strides = array<i32>} : memref<64x64xf32, #tpu.memory_space<vmem>>, vector<1x64xf32>,
    %c4_80 = arith.constant 4 : index
    %c2_81 = arith.constant 2 : index
    %80 = memref.load %arg0[%c4_80, %c2_81] : memref<8x8xi32, #tpu.memory_space<smem>>
    %81 = arith.index_cast %80 : i32 to index
    %c0_82 = arith.constant 0 : index
    %82 = vector.load %arg1[%81, %c0_82] : memref<100x64xf32, #tpu.memory_space<vmem>>, vector<1x64xf32>
    %c20 = arith.constant 20 : index
    %c0_83 = arith.constant 0 : index
    %83 = vector.load %arg14[%c20, %c0_83] : memref<64x64xf32, #tpu.memory_space<vmem>>, vector<1x64xf32>
    tpu.vector_store %arg14[%c20, %c0_83], %82 {strides = array<i32>} : memref<64x64xf32, #tpu.memory_space<vmem>>, vector<1x64xf32>,
    %c5_84 = arith.constant 5 : index
    %c2_85 = arith.constant 2 : index
    %84 = memref.load %arg0[%c5_84, %c2_85] : memref<8x8xi32, #tpu.memory_space<smem>>
    %85 = arith.index_cast %84 : i32 to index
    %c0_86 = arith.constant 0 : index
    %86 = vector.load %arg1[%85, %c0_86] : memref<100x64xf32, #tpu.memory_space<vmem>>, vector<1x64xf32>
    %c21 = arith.constant 21 : index
    %c0_87 = arith.constant 0 : index
    %87 = vector.load %arg14[%c21, %c0_87] : memref<64x64xf32, #tpu.memory_space<vmem>>, vector<1x64xf32>
    tpu.vector_store %arg14[%c21, %c0_87], %86 {strides = array<i32>} : memref<64x64xf32, #tpu.memory_space<vmem>>, vector<1x64xf32>,
    %c6_88 = arith.constant 6 : index
    %c2_89 = arith.constant 2 : index
    %88 = memref.load %arg0[%c6_88, %c2_89] : memref<8x8xi32, #tpu.memory_space<smem>>
    %89 = arith.index_cast %88 : i32 to index
    %c0_90 = arith.constant 0 : index
    %90 = vector.load %arg1[%89, %c0_90] : memref<100x64xf32, #tpu.memory_space<vmem>>, vector<1x64xf32>
    %c22 = arith.constant 22 : index
    %c0_91 = arith.constant 0 : index
    %91 = vector.load %arg14[%c22, %c0_91] : memref<64x64xf32, #tpu.memory_space<vmem>>, vector<1x64xf32>
    tpu.vector_store %arg14[%c22, %c0_91], %90 {strides = array<i32>} : memref<64x64xf32, #tpu.memory_space<vmem>>, vector<1x64xf32>,
    %c7_92 = arith.constant 7 : index
    %c2_93 = arith.constant 2 : index
    %92 = memref.load %arg0[%c7_92, %c2_93] : memref<8x8xi32, #tpu.memory_space<smem>>
    %93 = arith.index_cast %92 : i32 to index
    %c0_94 = arith.constant 0 : index
    %94 = vector.load %arg1[%93, %c0_94] : memref<100x64xf32, #tpu.memory_space<vmem>>, vector<1x64xf32>
    %c23 = arith.constant 23 : index
    %c0_95 = arith.constant 0 : index
    %95 = vector.load %arg14[%c23, %c0_95] : memref<64x64xf32, #tpu.memory_space<vmem>>, vector<1x64xf32>
    tpu.vector_store %arg14[%c23, %c0_95], %94 {strides = array<i32>} : memref<64x64xf32, #tpu.memory_space<vmem>>, vector<1x64xf32>,
    %c0_96 = arith.constant 0 : index
    %c3_97 = arith.constant 3 : index
    %96 = memref.load %arg0[%c0_96, %c3_97] : memref<8x8xi32, #tpu.memory_space<smem>>
    %97 = arith.index_cast %96 : i32 to index
    %c0_98 = arith.constant 0 : index
    %98 = vector.load %arg1[%97, %c0_98] : memref<100x64xf32, #tpu.memory_space<vmem>>, vector<1x64xf32>
    %c24 = arith.constant 24 : index
    %c0_99 = arith.constant 0 : index
    %99 = vector.load %arg14[%c24, %c0_99] : memref<64x64xf32, #tpu.memory_space<vmem>>, vector<1x64xf32>
    tpu.vector_store %arg14[%c24, %c0_99], %98 {strides = array<i32>} : memref<64x64xf32, #tpu.memory_space<vmem>>, vector<1x64xf32>,
    %c1_100 = arith.constant 1 : index
    %c3_101 = arith.constant 3 : index
    %100 = memref.load %arg0[%c1_100, %c3_101] : memref<8x8xi32, #tpu.memory_space<smem>>
    %101 = arith.index_cast %100 : i32 to index
    %c0_102 = arith.constant 0 : index
    %102 = vector.load %arg1[%101, %c0_102] : memref<100x64xf32, #tpu.memory_space<vmem>>, vector<1x64xf32>
    %c25 = arith.constant 25 : index
    %c0_103 = arith.constant 0 : index
    %103 = vector.load %arg14[%c25, %c0_103] : memref<64x64xf32, #tpu.memory_space<vmem>>, vector<1x64xf32>
    tpu.vector_store %arg14[%c25, %c0_103], %102 {strides = array<i32>} : memref<64x64xf32, #tpu.memory_space<vmem>>, vector<1x64xf32>,
    %c2_104 = arith.constant 2 : index
    %c3_105 = arith.constant 3 : index
    %104 = memref.load %arg0[%c2_104, %c3_105] : memref<8x8xi32, #tpu.memory_space<smem>>
    %105 = arith.index_cast %104 : i32 to index
    %c0_106 = arith.constant 0 : index
    %106 = vector.load %arg1[%105, %c0_106] : memref<100x64xf32, #tpu.memory_space<vmem>>, vector<1x64xf32>
    %c26 = arith.constant 26 : index
    %c0_107 = arith.constant 0 : index
    %107 = vector.load %arg14[%c26, %c0_107] : memref<64x64xf32, #tpu.memory_space<vmem>>, vector<1x64xf32>
    tpu.vector_store %arg14[%c26, %c0_107], %106 {strides = array<i32>} : memref<64x64xf32, #tpu.memory_space<vmem>>, vector<1x64xf32>,
    %c3_108 = arith.constant 3 : index
    %c3_109 = arith.constant 3 : index
    %108 = memref.load %arg0[%c3_108, %c3_109] : memref<8x8xi32, #tpu.memory_space<smem>>
    %109 = arith.index_cast %108 : i32 to index
    %c0_110 = arith.constant 0 : index
    %110 = vector.load %arg1[%109, %c0_110] : memref<100x64xf32, #tpu.memory_space<vmem>>, vector<1x64xf32>
    %c27 = arith.constant 27 : index
    %c0_111 = arith.constant 0 : index
    %111 = vector.load %arg14[%c27, %c0_111] : memref<64x64xf32, #tpu.memory_space<vmem>>, vector<1x64xf32>
    tpu.vector_store %arg14[%c27, %c0_111], %110 {strides = array<i32>} : memref<64x64xf32, #tpu.memory_space<vmem>>, vector<1x64xf32>,
    %c4_112 = arith.constant 4 : index
    %c3_113 = arith.constant 3 : index
    %112 = memref.load %arg0[%c4_112, %c3_113] : memref<8x8xi32, #tpu.memory_space<smem>>
    %113 = arith.index_cast %112 : i32 to index
    %c0_114 = arith.constant 0 : index
    %114 = vector.load %arg1[%113, %c0_114] : memref<100x64xf32, #tpu.memory_space<vmem>>, vector<1x64xf32>
    %c28 = arith.constant 28 : index
    %c0_115 = arith.constant 0 : index
    %115 = vector.load %arg14[%c28, %c0_115] : memref<64x64xf32, #tpu.memory_space<vmem>>, vector<1x64xf32>
    tpu.vector_store %arg14[%c28, %c0_115], %114 {strides = array<i32>} : memref<64x64xf32, #tpu.memory_space<vmem>>, vector<1x64xf32>,
    %c5_116 = arith.constant 5 : index
    %c3_117 = arith.constant 3 : index
    %116 = memref.load %arg0[%c5_116, %c3_117] : memref<8x8xi32, #tpu.memory_space<smem>>
    %117 = arith.index_cast %116 : i32 to index
    %c0_118 = arith.constant 0 : index
    %118 = vector.load %arg1[%117, %c0_118] : memref<100x64xf32, #tpu.memory_space<vmem>>, vector<1x64xf32>
    %c29 = arith.constant 29 : index
    %c0_119 = arith.constant 0 : index
    %119 = vector.load %arg14[%c29, %c0_119] : memref<64x64xf32, #tpu.memory_space<vmem>>, vector<1x64xf32>
    tpu.vector_store %arg14[%c29, %c0_119], %118 {strides = array<i32>} : memref<64x64xf32, #tpu.memory_space<vmem>>, vector<1x64xf32>,
    %c6_120 = arith.constant 6 : index
    %c3_121 = arith.constant 3 : index
    %120 = memref.load %arg0[%c6_120, %c3_121] : memref<8x8xi32, #tpu.memory_space<smem>>
    %121 = arith.index_cast %120 : i32 to index
    %c0_122 = arith.constant 0 : index
    %122 = vector.load %arg1[%121, %c0_122] : memref<100x64xf32, #tpu.memory_space<vmem>>, vector<1x64xf32>
    %c30 = arith.constant 30 : index
    %c0_123 = arith.constant 0 : index
    %123 = vector.load %arg14[%c30, %c0_123] : memref<64x64xf32, #tpu.memory_space<vmem>>, vector<1x64xf32>
    tpu.vector_store %arg14[%c30, %c0_123], %122 {strides = array<i32>} : memref<64x64xf32, #tpu.memory_space<vmem>>, vector<1x64xf32>,
    %c7_124 = arith.constant 7 : index
    %c3_125 = arith.constant 3 : index
    %124 = memref.load %arg0[%c7_124, %c3_125] : memref<8x8xi32, #tpu.memory_space<smem>>
    %125 = arith.index_cast %124 : i32 to index
    %c0_126 = arith.constant 0 : index
    %126 = vector.load %arg1[%125, %c0_126] : memref<100x64xf32, #tpu.memory_space<vmem>>, vector<1x64xf32>
    %c31 = arith.constant 31 : index
    %c0_127 = arith.constant 0 : index
    %127 = vector.load %arg14[%c31, %c0_127] : memref<64x64xf32, #tpu.memory_space<vmem>>, vector<1x64xf32>
    tpu.vector_store %arg14[%c31, %c0_127], %126 {strides = array<i32>} : memref<64x64xf32, #tpu.memory_space<vmem>>, vector<1x64xf32>,
    %c0_128 = arith.constant 0 : index
    %c4_129 = arith.constant 4 : index
    %128 = memref.load %arg0[%c0_128, %c4_129] : memref<8x8xi32, #tpu.memory_space<smem>>
    %129 = arith.index_cast %128 : i32 to index
    %c0_130 = arith.constant 0 : index
    %130 = vector.load %arg1[%129, %c0_130] : memref<100x64xf32, #tpu.memory_space<vmem>>, vector<1x64xf32>
    %c32 = arith.constant 32 : index
    %c0_131 = arith.constant 0 : index
    %131 = vector.load %arg14[%c32, %c0_131] : memref<64x64xf32, #tpu.memory_space<vmem>>, vector<1x64xf32>
    tpu.vector_store %arg14[%c32, %c0_131], %130 {strides = array<i32>} : memref<64x64xf32, #tpu.memory_space<vmem>>, vector<1x64xf32>,
    %c1_132 = arith.constant 1 : index
    %c4_133 = arith.constant 4 : index
    %132 = memref.load %arg0[%c1_132, %c4_133] : memref<8x8xi32, #tpu.memory_space<smem>>
    %133 = arith.index_cast %132 : i32 to index
    %c0_134 = arith.constant 0 : index
    %134 = vector.load %arg1[%133, %c0_134] : memref<100x64xf32, #tpu.memory_space<vmem>>, vector<1x64xf32>
    %c33 = arith.constant 33 : index
    %c0_135 = arith.constant 0 : index
    %135 = vector.load %arg14[%c33, %c0_135] : memref<64x64xf32, #tpu.memory_space<vmem>>, vector<1x64xf32>
    tpu.vector_store %arg14[%c33, %c0_135], %134 {strides = array<i32>} : memref<64x64xf32, #tpu.memory_space<vmem>>, vector<1x64xf32>,
    %c2_136 = arith.constant 2 : index
    %c4_137 = arith.constant 4 : index
    %136 = memref.load %arg0[%c2_136, %c4_137] : memref<8x8xi32, #tpu.memory_space<smem>>
    %137 = arith.index_cast %136 : i32 to index
    %c0_138 = arith.constant 0 : index
    %138 = vector.load %arg1[%137, %c0_138] : memref<100x64xf32, #tpu.memory_space<vmem>>, vector<1x64xf32>
    %c34 = arith.constant 34 : index
    %c0_139 = arith.constant 0 : index
    %139 = vector.load %arg14[%c34, %c0_139] : memref<64x64xf32, #tpu.memory_space<vmem>>, vector<1x64xf32>
    tpu.vector_store %arg14[%c34, %c0_139], %138 {strides = array<i32>} : memref<64x64xf32, #tpu.memory_space<vmem>>, vector<1x64xf32>,
    %c3_140 = arith.constant 3 : index
    %c4_141 = arith.constant 4 : index
    %140 = memref.load %arg0[%c3_140, %c4_141] : memref<8x8xi32, #tpu.memory_space<smem>>
    %141 = arith.index_cast %140 : i32 to index
    %c0_142 = arith.constant 0 : index
    %142 = vector.load %arg1[%141, %c0_142] : memref<100x64xf32, #tpu.memory_space<vmem>>, vector<1x64xf32>
    %c35 = arith.constant 35 : index
    %c0_143 = arith.constant 0 : index
    %143 = vector.load %arg14[%c35, %c0_143] : memref<64x64xf32, #tpu.memory_space<vmem>>, vector<1x64xf32>
    tpu.vector_store %arg14[%c35, %c0_143], %142 {strides = array<i32>} : memref<64x64xf32, #tpu.memory_space<vmem>>, vector<1x64xf32>,
    %c4_144 = arith.constant 4 : index
    %c4_145 = arith.constant 4 : index
    %144 = memref.load %arg0[%c4_144, %c4_145] : memref<8x8xi32, #tpu.memory_space<smem>>
    %145 = arith.index_cast %144 : i32 to index
    %c0_146 = arith.constant 0 : index
    %146 = vector.load %arg1[%145, %c0_146] : memref<100x64xf32, #tpu.memory_space<vmem>>, vector<1x64xf32>
    %c36 = arith.constant 36 : index
    %c0_147 = arith.constant 0 : index
    %147 = vector.load %arg14[%c36, %c0_147] : memref<64x64xf32, #tpu.memory_space<vmem>>, vector<1x64xf32>
    tpu.vector_store %arg14[%c36, %c0_147], %146 {strides = array<i32>} : memref<64x64xf32, #tpu.memory_space<vmem>>, vector<1x64xf32>,
    %c5_148 = arith.constant 5 : index
    %c4_149 = arith.constant 4 : index
    %148 = memref.load %arg0[%c5_148, %c4_149] : memref<8x8xi32, #tpu.memory_space<smem>>
    %149 = arith.index_cast %148 : i32 to index
    %c0_150 = arith.constant 0 : index
    %150 = vector.load %arg1[%149, %c0_150] : memref<100x64xf32, #tpu.memory_space<vmem>>, vector<1x64xf32>
    %c37 = arith.constant 37 : index
    %c0_151 = arith.constant 0 : index
    %151 = vector.load %arg14[%c37, %c0_151] : memref<64x64xf32, #tpu.memory_space<vmem>>, vector<1x64xf32>
    tpu.vector_store %arg14[%c37, %c0_151], %150 {strides = array<i32>} : memref<64x64xf32, #tpu.memory_space<vmem>>, vector<1x64xf32>,
    %c6_152 = arith.constant 6 : index
    %c4_153 = arith.constant 4 : index
    %152 = memref.load %arg0[%c6_152, %c4_153] : memref<8x8xi32, #tpu.memory_space<smem>>
    %153 = arith.index_cast %152 : i32 to index
    %c0_154 = arith.constant 0 : index
    %154 = vector.load %arg1[%153, %c0_154] : memref<100x64xf32, #tpu.memory_space<vmem>>, vector<1x64xf32>
    %c38 = arith.constant 38 : index
    %c0_155 = arith.constant 0 : index
    %155 = vector.load %arg14[%c38, %c0_155] : memref<64x64xf32, #tpu.memory_space<vmem>>, vector<1x64xf32>
    tpu.vector_store %arg14[%c38, %c0_155], %154 {strides = array<i32>} : memref<64x64xf32, #tpu.memory_space<vmem>>, vector<1x64xf32>,
    %c7_156 = arith.constant 7 : index
    %c4_157 = arith.constant 4 : index
    %156 = memref.load %arg0[%c7_156, %c4_157] : memref<8x8xi32, #tpu.memory_space<smem>>
    %157 = arith.index_cast %156 : i32 to index
    %c0_158 = arith.constant 0 : index
    %158 = vector.load %arg1[%157, %c0_158] : memref<100x64xf32, #tpu.memory_space<vmem>>, vector<1x64xf32>
    %c39 = arith.constant 39 : index
    %c0_159 = arith.constant 0 : index
    %159 = vector.load %arg14[%c39, %c0_159] : memref<64x64xf32, #tpu.memory_space<vmem>>, vector<1x64xf32>
    tpu.vector_store %arg14[%c39, %c0_159], %158 {strides = array<i32>} : memref<64x64xf32, #tpu.memory_space<vmem>>, vector<1x64xf32>,
    %c0_160 = arith.constant 0 : index
    %c5_161 = arith.constant 5 : index
    %160 = memref.load %arg0[%c0_160, %c5_161] : memref<8x8xi32, #tpu.memory_space<smem>>
    %161 = arith.index_cast %160 : i32 to index
    %c0_162 = arith.constant 0 : index
    %162 = vector.load %arg1[%161, %c0_162] : memref<100x64xf32, #tpu.memory_space<vmem>>, vector<1x64xf32>
    %c40 = arith.constant 40 : index
    %c0_163 = arith.constant 0 : index
    %163 = vector.load %arg14[%c40, %c0_163] : memref<64x64xf32, #tpu.memory_space<vmem>>, vector<1x64xf32>
    tpu.vector_store %arg14[%c40, %c0_163], %162 {strides = array<i32>} : memref<64x64xf32, #tpu.memory_space<vmem>>, vector<1x64xf32>,
    %c1_164 = arith.constant 1 : index
    %c5_165 = arith.constant 5 : index
    %164 = memref.load %arg0[%c1_164, %c5_165] : memref<8x8xi32, #tpu.memory_space<smem>>
    %165 = arith.index_cast %164 : i32 to index
    %c0_166 = arith.constant 0 : index
    %166 = vector.load %arg1[%165, %c0_166] : memref<100x64xf32, #tpu.memory_space<vmem>>, vector<1x64xf32>
    %c41 = arith.constant 41 : index
    %c0_167 = arith.constant 0 : index
    %167 = vector.load %arg14[%c41, %c0_167] : memref<64x64xf32, #tpu.memory_space<vmem>>, vector<1x64xf32>
    tpu.vector_store %arg14[%c41, %c0_167], %166 {strides = array<i32>} : memref<64x64xf32, #tpu.memory_space<vmem>>, vector<1x64xf32>,
    %c2_168 = arith.constant 2 : index
    %c5_169 = arith.constant 5 : index
    %168 = memref.load %arg0[%c2_168, %c5_169] : memref<8x8xi32, #tpu.memory_space<smem>>
    %169 = arith.index_cast %168 : i32 to index
    %c0_170 = arith.constant 0 : index
    %170 = vector.load %arg1[%169, %c0_170] : memref<100x64xf32, #tpu.memory_space<vmem>>, vector<1x64xf32>
    %c42 = arith.constant 42 : index
    %c0_171 = arith.constant 0 : index
    %171 = vector.load %arg14[%c42, %c0_171] : memref<64x64xf32, #tpu.memory_space<vmem>>, vector<1x64xf32>
    tpu.vector_store %arg14[%c42, %c0_171], %170 {strides = array<i32>} : memref<64x64xf32, #tpu.memory_space<vmem>>, vector<1x64xf32>,
    %c3_172 = arith.constant 3 : index
    %c5_173 = arith.constant 5 : index
    %172 = memref.load %arg0[%c3_172, %c5_173] : memref<8x8xi32, #tpu.memory_space<smem>>
    %173 = arith.index_cast %172 : i32 to index
    %c0_174 = arith.constant 0 : index
    %174 = vector.load %arg1[%173, %c0_174] : memref<100x64xf32, #tpu.memory_space<vmem>>, vector<1x64xf32>
    %c43 = arith.constant 43 : index
    %c0_175 = arith.constant 0 : index
    %175 = vector.load %arg14[%c43, %c0_175] : memref<64x64xf32, #tpu.memory_space<vmem>>, vector<1x64xf32>
    tpu.vector_store %arg14[%c43, %c0_175], %174 {strides = array<i32>} : memref<64x64xf32, #tpu.memory_space<vmem>>, vector<1x64xf32>,
    %c4_176 = arith.constant 4 : index
    %c5_177 = arith.constant 5 : index
    %176 = memref.load %arg0[%c4_176, %c5_177] : memref<8x8xi32, #tpu.memory_space<smem>>
    %177 = arith.index_cast %176 : i32 to index
    %c0_178 = arith.constant 0 : index
    %178 = vector.load %arg1[%177, %c0_178] : memref<100x64xf32, #tpu.memory_space<vmem>>, vector<1x64xf32>
    %c44 = arith.constant 44 : index
    %c0_179 = arith.constant 0 : index
    %179 = vector.load %arg14[%c44, %c0_179] : memref<64x64xf32, #tpu.memory_space<vmem>>, vector<1x64xf32>
    tpu.vector_store %arg14[%c44, %c0_179], %178 {strides = array<i32>} : memref<64x64xf32, #tpu.memory_space<vmem>>, vector<1x64xf32>,
    %c5_180 = arith.constant 5 : index
    %c5_181 = arith.constant 5 : index
    %180 = memref.load %arg0[%c5_180, %c5_181] : memref<8x8xi32, #tpu.memory_space<smem>>
    %181 = arith.index_cast %180 : i32 to index
    %c0_182 = arith.constant 0 : index
    %182 = vector.load %arg1[%181, %c0_182] : memref<100x64xf32, #tpu.memory_space<vmem>>, vector<1x64xf32>
    %c45 = arith.constant 45 : index
    %c0_183 = arith.constant 0 : index
    %183 = vector.load %arg14[%c45, %c0_183] : memref<64x64xf32, #tpu.memory_space<vmem>>, vector<1x64xf32>
    tpu.vector_store %arg14[%c45, %c0_183], %182 {strides = array<i32>} : memref<64x64xf32, #tpu.memory_space<vmem>>, vector<1x64xf32>,
    %c6_184 = arith.constant 6 : index
    %c5_185 = arith.constant 5 : index
    %184 = memref.load %arg0[%c6_184, %c5_185] : memref<8x8xi32, #tpu.memory_space<smem>>
    %185 = arith.index_cast %184 : i32 to index
    %c0_186 = arith.constant 0 : index
    %186 = vector.load %arg1[%185, %c0_186] : memref<100x64xf32, #tpu.memory_space<vmem>>, vector<1x64xf32>
    %c46 = arith.constant 46 : index
    %c0_187 = arith.constant 0 : index
    %187 = vector.load %arg14[%c46, %c0_187] : memref<64x64xf32, #tpu.memory_space<vmem>>, vector<1x64xf32>
    tpu.vector_store %arg14[%c46, %c0_187], %186 {strides = array<i32>} : memref<64x64xf32, #tpu.memory_space<vmem>>, vector<1x64xf32>,
    %c7_188 = arith.constant 7 : index
    %c5_189 = arith.constant 5 : index
    %188 = memref.load %arg0[%c7_188, %c5_189] : memref<8x8xi32, #tpu.memory_space<smem>>
    %189 = arith.index_cast %188 : i32 to index
    %c0_190 = arith.constant 0 : index
    %190 = vector.load %arg1[%189, %c0_190] : memref<100x64xf32, #tpu.memory_space<vmem>>, vector<1x64xf32>
    %c47 = arith.constant 47 : index
    %c0_191 = arith.constant 0 : index
    %191 = vector.load %arg14[%c47, %c0_191] : memref<64x64xf32, #tpu.memory_space<vmem>>, vector<1x64xf32>
    tpu.vector_store %arg14[%c47, %c0_191], %190 {strides = array<i32>} : memref<64x64xf32, #tpu.memory_space<vmem>>, vector<1x64xf32>,
    %c0_192 = arith.constant 0 : index
    %c6_193 = arith.constant 6 : index
    %192 = memref.load %arg0[%c0_192, %c6_193] : memref<8x8xi32, #tpu.memory_space<smem>>
    %193 = arith.index_cast %192 : i32 to index
    %c0_194 = arith.constant 0 : index
    %194 = vector.load %arg1[%193, %c0_194] : memref<100x64xf32, #tpu.memory_space<vmem>>, vector<1x64xf32>
    %c48 = arith.constant 48 : index
    %c0_195 = arith.constant 0 : index
    %195 = vector.load %arg14[%c48, %c0_195] : memref<64x64xf32, #tpu.memory_space<vmem>>, vector<1x64xf32>
    tpu.vector_store %arg14[%c48, %c0_195], %194 {strides = array<i32>} : memref<64x64xf32, #tpu.memory_space<vmem>>, vector<1x64xf32>,
    %c1_196 = arith.constant 1 : index
    %c6_197 = arith.constant 6 : index
    %196 = memref.load %arg0[%c1_196, %c6_197] : memref<8x8xi32, #tpu.memory_space<smem>>
    %197 = arith.index_cast %196 : i32 to index
    %c0_198 = arith.constant 0 : index
    %198 = vector.load %arg1[%197, %c0_198] : memref<100x64xf32, #tpu.memory_space<vmem>>, vector<1x64xf32>
    %c49 = arith.constant 49 : index
    %c0_199 = arith.constant 0 : index
    %199 = vector.load %arg14[%c49, %c0_199] : memref<64x64xf32, #tpu.memory_space<vmem>>, vector<1x64xf32>
    tpu.vector_store %arg14[%c49, %c0_199], %198 {strides = array<i32>} : memref<64x64xf32, #tpu.memory_space<vmem>>, vector<1x64xf32>,
    %c2_200 = arith.constant 2 : index
    %c6_201 = arith.constant 6 : index
    %200 = memref.load %arg0[%c2_200, %c6_201] : memref<8x8xi32, #tpu.memory_space<smem>>
    %201 = arith.index_cast %200 : i32 to index
    %c0_202 = arith.constant 0 : index
    %202 = vector.load %arg1[%201, %c0_202] : memref<100x64xf32, #tpu.memory_space<vmem>>, vector<1x64xf32>
    %c50 = arith.constant 50 : index
    %c0_203 = arith.constant 0 : index
    %203 = vector.load %arg14[%c50, %c0_203] : memref<64x64xf32, #tpu.memory_space<vmem>>, vector<1x64xf32>
    tpu.vector_store %arg14[%c50, %c0_203], %202 {strides = array<i32>} : memref<64x64xf32, #tpu.memory_space<vmem>>, vector<1x64xf32>,
    %c3_204 = arith.constant 3 : index
    %c6_205 = arith.constant 6 : index
    %204 = memref.load %arg0[%c3_204, %c6_205] : memref<8x8xi32, #tpu.memory_space<smem>>
    %205 = arith.index_cast %204 : i32 to index
    %c0_206 = arith.constant 0 : index
    %206 = vector.load %arg1[%205, %c0_206] : memref<100x64xf32, #tpu.memory_space<vmem>>, vector<1x64xf32>
    %c51 = arith.constant 51 : index
    %c0_207 = arith.constant 0 : index
    %207 = vector.load %arg14[%c51, %c0_207] : memref<64x64xf32, #tpu.memory_space<vmem>>, vector<1x64xf32>
    tpu.vector_store %arg14[%c51, %c0_207], %206 {strides = array<i32>} : memref<64x64xf32, #tpu.memory_space<vmem>>, vector<1x64xf32>,
    %c4_208 = arith.constant 4 : index
    %c6_209 = arith.constant 6 : index
    %208 = memref.load %arg0[%c4_208, %c6_209] : memref<8x8xi32, #tpu.memory_space<smem>>
    %209 = arith.index_cast %208 : i32 to index
    %c0_210 = arith.constant 0 : index
    %210 = vector.load %arg1[%209, %c0_210] : memref<100x64xf32, #tpu.memory_space<vmem>>, vector<1x64xf32>
    %c52 = arith.constant 52 : index
    %c0_211 = arith.constant 0 : index
    %211 = vector.load %arg14[%c52, %c0_211] : memref<64x64xf32, #tpu.memory_space<vmem>>, vector<1x64xf32>
    tpu.vector_store %arg14[%c52, %c0_211], %210 {strides = array<i32>} : memref<64x64xf32, #tpu.memory_space<vmem>>, vector<1x64xf32>,
    %c5_212 = arith.constant 5 : index
    %c6_213 = arith.constant 6 : index
    %212 = memref.load %arg0[%c5_212, %c6_213] : memref<8x8xi32, #tpu.memory_space<smem>>
    %213 = arith.index_cast %212 : i32 to index
    %c0_214 = arith.constant 0 : index
    %214 = vector.load %arg1[%213, %c0_214] : memref<100x64xf32, #tpu.memory_space<vmem>>, vector<1x64xf32>
    %c53 = arith.constant 53 : index
    %c0_215 = arith.constant 0 : index
    %215 = vector.load %arg14[%c53, %c0_215] : memref<64x64xf32, #tpu.memory_space<vmem>>, vector<1x64xf32>
    tpu.vector_store %arg14[%c53, %c0_215], %214 {strides = array<i32>} : memref<64x64xf32, #tpu.memory_space<vmem>>, vector<1x64xf32>,
    %c6_216 = arith.constant 6 : index
    %c6_217 = arith.constant 6 : index
    %216 = memref.load %arg0[%c6_216, %c6_217] : memref<8x8xi32, #tpu.memory_space<smem>>
    %217 = arith.index_cast %216 : i32 to index
    %c0_218 = arith.constant 0 : index
    %218 = vector.load %arg1[%217, %c0_218] : memref<100x64xf32, #tpu.memory_space<vmem>>, vector<1x64xf32>
    %c54 = arith.constant 54 : index
    %c0_219 = arith.constant 0 : index
    %219 = vector.load %arg14[%c54, %c0_219] : memref<64x64xf32, #tpu.memory_space<vmem>>, vector<1x64xf32>
    tpu.vector_store %arg14[%c54, %c0_219], %218 {strides = array<i32>} : memref<64x64xf32, #tpu.memory_space<vmem>>, vector<1x64xf32>,
    %c7_220 = arith.constant 7 : index
    %c6_221 = arith.constant 6 : index
    %220 = memref.load %arg0[%c7_220, %c6_221] : memref<8x8xi32, #tpu.memory_space<smem>>
    %221 = arith.index_cast %220 : i32 to index
    %c0_222 = arith.constant 0 : index
    %222 = vector.load %arg1[%221, %c0_222] : memref<100x64xf32, #tpu.memory_space<vmem>>, vector<1x64xf32>
    %c55 = arith.constant 55 : index
    %c0_223 = arith.constant 0 : index
    %223 = vector.load %arg14[%c55, %c0_223] : memref<64x64xf32, #tpu.memory_space<vmem>>, vector<1x64xf32>
    tpu.vector_store %arg14[%c55, %c0_223], %222 {strides = array<i32>} : memref<64x64xf32, #tpu.memory_space<vmem>>, vector<1x64xf32>,
    %c0_224 = arith.constant 0 : index
    %c7_225 = arith.constant 7 : index
    %224 = memref.load %arg0[%c0_224, %c7_225] : memref<8x8xi32, #tpu.memory_space<smem>>
    %225 = arith.index_cast %224 : i32 to index
    %c0_226 = arith.constant 0 : index
    %226 = vector.load %arg1[%225, %c0_226] : memref<100x64xf32, #tpu.memory_space<vmem>>, vector<1x64xf32>
    %c56 = arith.constant 56 : index
    %c0_227 = arith.constant 0 : index
    %227 = vector.load %arg14[%c56, %c0_227] : memref<64x64xf32, #tpu.memory_space<vmem>>, vector<1x64xf32>
    tpu.vector_store %arg14[%c56, %c0_227], %226 {strides = array<i32>} : memref<64x64xf32, #tpu.memory_space<vmem>>, vector<1x64xf32>,
    %c1_228 = arith.constant 1 : index
    %c7_229 = arith.constant 7 : index
    %228 = memref.load %arg0[%c1_228, %c7_229] : memref<8x8xi32, #tpu.memory_space<smem>>
    %229 = arith.index_cast %228 : i32 to index
    %c0_230 = arith.constant 0 : index
    %230 = vector.load %arg1[%229, %c0_230] : memref<100x64xf32, #tpu.memory_space<vmem>>, vector<1x64xf32>
    %c57 = arith.constant 57 : index
    %c0_231 = arith.constant 0 : index
    %231 = vector.load %arg14[%c57, %c0_231] : memref<64x64xf32, #tpu.memory_space<vmem>>, vector<1x64xf32>
    tpu.vector_store %arg14[%c57, %c0_231], %230 {strides = array<i32>} : memref<64x64xf32, #tpu.memory_space<vmem>>, vector<1x64xf32>,
    %c2_232 = arith.constant 2 : index
    %c7_233 = arith.constant 7 : index
    %232 = memref.load %arg0[%c2_232, %c7_233] : memref<8x8xi32, #tpu.memory_space<smem>>
    %233 = arith.index_cast %232 : i32 to index
    %c0_234 = arith.constant 0 : index
    %234 = vector.load %arg1[%233, %c0_234] : memref<100x64xf32, #tpu.memory_space<vmem>>, vector<1x64xf32>
    %c58 = arith.constant 58 : index
    %c0_235 = arith.constant 0 : index
    %235 = vector.load %arg14[%c58, %c0_235] : memref<64x64xf32, #tpu.memory_space<vmem>>, vector<1x64xf32>
    tpu.vector_store %arg14[%c58, %c0_235], %234 {strides = array<i32>} : memref<64x64xf32, #tpu.memory_space<vmem>>, vector<1x64xf32>,
    %c3_236 = arith.constant 3 : index
    %c7_237 = arith.constant 7 : index
    %236 = memref.load %arg0[%c3_236, %c7_237] : memref<8x8xi32, #tpu.memory_space<smem>>
    %237 = arith.index_cast %236 : i32 to index
    %c0_238 = arith.constant 0 : index
    %238 = vector.load %arg1[%237, %c0_238] : memref<100x64xf32, #tpu.memory_space<vmem>>, vector<1x64xf32>
    %c59 = arith.constant 59 : index
    %c0_239 = arith.constant 0 : index
    %239 = vector.load %arg14[%c59, %c0_239] : memref<64x64xf32, #tpu.memory_space<vmem>>, vector<1x64xf32>
    tpu.vector_store %arg14[%c59, %c0_239], %238 {strides = array<i32>} : memref<64x64xf32, #tpu.memory_space<vmem>>, vector<1x64xf32>,
    %c4_240 = arith.constant 4 : index
    %c7_241 = arith.constant 7 : index
    %240 = memref.load %arg0[%c4_240, %c7_241] : memref<8x8xi32, #tpu.memory_space<smem>>
    %241 = arith.index_cast %240 : i32 to index
    %c0_242 = arith.constant 0 : index
    %242 = vector.load %arg1[%241, %c0_242] : memref<100x64xf32, #tpu.memory_space<vmem>>, vector<1x64xf32>
    %c60 = arith.constant 60 : index
    %c0_243 = arith.constant 0 : index
    %243 = vector.load %arg14[%c60, %c0_243] : memref<64x64xf32, #tpu.memory_space<vmem>>, vector<1x64xf32>
    tpu.vector_store %arg14[%c60, %c0_243], %242 {strides = array<i32>} : memref<64x64xf32, #tpu.memory_space<vmem>>, vector<1x64xf32>,
    %c5_244 = arith.constant 5 : index
    %c7_245 = arith.constant 7 : index
    %244 = memref.load %arg0[%c5_244, %c7_245] : memref<8x8xi32, #tpu.memory_space<smem>>
    %245 = arith.index_cast %244 : i32 to index
    %c0_246 = arith.constant 0 : index
    %246 = vector.load %arg1[%245, %c0_246] : memref<100x64xf32, #tpu.memory_space<vmem>>, vector<1x64xf32>
    %c61 = arith.constant 61 : index
    %c0_247 = arith.constant 0 : index
    %247 = vector.load %arg14[%c61, %c0_247] : memref<64x64xf32, #tpu.memory_space<vmem>>, vector<1x64xf32>
    tpu.vector_store %arg14[%c61, %c0_247], %246 {strides = array<i32>} : memref<64x64xf32, #tpu.memory_space<vmem>>, vector<1x64xf32>,
    %c6_248 = arith.constant 6 : index
    %c7_249 = arith.constant 7 : index
    %248 = memref.load %arg0[%c6_248, %c7_249] : memref<8x8xi32, #tpu.memory_space<smem>>
    %249 = arith.index_cast %248 : i32 to index
    %c0_250 = arith.constant 0 : index
    %250 = vector.load %arg1[%249, %c0_250] : memref<100x64xf32, #tpu.memory_space<vmem>>, vector<1x64xf32>
    %c62 = arith.constant 62 : index
    %c0_251 = arith.constant 0 : index
    %251 = vector.load %arg14[%c62, %c0_251] : memref<64x64xf32, #tpu.memory_space<vmem>>, vector<1x64xf32>
    tpu.vector_store %arg14[%c62, %c0_251], %250 {strides = array<i32>} : memref<64x64xf32, #tpu.memory_space<vmem>>, vector<1x64xf32>,
    %c7_252 = arith.constant 7 : index
    %c7_253 = arith.constant 7 : index
    %252 = memref.load %arg0[%c7_252, %c7_253] : memref<8x8xi32, #tpu.memory_space<smem>>
    %253 = arith.index_cast %252 : i32 to index
    %c0_254 = arith.constant 0 : index
    %254 = vector.load %arg1[%253, %c0_254] : memref<100x64xf32, #tpu.memory_space<vmem>>, vector<1x64xf32>
    %c63 = arith.constant 63 : index
    %c0_255 = arith.constant 0 : index
    %255 = vector.load %arg14[%c63, %c0_255] : memref<64x64xf32, #tpu.memory_space<vmem>>, vector<1x64xf32>
    tpu.vector_store %arg14[%c63, %c0_255], %254 {strides = array<i32>} : memref<64x64xf32, #tpu.memory_space<vmem>>, vector<1x64xf32>,
    %c0_256 = arith.constant 0 : index
    %c0_257 = arith.constant 0 : index
    %256 = vector.load %arg14[%c0_256, %c0_257] : memref<64x64xf32, #tpu.memory_space<vmem>>, vector<64x64xf32>
    %257 = arith.truncf %256 : vector<64x64xf32> to vector<64x64xbf16>
    %c0_258 = arith.constant 0 : index
    %c0_259 = arith.constant 0 : index
    %258 = vector.load %arg2[%c0_258, %c0_259] : memref<64x512xbf16, #tpu.memory_space<vmem>>, vector<64x512xbf16>
    %cst = arith.constant dense<0.000000e+00> : vector<64x512xf32>
    %259 = tpu.matmul %257, %258, %cst {dimension_numbers = #tpu.dot_dimension_numbers<[1], [0], [0], [1], [0, 0, 1, 1], [], []>} : vector<64x64xbf16>, vector<64x512xbf16>, vector<64x512xf32> -> vector<64x512xf32>
    %c0_260 = arith.constant 0 : index
    %c0_261 = arith.constant 0 : index
    %260 = vector.load %arg4[%c0_260, %c0_261] : memref<1x512xf32, #tpu.memory_space<vmem>>, vector<1x512xf32>
    %261 = vector.broadcast %260 : vector<1x512xf32> to vector<64x512xf32>
    %262 = arith.addf %259, %261 : vector<64x512xf32>
    %c0_262 = arith.constant 0 : index
    %c0_263 = arith.constant 0 : index
    %263 = vector.load %arg15[%c0_262, %c0_263] : memref<64x512xf32, #tpu.memory_space<vmem>>, vector<64x512xf32>
    tpu.vector_store %arg15[%c0_262, %c0_263], %262 {strides = array<i32>} : memref<64x512xf32, #tpu.memory_space<vmem>>, vector<64x512xf32>,
    %c0_264 = arith.constant 0 : index
    %c0_265 = arith.constant 0 : index
    %c0_266 = arith.constant 0 : index
    %264 = vector.load %arg9[%c0_264, %c0_265, %c0_266] : memref<2x8x128xf32, #tpu.memory_space<vmem>>, vector<1x8x128xf32>
    %265 = vector.shape_cast %264 : vector<1x8x128xf32> to vector<8x128xf32>
    %c0_267 = arith.constant 0 : index
    %c0_268 = arith.constant 0 : index
    %c0_269 = arith.constant 0 : index
    %266 = vector.load %arg10[%c0_267, %c0_268, %c0_269] : memref<2x8x128xf32, #tpu.memory_space<vmem>>, vector<1x8x128xf32>
    %267 = vector.shape_cast %266 : vector<1x8x128xf32> to vector<8x128xf32>
    %c1_270 = arith.constant 1 : index
    %c0_271 = arith.constant 0 : index
    %c0_272 = arith.constant 0 : index
    %268 = vector.load %arg9[%c1_270, %c0_271, %c0_272] : memref<2x8x128xf32, #tpu.memory_space<vmem>>, vector<1x8x128xf32>
    %269 = vector.shape_cast %268 : vector<1x8x128xf32> to vector<8x128xf32>
    %c1_273 = arith.constant 1 : index
    %c0_274 = arith.constant 0 : index
    %c0_275 = arith.constant 0 : index
    %270 = vector.load %arg10[%c1_273, %c0_274, %c0_275] : memref<2x8x128xf32, #tpu.memory_space<vmem>>, vector<1x8x128xf32>
    %271 = vector.shape_cast %270 : vector<1x8x128xf32> to vector<8x128xf32>
    %c0_276 = arith.constant 0 : index
    %c0_277 = arith.constant 0 : index
    %272 = vector.load %arg15[%c0_276, %c0_277] : memref<64x512xf32, #tpu.memory_space<vmem>>, vector<8x512xf32>
    %273 = arith.truncf %265 : vector<8x128xf32> to vector<8x128xbf16>
    %c0_278 = arith.constant 0 : index
    %c0_279 = arith.constant 0 : index
    %274 = vector.load %arg3[%c0_278, %c0_279] : memref<128x512xbf16, #tpu.memory_space<vmem>>, vector<128x512xbf16>
    %cst_280 = arith.constant dense<0.000000e+00> : vector<8x512xf32>
    %275 = tpu.matmul %273, %274, %cst_280 {dimension_numbers = #tpu.dot_dimension_numbers<[1], [0], [0], [1], [0, 0, 1, 1], [], []>} : vector<8x128xbf16>, vector<128x512xbf16>, vector<8x512xf32> -> vector<8x512xf32>
    %276 = arith.addf %272, %275 : vector<8x512xf32>
    %277 = vector.extract_strided_slice %276 {offsets = [0, 0], sizes = [8, 128], strides = [1, 1]} : vector<8x512xf32> to vector<8x128xf32>
    %278 = arith.negf %277 : vector<8x128xf32>
    %279 = math.exp %278 : vector<8x128xf32>
    %cst_281 = arith.constant 1.000000e+00 : f32
    %280 = vector.broadcast %cst_281 : f32 to vector<8x128xf32>
    %281 = arith.addf %280, %279 : vector<8x128xf32>
    %282 = arith.divf %280, %281 : vector<8x128xf32>
    %283 = vector.extract_strided_slice %276 {offsets = [0, 128], sizes = [8, 128], strides = [1, 1]} : vector<8x512xf32> to vector<8x128xf32>
    %284 = arith.negf %283 : vector<8x128xf32>
    %285 = math.exp %284 : vector<8x128xf32>
    %cst_282 = arith.constant 1.000000e+00 : f32
    %286 = vector.broadcast %cst_282 : f32 to vector<8x128xf32>
    %287 = arith.addf %286, %285 : vector<8x128xf32>
    %288 = arith.divf %286, %287 : vector<8x128xf32>
    %289 = vector.extract_strided_slice %276 {offsets = [0, 256], sizes = [8, 128], strides = [1, 1]} : vector<8x512xf32> to vector<8x128xf32>
    %290 = math.tanh %289 : vector<8x128xf32>
    %291 = vector.extract_strided_slice %276 {offsets = [0, 384], sizes = [8, 128], strides = [1, 1]} : vector<8x512xf32> to vector<8x128xf32>
    %292 = arith.negf %291 : vector<8x128xf32>
    %293 = math.exp %292 : vector<8x128xf32>
    %cst_283 = arith.constant 1.000000e+00 : f32
    %294 = vector.broadcast %cst_283 : f32 to vector<8x128xf32>
    %295 = arith.addf %294, %293 : vector<8x128xf32>
    %296 = arith.divf %294, %295 : vector<8x128xf32>
    %297 = arith.mulf %288, %267 : vector<8x128xf32>
    %298 = arith.mulf %282, %290 : vector<8x128xf32>
    %299 = arith.addf %297, %298 : vector<8x128xf32>
    %300 = math.tanh %299 : vector<8x128xf32>
    %301 = arith.mulf %296, %300 : vector<8x128xf32>
    %c8_284 = arith.constant 8 : index
    %c0_285 = arith.constant 0 : index
    %302 = vector.load %arg15[%c8_284, %c0_285] : memref<64x512xf32, #tpu.memory_space<vmem>>, vector<8x512xf32>
    %303 = arith.truncf %301 : vector<8x128xf32> to vector<8x128xbf16>
    %c0_286 = arith.constant 0 : index
    %c0_287 = arith.constant 0 : index
    %304 = vector.load %arg3[%c0_286, %c0_287] : memref<128x512xbf16, #tpu.memory_space<vmem>>, vector<128x512xbf16>
    %cst_288 = arith.constant dense<0.000000e+00> : vector<8x512xf32>
    %305 = tpu.matmul %303, %304, %cst_288 {dimension_numbers = #tpu.dot_dimension_numbers<[1], [0], [0], [1], [0, 0, 1, 1], [], []>} : vector<8x128xbf16>, vector<128x512xbf16>, vector<8x512xf32> -> vector<8x512xf32>
    %306 = arith.addf %302, %305 : vector<8x512xf32>
    %307 = vector.extract_strided_slice %306 {offsets = [0, 0], sizes = [8, 128], strides = [1, 1]} : vector<8x512xf32> to vector<8x128xf32>
    %308 = arith.negf %307 : vector<8x128xf32>
    %309 = math.exp %308 : vector<8x128xf32>
    %cst_289 = arith.constant 1.000000e+00 : f32
    %310 = vector.broadcast %cst_289 : f32 to vector<8x128xf32>
    %311 = arith.addf %310, %309 : vector<8x128xf32>
    %312 = arith.divf %310, %311 : vector<8x128xf32>
    %313 = vector.extract_strided_slice %306 {offsets = [0, 128], sizes = [8, 128], strides = [1, 1]} : vector<8x512xf32> to vector<8x128xf32>
    %314 = arith.negf %313 : vector<8x128xf32>
    %315 = math.exp %314 : vector<8x128xf32>
    %cst_290 = arith.constant 1.000000e+00 : f32
    %316 = vector.broadcast %cst_290 : f32 to vector<8x128xf32>
    %317 = arith.addf %316, %315 : vector<8x128xf32>
    %318 = arith.divf %316, %317 : vector<8x128xf32>
    %319 = vector.extract_strided_slice %306 {offsets = [0, 256], sizes = [8, 128], strides = [1, 1]} : vector<8x512xf32> to vector<8x128xf32>
    %320 = math.tanh %319 : vector<8x128xf32>
    %321 = vector.extract_strided_slice %306 {offsets = [0, 384], sizes = [8, 128], strides = [1, 1]} : vector<8x512xf32> to vector<8x128xf32>
    %322 = arith.negf %321 : vector<8x128xf32>
    %323 = math.exp %322 : vector<8x128xf32>
    %cst_291 = arith.constant 1.000000e+00 : f32
    %324 = vector.broadcast %cst_291 : f32 to vector<8x128xf32>
    %325 = arith.addf %324, %323 : vector<8x128xf32>
    %326 = arith.divf %324, %325 : vector<8x128xf32>
    %327 = arith.mulf %318, %299 : vector<8x128xf32>
    %328 = arith.mulf %312, %320 : vector<8x128xf32>
    %329 = arith.addf %327, %328 : vector<8x128xf32>
    %330 = math.tanh %329 : vector<8x128xf32>
    %331 = arith.mulf %326, %330 : vector<8x128xf32>
    %332 = arith.truncf %301 : vector<8x128xf32> to vector<8x128xbf16>
    %333 = arith.truncf %269 : vector<8x128xf32> to vector<8x128xbf16>
    %334 = tpu.concatenate %332, %333 in 1 : vector<8x128xbf16>, vector<8x128xbf16> -> vector<8x256xbf16>
    %c0_292 = arith.constant 0 : index
    %c0_293 = arith.constant 0 : index
    %335 = vector.load %arg5[%c0_292, %c0_293] : memref<256x512xbf16, #tpu.memory_space<vmem>>, vector<256x512xbf16>
    %cst_294 = arith.constant dense<0.000000e+00> : vector<8x512xf32>
    %336 = tpu.matmul %334, %335, %cst_294 {dimension_numbers = #tpu.dot_dimension_numbers<[1], [0], [0], [1], [0, 0, 1, 1], [], []>} : vector<8x256xbf16>, vector<256x512xbf16>, vector<8x512xf32> -> vector<8x512xf32>
    %c0_295 = arith.constant 0 : index
    %c0_296 = arith.constant 0 : index
    %337 = vector.load %arg6[%c0_295, %c0_296] : memref<1x512xf32, #tpu.memory_space<vmem>>, vector<1x512xf32>
    %338 = vector.broadcast %337 : vector<1x512xf32> to vector<8x512xf32>
    %339 = arith.addf %336, %338 : vector<8x512xf32>
    %340 = vector.extract_strided_slice %339 {offsets = [0, 0], sizes = [8, 128], strides = [1, 1]} : vector<8x512xf32> to vector<8x128xf32>
    %341 = arith.negf %340 : vector<8x128xf32>
    %342 = math.exp %341 : vector<8x128xf32>
    %cst_297 = arith.constant 1.000000e+00 : f32
    %343 = vector.broadcast %cst_297 : f32 to vector<8x128xf32>
    %344 = arith.addf %343, %342 : vector<8x128xf32>
    %345 = arith.divf %343, %344 : vector<8x128xf32>
    %346 = vector.extract_strided_slice %339 {offsets = [0, 128], sizes = [8, 128], strides = [1, 1]} : vector<8x512xf32> to vector<8x128xf32>
    %347 = arith.negf %346 : vector<8x128xf32>
    %348 = math.exp %347 : vector<8x128xf32>
    %cst_298 = arith.constant 1.000000e+00 : f32
    %349 = vector.broadcast %cst_298 : f32 to vector<8x128xf32>
    %350 = arith.addf %349, %348 : vector<8x128xf32>
    %351 = arith.divf %349, %350 : vector<8x128xf32>
    %352 = vector.extract_strided_slice %339 {offsets = [0, 256], sizes = [8, 128], strides = [1, 1]} : vector<8x512xf32> to vector<8x128xf32>
    %353 = math.tanh %352 : vector<8x128xf32>
    %354 = vector.extract_strided_slice %339 {offsets = [0, 384], sizes = [8, 128], strides = [1, 1]} : vector<8x512xf32> to vector<8x128xf32>
    %355 = arith.negf %354 : vector<8x128xf32>
    %356 = math.exp %355 : vector<8x128xf32>
    %cst_299 = arith.constant 1.000000e+00 : f32
    %357 = vector.broadcast %cst_299 : f32 to vector<8x128xf32>
    %358 = arith.addf %357, %356 : vector<8x128xf32>
    %359 = arith.divf %357, %358 : vector<8x128xf32>
    %360 = arith.mulf %351, %271 : vector<8x128xf32>
    %361 = arith.mulf %345, %353 : vector<8x128xf32>
    %362 = arith.addf %360, %361 : vector<8x128xf32>
    %363 = math.tanh %362 : vector<8x128xf32>
    %364 = arith.mulf %359, %363 : vector<8x128xf32>
    %c16_300 = arith.constant 16 : index
    %c0_301 = arith.constant 0 : index
    %365 = vector.load %arg15[%c16_300, %c0_301] : memref<64x512xf32, #tpu.memory_space<vmem>>, vector<8x512xf32>
    %366 = arith.truncf %331 : vector<8x128xf32> to vector<8x128xbf16>
    %c0_302 = arith.constant 0 : index
    %c0_303 = arith.constant 0 : index
    %367 = vector.load %arg3[%c0_302, %c0_303] : memref<128x512xbf16, #tpu.memory_space<vmem>>, vector<128x512xbf16>
    %cst_304 = arith.constant dense<0.000000e+00> : vector<8x512xf32>
    %368 = tpu.matmul %366, %367, %cst_304 {dimension_numbers = #tpu.dot_dimension_numbers<[1], [0], [0], [1], [0, 0, 1, 1], [], []>} : vector<8x128xbf16>, vector<128x512xbf16>, vector<8x512xf32> -> vector<8x512xf32>
    %369 = arith.addf %365, %368 : vector<8x512xf32>
    %370 = vector.extract_strided_slice %369 {offsets = [0, 0], sizes = [8, 128], strides = [1, 1]} : vector<8x512xf32> to vector<8x128xf32>
    %371 = arith.negf %370 : vector<8x128xf32>
    %372 = math.exp %371 : vector<8x128xf32>
    %cst_305 = arith.constant 1.000000e+00 : f32
    %373 = vector.broadcast %cst_305 : f32 to vector<8x128xf32>
    %374 = arith.addf %373, %372 : vector<8x128xf32>
    %375 = arith.divf %373, %374 : vector<8x128xf32>
    %376 = vector.extract_strided_slice %369 {offsets = [0, 128], sizes = [8, 128], strides = [1, 1]} : vector<8x512xf32> to vector<8x128xf32>
    %377 = arith.negf %376 : vector<8x128xf32>
    %378 = math.exp %377 : vector<8x128xf32>
    %cst_306 = arith.constant 1.000000e+00 : f32
    %379 = vector.broadcast %cst_306 : f32 to vector<8x128xf32>
    %380 = arith.addf %379, %378 : vector<8x128xf32>
    %381 = arith.divf %379, %380 : vector<8x128xf32>
    %382 = vector.extract_strided_slice %369 {offsets = [0, 256], sizes = [8, 128], strides = [1, 1]} : vector<8x512xf32> to vector<8x128xf32>
    %383 = math.tanh %382 : vector<8x128xf32>
    %384 = vector.extract_strided_slice %369 {offsets = [0, 384], sizes = [8, 128], strides = [1, 1]} : vector<8x512xf32> to vector<8x128xf32>
    %385 = arith.negf %384 : vector<8x128xf32>
    %386 = math.exp %385 : vector<8x128xf32>
    %cst_307 = arith.constant 1.000000e+00 : f32
    %387 = vector.broadcast %cst_307 : f32 to vector<8x128xf32>
    %388 = arith.addf %387, %386 : vector<8x128xf32>
    %389 = arith.divf %387, %388 : vector<8x128xf32>
    %390 = arith.mulf %381, %329 : vector<8x128xf32>
    %391 = arith.mulf %375, %383 : vector<8x128xf32>
    %392 = arith.addf %390, %391 : vector<8x128xf32>
    %393 = math.tanh %392 : vector<8x128xf32>
    %394 = arith.mulf %389, %393 : vector<8x128xf32>
    %395 = arith.truncf %331 : vector<8x128xf32> to vector<8x128xbf16>
    %396 = arith.truncf %364 : vector<8x128xf32> to vector<8x128xbf16>
    %397 = tpu.concatenate %395, %396 in 1 : vector<8x128xbf16>, vector<8x128xbf16> -> vector<8x256xbf16>
    %c0_308 = arith.constant 0 : index
    %c0_309 = arith.constant 0 : index
    %398 = vector.load %arg5[%c0_308, %c0_309] : memref<256x512xbf16, #tpu.memory_space<vmem>>, vector<256x512xbf16>
    %cst_310 = arith.constant dense<0.000000e+00> : vector<8x512xf32>
    %399 = tpu.matmul %397, %398, %cst_310 {dimension_numbers = #tpu.dot_dimension_numbers<[1], [0], [0], [1], [0, 0, 1, 1], [], []>} : vector<8x256xbf16>, vector<256x512xbf16>, vector<8x512xf32> -> vector<8x512xf32>
    %c0_311 = arith.constant 0 : index
    %c0_312 = arith.constant 0 : index
    %400 = vector.load %arg6[%c0_311, %c0_312] : memref<1x512xf32, #tpu.memory_space<vmem>>, vector<1x512xf32>
    %401 = vector.broadcast %400 : vector<1x512xf32> to vector<8x512xf32>
    %402 = arith.addf %399, %401 : vector<8x512xf32>
    %403 = vector.extract_strided_slice %402 {offsets = [0, 0], sizes = [8, 128], strides = [1, 1]} : vector<8x512xf32> to vector<8x128xf32>
    %404 = arith.negf %403 : vector<8x128xf32>
    %405 = math.exp %404 : vector<8x128xf32>
    %cst_313 = arith.constant 1.000000e+00 : f32
    %406 = vector.broadcast %cst_313 : f32 to vector<8x128xf32>
    %407 = arith.addf %406, %405 : vector<8x128xf32>
    %408 = arith.divf %406, %407 : vector<8x128xf32>
    %409 = vector.extract_strided_slice %402 {offsets = [0, 128], sizes = [8, 128], strides = [1, 1]} : vector<8x512xf32> to vector<8x128xf32>
    %410 = arith.negf %409 : vector<8x128xf32>
    %411 = math.exp %410 : vector<8x128xf32>
    %cst_314 = arith.constant 1.000000e+00 : f32
    %412 = vector.broadcast %cst_314 : f32 to vector<8x128xf32>
    %413 = arith.addf %412, %411 : vector<8x128xf32>
    %414 = arith.divf %412, %413 : vector<8x128xf32>
    %415 = vector.extract_strided_slice %402 {offsets = [0, 256], sizes = [8, 128], strides = [1, 1]} : vector<8x512xf32> to vector<8x128xf32>
    %416 = math.tanh %415 : vector<8x128xf32>
    %417 = vector.extract_strided_slice %402 {offsets = [0, 384], sizes = [8, 128], strides = [1, 1]} : vector<8x512xf32> to vector<8x128xf32>
    %418 = arith.negf %417 : vector<8x128xf32>
    %419 = math.exp %418 : vector<8x128xf32>
    %cst_315 = arith.constant 1.000000e+00 : f32
    %420 = vector.broadcast %cst_315 : f32 to vector<8x128xf32>
    %421 = arith.addf %420, %419 : vector<8x128xf32>
    %422 = arith.divf %420, %421 : vector<8x128xf32>
    %423 = arith.mulf %414, %362 : vector<8x128xf32>
    %424 = arith.mulf %408, %416 : vector<8x128xf32>
    %425 = arith.addf %423, %424 : vector<8x128xf32>
    %426 = math.tanh %425 : vector<8x128xf32>
    %427 = arith.mulf %422, %426 : vector<8x128xf32>
    %c24_316 = arith.constant 24 : index
    %c0_317 = arith.constant 0 : index
    %428 = vector.load %arg15[%c24_316, %c0_317] : memref<64x512xf32, #tpu.memory_space<vmem>>, vector<8x512xf32>
    %429 = arith.truncf %394 : vector<8x128xf32> to vector<8x128xbf16>
    %c0_318 = arith.constant 0 : index
    %c0_319 = arith.constant 0 : index
    %430 = vector.load %arg3[%c0_318, %c0_319] : memref<128x512xbf16, #tpu.memory_space<vmem>>, vector<128x512xbf16>
    %cst_320 = arith.constant dense<0.000000e+00> : vector<8x512xf32>
    %431 = tpu.matmul %429, %430, %cst_320 {dimension_numbers = #tpu.dot_dimension_numbers<[1], [0], [0], [1], [0, 0, 1, 1], [], []>} : vector<8x128xbf16>, vector<128x512xbf16>, vector<8x512xf32> -> vector<8x512xf32>
    %432 = arith.addf %428, %431 : vector<8x512xf32>
    %433 = vector.extract_strided_slice %432 {offsets = [0, 0], sizes = [8, 128], strides = [1, 1]} : vector<8x512xf32> to vector<8x128xf32>
    %434 = arith.negf %433 : vector<8x128xf32>
    %435 = math.exp %434 : vector<8x128xf32>
    %cst_321 = arith.constant 1.000000e+00 : f32
    %436 = vector.broadcast %cst_321 : f32 to vector<8x128xf32>
    %437 = arith.addf %436, %435 : vector<8x128xf32>
    %438 = arith.divf %436, %437 : vector<8x128xf32>
    %439 = vector.extract_strided_slice %432 {offsets = [0, 128], sizes = [8, 128], strides = [1, 1]} : vector<8x512xf32> to vector<8x128xf32>
    %440 = arith.negf %439 : vector<8x128xf32>
    %441 = math.exp %440 : vector<8x128xf32>
    %cst_322 = arith.constant 1.000000e+00 : f32
    %442 = vector.broadcast %cst_322 : f32 to vector<8x128xf32>
    %443 = arith.addf %442, %441 : vector<8x128xf32>
    %444 = arith.divf %442, %443 : vector<8x128xf32>
    %445 = vector.extract_strided_slice %432 {offsets = [0, 256], sizes = [8, 128], strides = [1, 1]} : vector<8x512xf32> to vector<8x128xf32>
    %446 = math.tanh %445 : vector<8x128xf32>
    %447 = vector.extract_strided_slice %432 {offsets = [0, 384], sizes = [8, 128], strides = [1, 1]} : vector<8x512xf32> to vector<8x128xf32>
    %448 = arith.negf %447 : vector<8x128xf32>
    %449 = math.exp %448 : vector<8x128xf32>
    %cst_323 = arith.constant 1.000000e+00 : f32
    %450 = vector.broadcast %cst_323 : f32 to vector<8x128xf32>
    %451 = arith.addf %450, %449 : vector<8x128xf32>
    %452 = arith.divf %450, %451 : vector<8x128xf32>
    %453 = arith.mulf %444, %392 : vector<8x128xf32>
    %454 = arith.mulf %438, %446 : vector<8x128xf32>
    %455 = arith.addf %453, %454 : vector<8x128xf32>
    %456 = math.tanh %455 : vector<8x128xf32>
    %457 = arith.mulf %452, %456 : vector<8x128xf32>
    %458 = arith.truncf %394 : vector<8x128xf32> to vector<8x128xbf16>
    %459 = arith.truncf %427 : vector<8x128xf32> to vector<8x128xbf16>
    %460 = tpu.concatenate %458, %459 in 1 : vector<8x128xbf16>, vector<8x128xbf16> -> vector<8x256xbf16>
    %c0_324 = arith.constant 0 : index
    %c0_325 = arith.constant 0 : index
    %461 = vector.load %arg5[%c0_324, %c0_325] : memref<256x512xbf16, #tpu.memory_space<vmem>>, vector<256x512xbf16>
    %cst_326 = arith.constant dense<0.000000e+00> : vector<8x512xf32>
    %462 = tpu.matmul %460, %461, %cst_326 {dimension_numbers = #tpu.dot_dimension_numbers<[1], [0], [0], [1], [0, 0, 1, 1], [], []>} : vector<8x256xbf16>, vector<256x512xbf16>, vector<8x512xf32> -> vector<8x512xf32>
    %c0_327 = arith.constant 0 : index
    %c0_328 = arith.constant 0 : index
    %463 = vector.load %arg6[%c0_327, %c0_328] : memref<1x512xf32, #tpu.memory_space<vmem>>, vector<1x512xf32>
    %464 = vector.broadcast %463 : vector<1x512xf32> to vector<8x512xf32>
    %465 = arith.addf %462, %464 : vector<8x512xf32>
    %466 = vector.extract_strided_slice %465 {offsets = [0, 0], sizes = [8, 128], strides = [1, 1]} : vector<8x512xf32> to vector<8x128xf32>
    %467 = arith.negf %466 : vector<8x128xf32>
    %468 = math.exp %467 : vector<8x128xf32>
    %cst_329 = arith.constant 1.000000e+00 : f32
    %469 = vector.broadcast %cst_329 : f32 to vector<8x128xf32>
    %470 = arith.addf %469, %468 : vector<8x128xf32>
    %471 = arith.divf %469, %470 : vector<8x128xf32>
    %472 = vector.extract_strided_slice %465 {offsets = [0, 128], sizes = [8, 128], strides = [1, 1]} : vector<8x512xf32> to vector<8x128xf32>
    %473 = arith.negf %472 : vector<8x128xf32>
    %474 = math.exp %473 : vector<8x128xf32>
    %cst_330 = arith.constant 1.000000e+00 : f32
    %475 = vector.broadcast %cst_330 : f32 to vector<8x128xf32>
    %476 = arith.addf %475, %474 : vector<8x128xf32>
    %477 = arith.divf %475, %476 : vector<8x128xf32>
    %478 = vector.extract_strided_slice %465 {offsets = [0, 256], sizes = [8, 128], strides = [1, 1]} : vector<8x512xf32> to vector<8x128xf32>
    %479 = math.tanh %478 : vector<8x128xf32>
    %480 = vector.extract_strided_slice %465 {offsets = [0, 384], sizes = [8, 128], strides = [1, 1]} : vector<8x512xf32> to vector<8x128xf32>
    %481 = arith.negf %480 : vector<8x128xf32>
    %482 = math.exp %481 : vector<8x128xf32>
    %cst_331 = arith.constant 1.000000e+00 : f32
    %483 = vector.broadcast %cst_331 : f32 to vector<8x128xf32>
    %484 = arith.addf %483, %482 : vector<8x128xf32>
    %485 = arith.divf %483, %484 : vector<8x128xf32>
    %486 = arith.mulf %477, %425 : vector<8x128xf32>
    %487 = arith.mulf %471, %479 : vector<8x128xf32>
    %488 = arith.addf %486, %487 : vector<8x128xf32>
    %489 = math.tanh %488 : vector<8x128xf32>
    %490 = arith.mulf %485, %489 : vector<8x128xf32>
    %c32_332 = arith.constant 32 : index
    %c0_333 = arith.constant 0 : index
    %491 = vector.load %arg15[%c32_332, %c0_333] : memref<64x512xf32, #tpu.memory_space<vmem>>, vector<8x512xf32>
    %492 = arith.truncf %457 : vector<8x128xf32> to vector<8x128xbf16>
    %c0_334 = arith.constant 0 : index
    %c0_335 = arith.constant 0 : index
    %493 = vector.load %arg3[%c0_334, %c0_335] : memref<128x512xbf16, #tpu.memory_space<vmem>>, vector<128x512xbf16>
    %cst_336 = arith.constant dense<0.000000e+00> : vector<8x512xf32>
    %494 = tpu.matmul %492, %493, %cst_336 {dimension_numbers = #tpu.dot_dimension_numbers<[1], [0], [0], [1], [0, 0, 1, 1], [], []>} : vector<8x128xbf16>, vector<128x512xbf16>, vector<8x512xf32> -> vector<8x512xf32>
    %495 = arith.addf %491, %494 : vector<8x512xf32>
    %496 = vector.extract_strided_slice %495 {offsets = [0, 0], sizes = [8, 128], strides = [1, 1]} : vector<8x512xf32> to vector<8x128xf32>
    %497 = arith.negf %496 : vector<8x128xf32>
    %498 = math.exp %497 : vector<8x128xf32>
    %cst_337 = arith.constant 1.000000e+00 : f32
    %499 = vector.broadcast %cst_337 : f32 to vector<8x128xf32>
    %500 = arith.addf %499, %498 : vector<8x128xf32>
    %501 = arith.divf %499, %500 : vector<8x128xf32>
    %502 = vector.extract_strided_slice %495 {offsets = [0, 128], sizes = [8, 128], strides = [1, 1]} : vector<8x512xf32> to vector<8x128xf32>
    %503 = arith.negf %502 : vector<8x128xf32>
    %504 = math.exp %503 : vector<8x128xf32>
    %cst_338 = arith.constant 1.000000e+00 : f32
    %505 = vector.broadcast %cst_338 : f32 to vector<8x128xf32>
    %506 = arith.addf %505, %504 : vector<8x128xf32>
    %507 = arith.divf %505, %506 : vector<8x128xf32>
    %508 = vector.extract_strided_slice %495 {offsets = [0, 256], sizes = [8, 128], strides = [1, 1]} : vector<8x512xf32> to vector<8x128xf32>
    %509 = math.tanh %508 : vector<8x128xf32>
    %510 = vector.extract_strided_slice %495 {offsets = [0, 384], sizes = [8, 128], strides = [1, 1]} : vector<8x512xf32> to vector<8x128xf32>
    %511 = arith.negf %510 : vector<8x128xf32>
    %512 = math.exp %511 : vector<8x128xf32>
    %cst_339 = arith.constant 1.000000e+00 : f32
    %513 = vector.broadcast %cst_339 : f32 to vector<8x128xf32>
    %514 = arith.addf %513, %512 : vector<8x128xf32>
    %515 = arith.divf %513, %514 : vector<8x128xf32>
    %516 = arith.mulf %507, %455 : vector<8x128xf32>
    %517 = arith.mulf %501, %509 : vector<8x128xf32>
    %518 = arith.addf %516, %517 : vector<8x128xf32>
    %519 = math.tanh %518 : vector<8x128xf32>
    %520 = arith.mulf %515, %519 : vector<8x128xf32>
    %521 = arith.truncf %457 : vector<8x128xf32> to vector<8x128xbf16>
    %522 = arith.truncf %490 : vector<8x128xf32> to vector<8x128xbf16>
    %523 = tpu.concatenate %521, %522 in 1 : vector<8x128xbf16>, vector<8x128xbf16> -> vector<8x256xbf16>
    %c0_340 = arith.constant 0 : index
    %c0_341 = arith.constant 0 : index
    %524 = vector.load %arg5[%c0_340, %c0_341] : memref<256x512xbf16, #tpu.memory_space<vmem>>, vector<256x512xbf16>
    %cst_342 = arith.constant dense<0.000000e+00> : vector<8x512xf32>
    %525 = tpu.matmul %523, %524, %cst_342 {dimension_numbers = #tpu.dot_dimension_numbers<[1], [0], [0], [1], [0, 0, 1, 1], [], []>} : vector<8x256xbf16>, vector<256x512xbf16>, vector<8x512xf32> -> vector<8x512xf32>
    %c0_343 = arith.constant 0 : index
    %c0_344 = arith.constant 0 : index
    %526 = vector.load %arg6[%c0_343, %c0_344] : memref<1x512xf32, #tpu.memory_space<vmem>>, vector<1x512xf32>
    %527 = vector.broadcast %526 : vector<1x512xf32> to vector<8x512xf32>
    %528 = arith.addf %525, %527 : vector<8x512xf32>
    %529 = vector.extract_strided_slice %528 {offsets = [0, 0], sizes = [8, 128], strides = [1, 1]} : vector<8x512xf32> to vector<8x128xf32>
    %530 = arith.negf %529 : vector<8x128xf32>
    %531 = math.exp %530 : vector<8x128xf32>
    %cst_345 = arith.constant 1.000000e+00 : f32
    %532 = vector.broadcast %cst_345 : f32 to vector<8x128xf32>
    %533 = arith.addf %532, %531 : vector<8x128xf32>
    %534 = arith.divf %532, %533 : vector<8x128xf32>
    %535 = vector.extract_strided_slice %528 {offsets = [0, 128], sizes = [8, 128], strides = [1, 1]} : vector<8x512xf32> to vector<8x128xf32>
    %536 = arith.negf %535 : vector<8x128xf32>
    %537 = math.exp %536 : vector<8x128xf32>
    %cst_346 = arith.constant 1.000000e+00 : f32
    %538 = vector.broadcast %cst_346 : f32 to vector<8x128xf32>
    %539 = arith.addf %538, %537 : vector<8x128xf32>
    %540 = arith.divf %538, %539 : vector<8x128xf32>
    %541 = vector.extract_strided_slice %528 {offsets = [0, 256], sizes = [8, 128], strides = [1, 1]} : vector<8x512xf32> to vector<8x128xf32>
    %542 = math.tanh %541 : vector<8x128xf32>
    %543 = vector.extract_strided_slice %528 {offsets = [0, 384], sizes = [8, 128], strides = [1, 1]} : vector<8x512xf32> to vector<8x128xf32>
    %544 = arith.negf %543 : vector<8x128xf32>
    %545 = math.exp %544 : vector<8x128xf32>
    %cst_347 = arith.constant 1.000000e+00 : f32
    %546 = vector.broadcast %cst_347 : f32 to vector<8x128xf32>
    %547 = arith.addf %546, %545 : vector<8x128xf32>
    %548 = arith.divf %546, %547 : vector<8x128xf32>
    %549 = arith.mulf %540, %488 : vector<8x128xf32>
    %550 = arith.mulf %534, %542 : vector<8x128xf32>
    %551 = arith.addf %549, %550 : vector<8x128xf32>
    %552 = math.tanh %551 : vector<8x128xf32>
    %553 = arith.mulf %548, %552 : vector<8x128xf32>
    %c40_348 = arith.constant 40 : index
    %c0_349 = arith.constant 0 : index
    %554 = vector.load %arg15[%c40_348, %c0_349] : memref<64x512xf32, #tpu.memory_space<vmem>>, vector<8x512xf32>
    %555 = arith.truncf %520 : vector<8x128xf32> to vector<8x128xbf16>
    %c0_350 = arith.constant 0 : index
    %c0_351 = arith.constant 0 : index
    %556 = vector.load %arg3[%c0_350, %c0_351] : memref<128x512xbf16, #tpu.memory_space<vmem>>, vector<128x512xbf16>
    %cst_352 = arith.constant dense<0.000000e+00> : vector<8x512xf32>
    %557 = tpu.matmul %555, %556, %cst_352 {dimension_numbers = #tpu.dot_dimension_numbers<[1], [0], [0], [1], [0, 0, 1, 1], [], []>} : vector<8x128xbf16>, vector<128x512xbf16>, vector<8x512xf32> -> vector<8x512xf32>
    %558 = arith.addf %554, %557 : vector<8x512xf32>
    %559 = vector.extract_strided_slice %558 {offsets = [0, 0], sizes = [8, 128], strides = [1, 1]} : vector<8x512xf32> to vector<8x128xf32>
    %560 = arith.negf %559 : vector<8x128xf32>
    %561 = math.exp %560 : vector<8x128xf32>
    %cst_353 = arith.constant 1.000000e+00 : f32
    %562 = vector.broadcast %cst_353 : f32 to vector<8x128xf32>
    %563 = arith.addf %562, %561 : vector<8x128xf32>
    %564 = arith.divf %562, %563 : vector<8x128xf32>
    %565 = vector.extract_strided_slice %558 {offsets = [0, 128], sizes = [8, 128], strides = [1, 1]} : vector<8x512xf32> to vector<8x128xf32>
    %566 = arith.negf %565 : vector<8x128xf32>
    %567 = math.exp %566 : vector<8x128xf32>
    %cst_354 = arith.constant 1.000000e+00 : f32
    %568 = vector.broadcast %cst_354 : f32 to vector<8x128xf32>
    %569 = arith.addf %568, %567 : vector<8x128xf32>
    %570 = arith.divf %568, %569 : vector<8x128xf32>
    %571 = vector.extract_strided_slice %558 {offsets = [0, 256], sizes = [8, 128], strides = [1, 1]} : vector<8x512xf32> to vector<8x128xf32>
    %572 = math.tanh %571 : vector<8x128xf32>
    %573 = vector.extract_strided_slice %558 {offsets = [0, 384], sizes = [8, 128], strides = [1, 1]} : vector<8x512xf32> to vector<8x128xf32>
    %574 = arith.negf %573 : vector<8x128xf32>
    %575 = math.exp %574 : vector<8x128xf32>
    %cst_355 = arith.constant 1.000000e+00 : f32
    %576 = vector.broadcast %cst_355 : f32 to vector<8x128xf32>
    %577 = arith.addf %576, %575 : vector<8x128xf32>
    %578 = arith.divf %576, %577 : vector<8x128xf32>
    %579 = arith.mulf %570, %518 : vector<8x128xf32>
    %580 = arith.mulf %564, %572 : vector<8x128xf32>
    %581 = arith.addf %579, %580 : vector<8x128xf32>
    %582 = math.tanh %581 : vector<8x128xf32>
    %583 = arith.mulf %578, %582 : vector<8x128xf32>
    %584 = arith.truncf %520 : vector<8x128xf32> to vector<8x128xbf16>
    %585 = arith.truncf %553 : vector<8x128xf32> to vector<8x128xbf16>
    %586 = tpu.concatenate %584, %585 in 1 : vector<8x128xbf16>, vector<8x128xbf16> -> vector<8x256xbf16>
    %c0_356 = arith.constant 0 : index
    %c0_357 = arith.constant 0 : index
    %587 = vector.load %arg5[%c0_356, %c0_357] : memref<256x512xbf16, #tpu.memory_space<vmem>>, vector<256x512xbf16>
    %cst_358 = arith.constant dense<0.000000e+00> : vector<8x512xf32>
    %588 = tpu.matmul %586, %587, %cst_358 {dimension_numbers = #tpu.dot_dimension_numbers<[1], [0], [0], [1], [0, 0, 1, 1], [], []>} : vector<8x256xbf16>, vector<256x512xbf16>, vector<8x512xf32> -> vector<8x512xf32>
    %c0_359 = arith.constant 0 : index
    %c0_360 = arith.constant 0 : index
    %589 = vector.load %arg6[%c0_359, %c0_360] : memref<1x512xf32, #tpu.memory_space<vmem>>, vector<1x512xf32>
    %590 = vector.broadcast %589 : vector<1x512xf32> to vector<8x512xf32>
    %591 = arith.addf %588, %590 : vector<8x512xf32>
    %592 = vector.extract_strided_slice %591 {offsets = [0, 0], sizes = [8, 128], strides = [1, 1]} : vector<8x512xf32> to vector<8x128xf32>
    %593 = arith.negf %592 : vector<8x128xf32>
    %594 = math.exp %593 : vector<8x128xf32>
    %cst_361 = arith.constant 1.000000e+00 : f32
    %595 = vector.broadcast %cst_361 : f32 to vector<8x128xf32>
    %596 = arith.addf %595, %594 : vector<8x128xf32>
    %597 = arith.divf %595, %596 : vector<8x128xf32>
    %598 = vector.extract_strided_slice %591 {offsets = [0, 128], sizes = [8, 128], strides = [1, 1]} : vector<8x512xf32> to vector<8x128xf32>
    %599 = arith.negf %598 : vector<8x128xf32>
    %600 = math.exp %599 : vector<8x128xf32>
    %cst_362 = arith.constant 1.000000e+00 : f32
    %601 = vector.broadcast %cst_362 : f32 to vector<8x128xf32>
    %602 = arith.addf %601, %600 : vector<8x128xf32>
    %603 = arith.divf %601, %602 : vector<8x128xf32>
    %604 = vector.extract_strided_slice %591 {offsets = [0, 256], sizes = [8, 128], strides = [1, 1]} : vector<8x512xf32> to vector<8x128xf32>
    %605 = math.tanh %604 : vector<8x128xf32>
    %606 = vector.extract_strided_slice %591 {offsets = [0, 384], sizes = [8, 128], strides = [1, 1]} : vector<8x512xf32> to vector<8x128xf32>
    %607 = arith.negf %606 : vector<8x128xf32>
    %608 = math.exp %607 : vector<8x128xf32>
    %cst_363 = arith.constant 1.000000e+00 : f32
    %609 = vector.broadcast %cst_363 : f32 to vector<8x128xf32>
    %610 = arith.addf %609, %608 : vector<8x128xf32>
    %611 = arith.divf %609, %610 : vector<8x128xf32>
    %612 = arith.mulf %603, %551 : vector<8x128xf32>
    %613 = arith.mulf %597, %605 : vector<8x128xf32>
    %614 = arith.addf %612, %613 : vector<8x128xf32>
    %615 = math.tanh %614 : vector<8x128xf32>
    %616 = arith.mulf %611, %615 : vector<8x128xf32>
    %c48_364 = arith.constant 48 : index
    %c0_365 = arith.constant 0 : index
    %617 = vector.load %arg15[%c48_364, %c0_365] : memref<64x512xf32, #tpu.memory_space<vmem>>, vector<8x512xf32>
    %618 = arith.truncf %583 : vector<8x128xf32> to vector<8x128xbf16>
    %c0_366 = arith.constant 0 : index
    %c0_367 = arith.constant 0 : index
    %619 = vector.load %arg3[%c0_366, %c0_367] : memref<128x512xbf16, #tpu.memory_space<vmem>>, vector<128x512xbf16>
    %cst_368 = arith.constant dense<0.000000e+00> : vector<8x512xf32>
    %620 = tpu.matmul %618, %619, %cst_368 {dimension_numbers = #tpu.dot_dimension_numbers<[1], [0], [0], [1], [0, 0, 1, 1], [], []>} : vector<8x128xbf16>, vector<128x512xbf16>, vector<8x512xf32> -> vector<8x512xf32>
    %621 = arith.addf %617, %620 : vector<8x512xf32>
    %622 = vector.extract_strided_slice %621 {offsets = [0, 0], sizes = [8, 128], strides = [1, 1]} : vector<8x512xf32> to vector<8x128xf32>
    %623 = arith.negf %622 : vector<8x128xf32>
    %624 = math.exp %623 : vector<8x128xf32>
    %cst_369 = arith.constant 1.000000e+00 : f32
    %625 = vector.broadcast %cst_369 : f32 to vector<8x128xf32>
    %626 = arith.addf %625, %624 : vector<8x128xf32>
    %627 = arith.divf %625, %626 : vector<8x128xf32>
    %628 = vector.extract_strided_slice %621 {offsets = [0, 128], sizes = [8, 128], strides = [1, 1]} : vector<8x512xf32> to vector<8x128xf32>
    %629 = arith.negf %628 : vector<8x128xf32>
    %630 = math.exp %629 : vector<8x128xf32>
    %cst_370 = arith.constant 1.000000e+00 : f32
    %631 = vector.broadcast %cst_370 : f32 to vector<8x128xf32>
    %632 = arith.addf %631, %630 : vector<8x128xf32>
    %633 = arith.divf %631, %632 : vector<8x128xf32>
    %634 = vector.extract_strided_slice %621 {offsets = [0, 256], sizes = [8, 128], strides = [1, 1]} : vector<8x512xf32> to vector<8x128xf32>
    %635 = math.tanh %634 : vector<8x128xf32>
    %636 = vector.extract_strided_slice %621 {offsets = [0, 384], sizes = [8, 128], strides = [1, 1]} : vector<8x512xf32> to vector<8x128xf32>
    %637 = arith.negf %636 : vector<8x128xf32>
    %638 = math.exp %637 : vector<8x128xf32>
    %cst_371 = arith.constant 1.000000e+00 : f32
    %639 = vector.broadcast %cst_371 : f32 to vector<8x128xf32>
    %640 = arith.addf %639, %638 : vector<8x128xf32>
    %641 = arith.divf %639, %640 : vector<8x128xf32>
    %642 = arith.mulf %633, %581 : vector<8x128xf32>
    %643 = arith.mulf %627, %635 : vector<8x128xf32>
    %644 = arith.addf %642, %643 : vector<8x128xf32>
    %645 = math.tanh %644 : vector<8x128xf32>
    %646 = arith.mulf %641, %645 : vector<8x128xf32>
    %647 = arith.truncf %583 : vector<8x128xf32> to vector<8x128xbf16>
    %648 = arith.truncf %616 : vector<8x128xf32> to vector<8x128xbf16>
    %649 = tpu.concatenate %647, %648 in 1 : vector<8x128xbf16>, vector<8x128xbf16> -> vector<8x256xbf16>
    %c0_372 = arith.constant 0 : index
    %c0_373 = arith.constant 0 : index
    %650 = vector.load %arg5[%c0_372, %c0_373] : memref<256x512xbf16, #tpu.memory_space<vmem>>, vector<256x512xbf16>
    %cst_374 = arith.constant dense<0.000000e+00> : vector<8x512xf32>
    %651 = tpu.matmul %649, %650, %cst_374 {dimension_numbers = #tpu.dot_dimension_numbers<[1], [0], [0], [1], [0, 0, 1, 1], [], []>} : vector<8x256xbf16>, vector<256x512xbf16>, vector<8x512xf32> -> vector<8x512xf32>
    %c0_375 = arith.constant 0 : index
    %c0_376 = arith.constant 0 : index
    %652 = vector.load %arg6[%c0_375, %c0_376] : memref<1x512xf32, #tpu.memory_space<vmem>>, vector<1x512xf32>
    %653 = vector.broadcast %652 : vector<1x512xf32> to vector<8x512xf32>
    %654 = arith.addf %651, %653 : vector<8x512xf32>
    %655 = vector.extract_strided_slice %654 {offsets = [0, 0], sizes = [8, 128], strides = [1, 1]} : vector<8x512xf32> to vector<8x128xf32>
    %656 = arith.negf %655 : vector<8x128xf32>
    %657 = math.exp %656 : vector<8x128xf32>
    %cst_377 = arith.constant 1.000000e+00 : f32
    %658 = vector.broadcast %cst_377 : f32 to vector<8x128xf32>
    %659 = arith.addf %658, %657 : vector<8x128xf32>
    %660 = arith.divf %658, %659 : vector<8x128xf32>
    %661 = vector.extract_strided_slice %654 {offsets = [0, 128], sizes = [8, 128], strides = [1, 1]} : vector<8x512xf32> to vector<8x128xf32>
    %662 = arith.negf %661 : vector<8x128xf32>
    %663 = math.exp %662 : vector<8x128xf32>
    %cst_378 = arith.constant 1.000000e+00 : f32
    %664 = vector.broadcast %cst_378 : f32 to vector<8x128xf32>
    %665 = arith.addf %664, %663 : vector<8x128xf32>
    %666 = arith.divf %664, %665 : vector<8x128xf32>
    %667 = vector.extract_strided_slice %654 {offsets = [0, 256], sizes = [8, 128], strides = [1, 1]} : vector<8x512xf32> to vector<8x128xf32>
    %668 = math.tanh %667 : vector<8x128xf32>
    %669 = vector.extract_strided_slice %654 {offsets = [0, 384], sizes = [8, 128], strides = [1, 1]} : vector<8x512xf32> to vector<8x128xf32>
    %670 = arith.negf %669 : vector<8x128xf32>
    %671 = math.exp %670 : vector<8x128xf32>
    %cst_379 = arith.constant 1.000000e+00 : f32
    %672 = vector.broadcast %cst_379 : f32 to vector<8x128xf32>
    %673 = arith.addf %672, %671 : vector<8x128xf32>
    %674 = arith.divf %672, %673 : vector<8x128xf32>
    %675 = arith.mulf %666, %614 : vector<8x128xf32>
    %676 = arith.mulf %660, %668 : vector<8x128xf32>
    %677 = arith.addf %675, %676 : vector<8x128xf32>
    %678 = math.tanh %677 : vector<8x128xf32>
    %679 = arith.mulf %674, %678 : vector<8x128xf32>
    %c56_380 = arith.constant 56 : index
    %c0_381 = arith.constant 0 : index
    %680 = vector.load %arg15[%c56_380, %c0_381] : memref<64x512xf32, #tpu.memory_space<vmem>>, vector<8x512xf32>
    %681 = arith.truncf %646 : vector<8x128xf32> to vector<8x128xbf16>
    %c0_382 = arith.constant 0 : index
    %c0_383 = arith.constant 0 : index
    %682 = vector.load %arg3[%c0_382, %c0_383] : memref<128x512xbf16, #tpu.memory_space<vmem>>, vector<128x512xbf16>
    %cst_384 = arith.constant dense<0.000000e+00> : vector<8x512xf32>
    %683 = tpu.matmul %681, %682, %cst_384 {dimension_numbers = #tpu.dot_dimension_numbers<[1], [0], [0], [1], [0, 0, 1, 1], [], []>} : vector<8x128xbf16>, vector<128x512xbf16>, vector<8x512xf32> -> vector<8x512xf32>
    %684 = arith.addf %680, %683 : vector<8x512xf32>
    %685 = vector.extract_strided_slice %684 {offsets = [0, 0], sizes = [8, 128], strides = [1, 1]} : vector<8x512xf32> to vector<8x128xf32>
    %686 = arith.negf %685 : vector<8x128xf32>
    %687 = math.exp %686 : vector<8x128xf32>
    %cst_385 = arith.constant 1.000000e+00 : f32
    %688 = vector.broadcast %cst_385 : f32 to vector<8x128xf32>
    %689 = arith.addf %688, %687 : vector<8x128xf32>
    %690 = arith.divf %688, %689 : vector<8x128xf32>
    %691 = vector.extract_strided_slice %684 {offsets = [0, 128], sizes = [8, 128], strides = [1, 1]} : vector<8x512xf32> to vector<8x128xf32>
    %692 = arith.negf %691 : vector<8x128xf32>
    %693 = math.exp %692 : vector<8x128xf32>
    %cst_386 = arith.constant 1.000000e+00 : f32
    %694 = vector.broadcast %cst_386 : f32 to vector<8x128xf32>
    %695 = arith.addf %694, %693 : vector<8x128xf32>
    %696 = arith.divf %694, %695 : vector<8x128xf32>
    %697 = vector.extract_strided_slice %684 {offsets = [0, 256], sizes = [8, 128], strides = [1, 1]} : vector<8x512xf32> to vector<8x128xf32>
    %698 = math.tanh %697 : vector<8x128xf32>
    %699 = vector.extract_strided_slice %684 {offsets = [0, 384], sizes = [8, 128], strides = [1, 1]} : vector<8x512xf32> to vector<8x128xf32>
    %700 = arith.negf %699 : vector<8x128xf32>
    %701 = math.exp %700 : vector<8x128xf32>
    %cst_387 = arith.constant 1.000000e+00 : f32
    %702 = vector.broadcast %cst_387 : f32 to vector<8x128xf32>
    %703 = arith.addf %702, %701 : vector<8x128xf32>
    %704 = arith.divf %702, %703 : vector<8x128xf32>
    %705 = arith.mulf %696, %644 : vector<8x128xf32>
    %706 = arith.mulf %690, %698 : vector<8x128xf32>
    %707 = arith.addf %705, %706 : vector<8x128xf32>
    %708 = math.tanh %707 : vector<8x128xf32>
    %709 = arith.mulf %704, %708 : vector<8x128xf32>
    %710 = arith.truncf %646 : vector<8x128xf32> to vector<8x128xbf16>
    %711 = arith.truncf %679 : vector<8x128xf32> to vector<8x128xbf16>
    %712 = tpu.concatenate %710, %711 in 1 : vector<8x128xbf16>, vector<8x128xbf16> -> vector<8x256xbf16>
    %c0_388 = arith.constant 0 : index
    %c0_389 = arith.constant 0 : index
    %713 = vector.load %arg5[%c0_388, %c0_389] : memref<256x512xbf16, #tpu.memory_space<vmem>>, vector<256x512xbf16>
    %cst_390 = arith.constant dense<0.000000e+00> : vector<8x512xf32>
    %714 = tpu.matmul %712, %713, %cst_390 {dimension_numbers = #tpu.dot_dimension_numbers<[1], [0], [0], [1], [0, 0, 1, 1], [], []>} : vector<8x256xbf16>, vector<256x512xbf16>, vector<8x512xf32> -> vector<8x512xf32>
    %c0_391 = arith.constant 0 : index
    %c0_392 = arith.constant 0 : index
    %715 = vector.load %arg6[%c0_391, %c0_392] : memref<1x512xf32, #tpu.memory_space<vmem>>, vector<1x512xf32>
    %716 = vector.broadcast %715 : vector<1x512xf32> to vector<8x512xf32>
    %717 = arith.addf %714, %716 : vector<8x512xf32>
    %718 = vector.extract_strided_slice %717 {offsets = [0, 0], sizes = [8, 128], strides = [1, 1]} : vector<8x512xf32> to vector<8x128xf32>
    %719 = arith.negf %718 : vector<8x128xf32>
    %720 = math.exp %719 : vector<8x128xf32>
    %cst_393 = arith.constant 1.000000e+00 : f32
    %721 = vector.broadcast %cst_393 : f32 to vector<8x128xf32>
    %722 = arith.addf %721, %720 : vector<8x128xf32>
    %723 = arith.divf %721, %722 : vector<8x128xf32>
    %724 = vector.extract_strided_slice %717 {offsets = [0, 128], sizes = [8, 128], strides = [1, 1]} : vector<8x512xf32> to vector<8x128xf32>
    %725 = arith.negf %724 : vector<8x128xf32>
    %726 = math.exp %725 : vector<8x128xf32>
    %cst_394 = arith.constant 1.000000e+00 : f32
    %727 = vector.broadcast %cst_394 : f32 to vector<8x128xf32>
    %728 = arith.addf %727, %726 : vector<8x128xf32>
    %729 = arith.divf %727, %728 : vector<8x128xf32>
    %730 = vector.extract_strided_slice %717 {offsets = [0, 256], sizes = [8, 128], strides = [1, 1]} : vector<8x512xf32> to vector<8x128xf32>
    %731 = math.tanh %730 : vector<8x128xf32>
    %732 = vector.extract_strided_slice %717 {offsets = [0, 384], sizes = [8, 128], strides = [1, 1]} : vector<8x512xf32> to vector<8x128xf32>
    %733 = arith.negf %732 : vector<8x128xf32>
    %734 = math.exp %733 : vector<8x128xf32>
    %cst_395 = arith.constant 1.000000e+00 : f32
    %735 = vector.broadcast %cst_395 : f32 to vector<8x128xf32>
    %736 = arith.addf %735, %734 : vector<8x128xf32>
    %737 = arith.divf %735, %736 : vector<8x128xf32>
    %738 = arith.mulf %729, %677 : vector<8x128xf32>
    %739 = arith.mulf %723, %731 : vector<8x128xf32>
    %740 = arith.addf %738, %739 : vector<8x128xf32>
    %741 = math.tanh %740 : vector<8x128xf32>
    %742 = arith.mulf %737, %741 : vector<8x128xf32>
    %743 = arith.truncf %709 : vector<8x128xf32> to vector<8x128xbf16>
    %744 = arith.truncf %742 : vector<8x128xf32> to vector<8x128xbf16>
    %745 = tpu.concatenate %743, %744 in 1 : vector<8x128xbf16>, vector<8x128xbf16> -> vector<8x256xbf16>
    %c0_396 = arith.constant 0 : index
    %c0_397 = arith.constant 0 : index
    %746 = vector.load %arg5[%c0_396, %c0_397] : memref<256x512xbf16, #tpu.memory_space<vmem>>, vector<256x512xbf16>
    %cst_398 = arith.constant dense<0.000000e+00> : vector<8x512xf32>
    %747 = tpu.matmul %745, %746, %cst_398 {dimension_numbers = #tpu.dot_dimension_numbers<[1], [0], [0], [1], [0, 0, 1, 1], [], []>} : vector<8x256xbf16>, vector<256x512xbf16>, vector<8x512xf32> -> vector<8x512xf32>
    %c0_399 = arith.constant 0 : index
    %c0_400 = arith.constant 0 : index
    %748 = vector.load %arg6[%c0_399, %c0_400] : memref<1x512xf32, #tpu.memory_space<vmem>>, vector<1x512xf32>
    %749 = vector.broadcast %748 : vector<1x512xf32> to vector<8x512xf32>
    %750 = arith.addf %747, %749 : vector<8x512xf32>
    %751 = vector.extract_strided_slice %750 {offsets = [0, 0], sizes = [8, 128], strides = [1, 1]} : vector<8x512xf32> to vector<8x128xf32>
    %752 = arith.negf %751 : vector<8x128xf32>
    %753 = math.exp %752 : vector<8x128xf32>
    %cst_401 = arith.constant 1.000000e+00 : f32
    %754 = vector.broadcast %cst_401 : f32 to vector<8x128xf32>
    %755 = arith.addf %754, %753 : vector<8x128xf32>
    %756 = arith.divf %754, %755 : vector<8x128xf32>
    %757 = vector.extract_strided_slice %750 {offsets = [0, 128], sizes = [8, 128], strides = [1, 1]} : vector<8x512xf32> to vector<8x128xf32>
    %758 = arith.negf %757 : vector<8x128xf32>
    %759 = math.exp %758 : vector<8x128xf32>
    %cst_402 = arith.constant 1.000000e+00 : f32
    %760 = vector.broadcast %cst_402 : f32 to vector<8x128xf32>
    %761 = arith.addf %760, %759 : vector<8x128xf32>
    %762 = arith.divf %760, %761 : vector<8x128xf32>
    %763 = vector.extract_strided_slice %750 {offsets = [0, 256], sizes = [8, 128], strides = [1, 1]} : vector<8x512xf32> to vector<8x128xf32>
    %764 = math.tanh %763 : vector<8x128xf32>
    %765 = vector.extract_strided_slice %750 {offsets = [0, 384], sizes = [8, 128], strides = [1, 1]} : vector<8x512xf32> to vector<8x128xf32>
    %766 = arith.negf %765 : vector<8x128xf32>
    %767 = math.exp %766 : vector<8x128xf32>
    %cst_403 = arith.constant 1.000000e+00 : f32
    %768 = vector.broadcast %cst_403 : f32 to vector<8x128xf32>
    %769 = arith.addf %768, %767 : vector<8x128xf32>
    %770 = arith.divf %768, %769 : vector<8x128xf32>
    %771 = arith.mulf %762, %740 : vector<8x128xf32>
    %772 = arith.mulf %756, %764 : vector<8x128xf32>
    %773 = arith.addf %771, %772 : vector<8x128xf32>
    %774 = math.tanh %773 : vector<8x128xf32>
    %775 = arith.mulf %770, %774 : vector<8x128xf32>
    %c0_404 = arith.constant 0 : index
    %c0_405 = arith.constant 0 : index
    %c0_406 = arith.constant 0 : index
    %776 = vector.load %arg12[%c0_404, %c0_405, %c0_406] : memref<2x8x128xf32, #tpu.memory_space<vmem>>, vector<1x8x128xf32>
    %777 = vector.shape_cast %776 : vector<1x8x128xf32> to vector<8x128xf32>
    %778 = vector.shape_cast %709 : vector<8x128xf32> to vector<1x8x128xf32>
    tpu.vector_store %arg12[%c0_404, %c0_405, %c0_406], %778 {strides = array<i32>} : memref<2x8x128xf32, #tpu.memory_space<vmem>>, vector<1x8x128xf32>,
    %c0_407 = arith.constant 0 : index
    %c0_408 = arith.constant 0 : index
    %c0_409 = arith.constant 0 : index
    %779 = vector.load %arg13[%c0_407, %c0_408, %c0_409] : memref<2x8x128xf32, #tpu.memory_space<vmem>>, vector<1x8x128xf32>
    %780 = vector.shape_cast %779 : vector<1x8x128xf32> to vector<8x128xf32>
    %781 = vector.shape_cast %707 : vector<8x128xf32> to vector<1x8x128xf32>
    tpu.vector_store %arg13[%c0_407, %c0_408, %c0_409], %781 {strides = array<i32>} : memref<2x8x128xf32, #tpu.memory_space<vmem>>, vector<1x8x128xf32>,
    %c1_410 = arith.constant 1 : index
    %c0_411 = arith.constant 0 : index
    %c0_412 = arith.constant 0 : index
    %782 = vector.load %arg12[%c1_410, %c0_411, %c0_412] : memref<2x8x128xf32, #tpu.memory_space<vmem>>, vector<1x8x128xf32>
    %783 = vector.shape_cast %782 : vector<1x8x128xf32> to vector<8x128xf32>
    %784 = vector.shape_cast %775 : vector<8x128xf32> to vector<1x8x128xf32>
    tpu.vector_store %arg12[%c1_410, %c0_411, %c0_412], %784 {strides = array<i32>} : memref<2x8x128xf32, #tpu.memory_space<vmem>>, vector<1x8x128xf32>,
    %c1_413 = arith.constant 1 : index
    %c0_414 = arith.constant 0 : index
    %c0_415 = arith.constant 0 : index
    %785 = vector.load %arg13[%c1_413, %c0_414, %c0_415] : memref<2x8x128xf32, #tpu.memory_space<vmem>>, vector<1x8x128xf32>
    %786 = vector.shape_cast %785 : vector<1x8x128xf32> to vector<8x128xf32>
    %787 = vector.shape_cast %773 : vector<8x128xf32> to vector<1x8x128xf32>
    tpu.vector_store %arg13[%c1_413, %c0_414, %c0_415], %787 {strides = array<i32>} : memref<2x8x128xf32, #tpu.memory_space<vmem>>, vector<1x8x128xf32>,
    %c0_416 = arith.constant 0 : index
    %c0_417 = arith.constant 0 : index
    %788 = vector.load %arg7[%c0_416, %c0_417] : memref<1x128xf32, #tpu.memory_space<vmem>>, vector<1x128xf32>
    %789 = vector.broadcast %788 : vector<1x128xf32> to vector<8x128xf32>
    %790 = arith.mulf %775, %789 : vector<8x128xf32>
    %cst_418 = arith.constant dense<0.000000e+00> : vector<8xf32>
    %791 = vector.multi_reduction <add>, %790, %cst_418 [1] : vector<8x128xf32> to vector<8xf32>
    %792 = vector.shape_cast %791 : vector<8xf32> to vector<8x1xf32>
    %c0_419 = arith.constant 0 : index
    %c0_420 = arith.constant 0 : index
    %793 = memref.load %arg8[%c0_419, %c0_420] : memref<1x1xf32, #tpu.memory_space<smem>>
    %794 = vector.broadcast %793 : f32 to vector<8x1xf32>
    %795 = arith.addf %792, %794 : vector<8x1xf32>
    %796 = arith.negf %795 : vector<8x1xf32>
    %797 = math.exp %796 : vector<8x1xf32>
    %cst_421 = arith.constant 1.000000e+00 : f32
    %798 = vector.broadcast %cst_421 : f32 to vector<8x1xf32>
    %799 = arith.addf %798, %797 : vector<8x1xf32>
    %800 = arith.divf %798, %799 : vector<8x1xf32>
    %c0_422 = arith.constant 0 : index
    %c0_423 = arith.constant 0 : index
    %801 = vector.load %arg11[%c0_422, %c0_423] : memref<8x1xf32, #tpu.memory_space<vmem>>, vector<8x1xf32>
    tpu.vector_store %arg11[%c0_422, %c0_423], %800 {strides = array<i32>} : memref<8x1xf32, #tpu.memory_space<vmem>>, vector<8x1xf32>,
    return
  }
}

</mosaic_0001>

<llo_original>
// kernel: sentiment_rnn_forward.1
$region0: #{sentiment_rnn_forward.1}
  #allocation0 [shape = 'u32[]', space=smem, size = 0x4, offset = 0x4, fixed_abs, tag = 'smem constant byte address 0x4 - core index']
  #allocation1 [shape = 'u32[144,128]{1,0:T(1,128)}', space=vmem, size = 0x12000, scoped, tag = 'internal scratch']
  #allocation2 [shape = 'f32[64,64]{1,0:T(8,128)}', space=vmem, size = 0x8000, scoped, tag = 'scratch operand']
  #allocation3 [shape = 'f32[64,512]{1,0:T(8,128)}', space=vmem, size = 0x20000, scoped, tag = 'scratch operand']
  #allocation4 [shape = 'f32[1,1]{1,0:T(1,128)S(6)}', space=smem, size = 0x200, scoped, tag = 'scoped memory for sentiment_rnn_forward.1']
  %s0 = inlined_call_operand.vmem [shape: s32[8,8], index: 0, kind: input, shape index: {}]
  %s1 = inlined_call_operand.vmem [shape: f32[100,64], index: 1, kind: input, shape index: {}]
  %s2 = inlined_call_operand.vmem [shape: bf16[64,512], index: 2, kind: input, shape index: {}]
  %s3 = inlined_call_operand.hbm [shape: bf16[128,512], index: 3, kind: input, shape index: {}]
  %s4 = inlined_call_operand.vmem [shape: f32[1,512], index: 4, kind: input, shape index: {}]
  %s5 = inlined_call_operand.hbm [shape: bf16[256,512], index: 5, kind: input, shape index: {}]
  %s6 = inlined_call_operand.vmem [shape: f32[1,512], index: 6, kind: input, shape index: {}]
  %s7 = inlined_call_operand.vmem [shape: f32[1,128], index: 7, kind: input, shape index: {}]
  %s8 = inlined_call_operand.<no memory space> [shape: f32[1,1], index: 8, kind: input, shape index: {}]
  %s9 = inlined_call_operand.vmem [shape: f32[2,8,128], index: 9, kind: input, shape index: {}]
  %s10 = inlined_call_operand.vmem [shape: f32[2,8,128], index: 10, kind: input, shape index: {}]
  %s11 = inlined_call_operand.vmem [shape: f32[8,1], index: 11, kind: output, shape index: {0}]
  %s12 = inlined_call_operand.hbm [shape: f32[2,8,128], index: 12, kind: output, shape index: {1}]
  %s13 = inlined_call_operand.hbm [shape: f32[2,8,128], index: 13, kind: output, shape index: {2}]
  %14 = xla_tuple %s11, %s12, %s13
  %s15 = sld [smem:[#allocation0]]
  $region82: #{sentiment_rnn_forward.1} parent=0
    _
  %s17 = ssub.s32 1, %s15
  %s18 = scalar_select 0, %s17, %s15
  %19 = sst [smem:[#allocation4]] %s8
  $region1: #{sentiment_rnn_forward.1} parent=0
    #allocation5 [shape = 'u8[4096]{0}', space=smem, size = 0x1000, scoped, tag = 'input window, operand 0, single buffered']
    #allocation6 [shape = 's32[1]{0}', space=sflag, size = 0x4, scoped, tag = 'scoped memory for sentiment_rnn_forward.1']
    #allocation7 [shape = 's32[1]{0}', space=sflag, size = 0x4, scoped, tag = 'scoped memory for sentiment_rnn_forward.1']
    #allocation8 [shape = 's32[1]{0}', space=sflag, size = 0x4, scoped, tag = 'scoped memory for sentiment_rnn_forward.1']
    #allocation9 [shape = 'u8[131072]{0}', space=vmem, size = 0x20000, scoped, tag = 'input window, operand 3, single buffered']
    #allocation10 [shape = 'u8[262144]{0}', space=vmem, size = 0x40000, scoped, tag = 'input window, operand 5, single buffered']
    #allocation11 [shape = 's32[1]{0}', space=sflag, size = 0x4, scoped, tag = 'scoped memory for sentiment_rnn_forward.1']
    #allocation12 [shape = 'u8[8192]{0}', space=vmem, size = 0x2000, scoped, tag = 'output window, operand 1, single buffered']
    #allocation13 [shape = 'u8[8192]{0}', space=vmem, size = 0x2000, scoped, tag = 'output window, operand 2, single buffered']
    #allocation14 [shape = 's32[1]{0}', space=sflag, size = 0x4, scoped, tag = 'scoped memory for sentiment_rnn_forward.1']
    %20 = vsyncpa [#allocation8], 0
    %21 = vsyncpa [#allocation6], 0
    %22 = vsyncpa [#allocation11], 0
    %23 = vsyncpa [#allocation7], 0
    %24 = vsyncpa [#allocation14], 0
    // Predicated region
    $region2: #{sentiment_rnn_forward.1} parent=1 // pred_check
      _
    $region3: #{sentiment_rnn_forward.1} parent=1 // pred_check_branch
      %26 = sbr.rel (0) target = $region5
    $region4: #{sentiment_rnn_forward.1} parent=1 // pred_region
      %s28 = ssub.s32 128, 128
      %29 = vsyncadd [#allocation8], %s28
      %s31 = sshll.u32 %s0, 4
      %s32 = int_to_ptr.vmem [resolvable:$true] %s31
      %34 = dma.vmem_to_smem %s32, 128, [#allocation5], [#allocation8]
    $region5: #{sentiment_rnn_forward.1} parent=1 // pred_fallthru
      _
    // Predicated region
    $region6: #{sentiment_rnn_forward.1} parent=1 // pred_check
      _
    $region7: #{sentiment_rnn_forward.1} parent=1 // pred_check_branch
      %36 = sbr.rel (0) target = $region9
    $region8: #{sentiment_rnn_forward.1} parent=1 // pred_region
      _
    $region9: #{sentiment_rnn_forward.1} parent=1 // pred_fallthru
      _
    // Predicated region
    $region10: #{sentiment_rnn_forward.1} parent=1 // pred_check
      _
    $region11: #{sentiment_rnn_forward.1} parent=1 // pred_check_branch
      %38 = sbr.rel (0) target = $region13
    $region12: #{sentiment_rnn_forward.1} parent=1 // pred_region
      _
    $region13: #{sentiment_rnn_forward.1} parent=1 // pred_fallthru
      _
    // Predicated region
    $region14: #{sentiment_rnn_forward.1} parent=1 // pred_check
      _
    $region15: #{sentiment_rnn_forward.1} parent=1 // pred_check_branch
      %40 = sbr.rel (0) target = $region17
    $region16: #{sentiment_rnn_forward.1} parent=1 // pred_region
      %s42 = ssub.s32 4096, 4096
      %43 = vsyncadd [#allocation6], %s42
      %s44 = sshll.u32 [#allocation9], 4
      %s45 = int_to_ptr.vmem [resolvable:$true] %s44
      %50 = dma.hbm_to_vmem [thread:$0]  %s3, 4096, %s45, [#allocation6], 256, 256, 16
    $region17: #{sentiment_rnn_forward.1} parent=1 // pred_fallthru
      _
    // Predicated region
    $region18: #{sentiment_rnn_forward.1} parent=1 // pred_check
      _
    $region19: #{sentiment_rnn_forward.1} parent=1 // pred_check_branch
      %52 = sbr.rel (0) target = $region21
    $region20: #{sentiment_rnn_forward.1} parent=1 // pred_region
      _
    $region21: #{sentiment_rnn_forward.1} parent=1 // pred_fallthru
      _
    // Predicated region
    $region22: #{sentiment_rnn_forward.1} parent=1 // pred_check
      _
    $region23: #{sentiment_rnn_forward.1} parent=1 // pred_check_branch
      %54 = sbr.rel (0) target = $region25
    $region24: #{sentiment_rnn_forward.1} parent=1 // pred_region
      %s56 = ssub.s32 8192, 8192
      %57 = vsyncadd [#allocation11], %s56
      %s58 = sshll.u32 [#allocation10], 4
      %s59 = int_to_ptr.vmem [resolvable:$true] %s58
      %64 = dma.hbm_to_vmem [thread:$0]  %s5, 8192, %s59, [#allocation11], 256, 256, 16
    $region25: #{sentiment_rnn_forward.1} parent=1 // pred_fallthru
      _
    // Predicated region
    $region26: #{sentiment_rnn_forward.1} parent=1 // pred_check
      _
    $region27: #{sentiment_rnn_forward.1} parent=1 // pred_check_branch
      %66 = sbr.rel (0) target = $region29
    $region28: #{sentiment_rnn_forward.1} parent=1 // pred_region
      _
    $region29: #{sentiment_rnn_forward.1} parent=1 // pred_fallthru
      _
    // Predicated region
    $region30: #{sentiment_rnn_forward.1} parent=1 // pred_check
      _
    $region31: #{sentiment_rnn_forward.1} parent=1 // pred_check_branch
      %68 = sbr.rel (0) target = $region33
    $region32: #{sentiment_rnn_forward.1} parent=1 // pred_region
      _
    $region33: #{sentiment_rnn_forward.1} parent=1 // pred_fallthru
      _
    // Predicated region
    $region34: #{sentiment_rnn_forward.1} parent=1 // pred_check
      _
    $region35: #{sentiment_rnn_forward.1} parent=1 // pred_check_branch
      %70 = sbr.rel (0) target = $region37
    $region36: #{sentiment_rnn_forward.1} parent=1 // pred_region
      _
    $region37: #{sentiment_rnn_forward.1} parent=1 // pred_fallthru
      _
    // Predicated region
    $region38: #{sentiment_rnn_forward.1} parent=1 // pred_check
      _
    $region39: #{sentiment_rnn_forward.1} parent=1 // pred_check_branch
      %72 = sbr.rel (0) target = $region41
    $region40: #{sentiment_rnn_forward.1} parent=1 // pred_region
      _
    $region41: #{sentiment_rnn_forward.1} parent=1 // pred_fallthru
      _
    // Predicated region
    $region42: #{sentiment_rnn_forward.1} parent=1 // pred_check
      _
    $region43: #{sentiment_rnn_forward.1} parent=1 // pred_check_branch
      %74 = sbr.rel (0) target = $region45
    $region44: #{sentiment_rnn_forward.1} parent=1 // pred_region
      _
    $region45: #{sentiment_rnn_forward.1} parent=1 // pred_fallthru
      _
    // Predicated region
    $region46: #{sentiment_rnn_forward.1} parent=1 // pred_check
      _
    $region47: #{sentiment_rnn_forward.1} parent=1 // pred_check_branch
      %76 = sbr.rel (0) target = $region49
    $region48: #{sentiment_rnn_forward.1} parent=1 // pred_region
      %77 = dma.done [#allocation8], 128
    $region49: #{sentiment_rnn_forward.1} parent=1 // pred_fallthru
      _
    // Predicated region
    $region50: #{sentiment_rnn_forward.1} parent=1 // pred_check
      _
    $region51: #{sentiment_rnn_forward.1} parent=1 // pred_check_branch
      %79 = sbr.rel (0) target = $region53
    $region52: #{sentiment_rnn_forward.1} parent=1 // pred_region
      %80 = dma.done [#allocation6], 4096
    $region53: #{sentiment_rnn_forward.1} parent=1 // pred_fallthru
      _
    // Predicated region
    $region54: #{sentiment_rnn_forward.1} parent=1 // pred_check
      _
    $region55: #{sentiment_rnn_forward.1} parent=1 // pred_check_branch
      %82 = sbr.rel (0) target = $region57
    $region56: #{sentiment_rnn_forward.1} parent=1 // pred_region
      %83 = dma.done [#allocation11], 8192
    $region57: #{sentiment_rnn_forward.1} parent=1 // pred_fallthru
      _
    %84 = sfence
    %s86 = sld [smem:[#allocation5]]
    %s87 = scalar_lea.vmem %s1, %s86
    %v88 = vld [vmem:[%s87] sm:$0x1]
    %vm89 = vcmask 516096
    %90 = vst.msk [vmem:[#allocation2] sm:$0x1] %vm89, %v88
    %s91 = sld [smem:[#allocation5 + $0x80]]
    %s92 = scalar_lea.vmem %s1, %s91
    %v93 = vld [vmem:[%s92] sm:$0x1]
    %94 = vst.msk [vmem:[#allocation2 + $0x1] sm:$0x1] %vm89, %v93
    %s95 = sld [smem:[#allocation5 + $0x100]]
    %s96 = scalar_lea.vmem %s1, %s95
    %v97 = vld [vmem:[%s96] sm:$0x1]
    %98 = vst.msk [vmem:[#allocation2 + $0x2] sm:$0x1] %vm89, %v97
    %s99 = sld [smem:[#allocation5 + $0x180]]
    %s100 = scalar_lea.vmem %s1, %s99
    %v101 = vld [vmem:[%s100] sm:$0x1]
    %102 = vst.msk [vmem:[#allocation2 + $0x3] sm:$0x1] %vm89, %v101
    %s103 = sld [smem:[#allocation5 + $0x200]]
    %s104 = scalar_lea.vmem %s1, %s103
    %v105 = vld [vmem:[%s104] sm:$0x1]
    %106 = vst.msk [vmem:[#allocation2 + $0x4] sm:$0x1] %vm89, %v105
    %s107 = sld [smem:[#allocation5 + $0x280]]
    %s108 = scalar_lea.vmem %s1, %s107
    %v109 = vld [vmem:[%s108] sm:$0x1]
    %110 = vst.msk [vmem:[#allocation2 + $0x5] sm:$0x1] %vm89, %v109
    %s111 = sld [smem:[#allocation5 + $0x300]]
    %s112 = scalar_lea.vmem %s1, %s111
    %v113 = vld [vmem:[%s112] sm:$0x1]
    %114 = vst.msk [vmem:[#allocation2 + $0x6] sm:$0x1] %vm89, %v113
    %s115 = sld [smem:[#allocation5 + $0x380]]
    %s116 = scalar_lea.vmem %s1, %s115
    %v117 = vld [vmem:[%s116] sm:$0x1]
    %118 = vst.msk [vmem:[#allocation2 + $0x7] sm:$0x1] %vm89, %v117
    %s119 = sld [smem:[#allocation5 + $0x1]]
    %s120 = scalar_lea.vmem %s1, %s119
    %v121 = vld [vmem:[%s120] sm:$0x1]
    %122 = vst.msk [vmem:[#allocation2 + $0x8] sm:$0x1] %vm89, %v121
    %s123 = sld [smem:[#allocation5 + $0x81]]
    %s124 = scalar_lea.vmem %s1, %s123
    %v125 = vld [vmem:[%s124] sm:$0x1]
    %126 = vst.msk [vmem:[#allocation2 + $0x9] sm:$0x1] %vm89, %v125
    %s127 = sld [smem:[#allocation5 + $0x101]]
    %s128 = scalar_lea.vmem %s1, %s127
    %v129 = vld [vmem:[%s128] sm:$0x1]
    %130 = vst.msk [vmem:[#allocation2 + $0xa] sm:$0x1] %vm89, %v129
    %s131 = sld [smem:[#allocation5 + $0x181]]
    %s132 = scalar_lea.vmem %s1, %s131
    %v133 = vld [vmem:[%s132] sm:$0x1]
    %134 = vst.msk [vmem:[#allocation2 + $0xb] sm:$0x1] %vm89, %v133
    %s135 = sld [smem:[#allocation5 + $0x201]]
    %s136 = scalar_lea.vmem %s1, %s135
    %v137 = vld [vmem:[%s136] sm:$0x1]
    %138 = vst.msk [vmem:[#allocation2 + $0xc] sm:$0x1] %vm89, %v137
    %s139 = sld [smem:[#allocation5 + $0x281]]
    %s140 = scalar_lea.vmem %s1, %s139
    %v141 = vld [vmem:[%s140] sm:$0x1]
    %142 = vst.msk [vmem:[#allocation2 + $0xd] sm:$0x1] %vm89, %v141
    %s143 = sld [smem:[#allocation5 + $0x301]]
    %s144 = scalar_lea.vmem %s1, %s143
    %v145 = vld [vmem:[%s144] sm:$0x1]
    %146 = vst.msk [vmem:[#allocation2 + $0xe] sm:$0x1] %vm89, %v145
    %s147 = sld [smem:[#allocation5 + $0x381]]
    %s148 = scalar_lea.vmem %s1, %s147
    %v149 = vld [vmem:[%s148] sm:$0x1]
    %150 = vst.msk [vmem:[#allocation2 + $0xf] sm:$0x1] %vm89, %v149
    %s151 = sld [smem:[#allocation5 + $0x2]]
    %s152 = scalar_lea.vmem %s1, %s151
    %v153 = vld [vmem:[%s152] sm:$0x1]
    %154 = vst.msk [vmem:[#allocation2 + $0x10] sm:$0x1] %vm89, %v153
    %s155 = sld [smem:[#allocation5 + $0x82]]
    %s156 = scalar_lea.vmem %s1, %s155
    %v157 = vld [vmem:[%s156] sm:$0x1]
    %158 = vst.msk [vmem:[#allocation2 + $0x11] sm:$0x1] %vm89, %v157
    %s159 = sld [smem:[#allocation5 + $0x102]]
    %s160 = scalar_lea.vmem %s1, %s159
    %v161 = vld [vmem:[%s160] sm:$0x1]
    %162 = vst.msk [vmem:[#allocation2 + $0x12] sm:$0x1] %vm89, %v161
    %s163 = sld [smem:[#allocation5 + $0x182]]
    %s164 = scalar_lea.vmem %s1, %s163
    %v165 = vld [vmem:[%s164] sm:$0x1]
    %166 = vst.msk [vmem:[#allocation2 + $0x13] sm:$0x1] %vm89, %v165
    %s167 = sld [smem:[#allocation5 + $0x202]]
    %s168 = scalar_lea.vmem %s1, %s167
    %v169 = vld [vmem:[%s168] sm:$0x1]
    %170 = vst.msk [vmem:[#allocation2 + $0x14] sm:$0x1] %vm89, %v169
    %s171 = sld [smem:[#allocation5 + $0x282]]
    %s172 = scalar_lea.vmem %s1, %s171
    %v173 = vld [vmem:[%s172] sm:$0x1]
    %174 = vst.msk [vmem:[#allocation2 + $0x15] sm:$0x1] %vm89, %v173
    %s175 = sld [smem:[#allocation5 + $0x302]]
    %s176 = scalar_lea.vmem %s1, %s175
    %v177 = vld [vmem:[%s176] sm:$0x1]
    %178 = vst.msk [vmem:[#allocation2 + $0x16] sm:$0x1] %vm89, %v177
    %s179 = sld [smem:[#allocation5 + $0x382]]
    %s180 = scalar_lea.vmem %s1, %s179
    %v181 = vld [vmem:[%s180] sm:$0x1]
    %182 = vst.msk [vmem:[#allocation2 + $0x17] sm:$0x1] %vm89, %v181
    %s183 = sld [smem:[#allocation5 + $0x3]]
    %s184 = scalar_lea.vmem %s1, %s183
    %v185 = vld [vmem:[%s184] sm:$0x1]
    %186 = vst.msk [vmem:[#allocation2 + $0x18] sm:$0x1] %vm89, %v185
    %s187 = sld [smem:[#allocation5 + $0x83]]
    %s188 = scalar_lea.vmem %s1, %s187
    %v189 = vld [vmem:[%s188] sm:$0x1]
    %190 = vst.msk [vmem:[#allocation2 + $0x19] sm:$0x1] %vm89, %v189
    %s191 = sld [smem:[#allocation5 + $0x103]]
    %s192 = scalar_lea.vmem %s1, %s191
    %v193 = vld [vmem:[%s192] sm:$0x1]
    %194 = vst.msk [vmem:[#allocation2 + $0x1a] sm:$0x1] %vm89, %v193
    %s195 = sld [smem:[#allocation5 + $0x183]]
    %s196 = scalar_lea.vmem %s1, %s195
    %v197 = vld [vmem:[%s196] sm:$0x1]
    %198 = vst.msk [vmem:[#allocation2 + $0x1b] sm:$0x1] %vm89, %v197
    %s199 = sld [smem:[#allocation5 + $0x203]]
    %s200 = scalar_lea.vmem %s1, %s199
    %v201 = vld [vmem:[%s200] sm:$0x1]
    %202 = vst.msk [vmem:[#allocation2 + $0x1c] sm:$0x1] %vm89, %v201
    %s203 = sld [smem:[#allocation5 + $0x283]]
    %s204 = scalar_lea.vmem %s1, %s203
    %v205 = vld [vmem:[%s204] sm:$0x1]
    %206 = vst.msk [vmem:[#allocation2 + $0x1d] sm:$0x1] %vm89, %v205
    %s207 = sld [smem:[#allocation5 + $0x303]]
    %s208 = scalar_lea.vmem %s1, %s207
    %v209 = vld [vmem:[%s208] sm:$0x1]
    %210 = vst.msk [vmem:[#allocation2 + $0x1e] sm:$0x1] %vm89, %v209
    %s211 = sld [smem:[#allocation5 + $0x383]]
    %s212 = scalar_lea.vmem %s1, %s211
    %v213 = vld [vmem:[%s212] sm:$0x1]
    %214 = vst.msk [vmem:[#allocation2 + $0x1f] sm:$0x1] %vm89, %v213
    %s215 = sld [smem:[#allocation5 + $0x4]]
    %s216 = scalar_lea.vmem %s1, %s215
    %v217 = vld [vmem:[%s216] sm:$0x1]
    %218 = vst.msk [vmem:[#allocation2 + $0x20] sm:$0x1] %vm89, %v217
    %s219 = sld [smem:[#allocation5 + $0x84]]
    %s220 = scalar_lea.vmem %s1, %s219
    %v221 = vld [vmem:[%s220] sm:$0x1]
    %222 = vst.msk [vmem:[#allocation2 + $0x21] sm:$0x1] %vm89, %v221
    %s223 = sld [smem:[#allocation5 + $0x104]]
    %s224 = scalar_lea.vmem %s1, %s223
    %v225 = vld [vmem:[%s224] sm:$0x1]
    %226 = vst.msk [vmem:[#allocation2 + $0x22] sm:$0x1] %vm89, %v225
    %s227 = sld [smem:[#allocation5 + $0x184]]
    %s228 = scalar_lea.vmem %s1, %s227
    %v229 = vld [vmem:[%s228] sm:$0x1]
    %230 = vst.msk [vmem:[#allocation2 + $0x23] sm:$0x1] %vm89, %v229
    %s231 = sld [smem:[#allocation5 + $0x204]]
    %s232 = scalar_lea.vmem %s1, %s231
    %v233 = vld [vmem:[%s232] sm:$0x1]
    %234 = vst.msk [vmem:[#allocation2 + $0x24] sm:$0x1] %vm89, %v233
    %s235 = sld [smem:[#allocation5 + $0x284]]
    %s236 = scalar_lea.vmem %s1, %s235
    %v237 = vld [vmem:[%s236] sm:$0x1]
    %238 = vst.msk [vmem:[#allocation2 + $0x25] sm:$0x1] %vm89, %v237
    %s239 = sld [smem:[#allocation5 + $0x304]]
    %s240 = scalar_lea.vmem %s1, %s239
    %v241 = vld [vmem:[%s240] sm:$0x1]
    %242 = vst.msk [vmem:[#allocation2 + $0x26] sm:$0x1] %vm89, %v241
    %s243 = sld [smem:[#allocation5 + $0x384]]
    %s244 = scalar_lea.vmem %s1, %s243
    %v245 = vld [vmem:[%s244] sm:$0x1]
    %246 = vst.msk [vmem:[#allocation2 + $0x27] sm:$0x1] %vm89, %v245
    %s247 = sld [smem:[#allocation5 + $0x5]]
    %s248 = scalar_lea.vmem %s1, %s247
    %v249 = vld [vmem:[%s248] sm:$0x1]
    %250 = vst.msk [vmem:[#allocation2 + $0x28] sm:$0x1] %vm89, %v249
    %s251 = sld [smem:[#allocation5 + $0x85]]
    %s252 = scalar_lea.vmem %s1, %s251
    %v253 = vld [vmem:[%s252] sm:$0x1]
    %254 = vst.msk [vmem:[#allocation2 + $0x29] sm:$0x1] %vm89, %v253
    %s255 = sld [smem:[#allocation5 + $0x105]]
    %s256 = scalar_lea.vmem %s1, %s255
    %v257 = vld [vmem:[%s256] sm:$0x1]
    %258 = vst.msk [vmem:[#allocation2 + $0x2a] sm:$0x1] %vm89, %v257
    %s259 = sld [smem:[#allocation5 + $0x185]]
    %s260 = scalar_lea.vmem %s1, %s259
    %v261 = vld [vmem:[%s260] sm:$0x1]
    %262 = vst.msk [vmem:[#allocation2 + $0x2b] sm:$0x1] %vm89, %v261
    %s263 = sld [smem:[#allocation5 + $0x205]]
    %s264 = scalar_lea.vmem %s1, %s263
    %v265 = vld [vmem:[%s264] sm:$0x1]
    %266 = vst.msk [vmem:[#allocation2 + $0x2c] sm:$0x1] %vm89, %v265
    %s267 = sld [smem:[#allocation5 + $0x285]]
    %s268 = scalar_lea.vmem %s1, %s267
    %v269 = vld [vmem:[%s268] sm:$0x1]
    %270 = vst.msk [vmem:[#allocation2 + $0x2d] sm:$0x1] %vm89, %v269
    %s271 = sld [smem:[#allocation5 + $0x305]]
    %s272 = scalar_lea.vmem %s1, %s271
    %v273 = vld [vmem:[%s272] sm:$0x1]
    %274 = vst.msk [vmem:[#allocation2 + $0x2e] sm:$0x1] %vm89, %v273
    %s275 = sld [smem:[#allocation5 + $0x385]]
    %s276 = scalar_lea.vmem %s1, %s275
    %v277 = vld [vmem:[%s276] sm:$0x1]
    %278 = vst.msk [vmem:[#allocation2 + $0x2f] sm:$0x1] %vm89, %v277
    %s279 = sld [smem:[#allocation5 + $0x6]]
    %s280 = scalar_lea.vmem %s1, %s279
    %v281 = vld [vmem:[%s280] sm:$0x1]
    %282 = vst.msk [vmem:[#allocation2 + $0x30] sm:$0x1] %vm89, %v281
    %s283 = sld [smem:[#allocation5 + $0x86]]
    %s284 = scalar_lea.vmem %s1, %s283
    %v285 = vld [vmem:[%s284] sm:$0x1]
    %286 = vst.msk [vmem:[#allocation2 + $0x31] sm:$0x1] %vm89, %v285
    %s287 = sld [smem:[#allocation5 + $0x106]]
    %s288 = scalar_lea.vmem %s1, %s287
    %v289 = vld [vmem:[%s288] sm:$0x1]
    %290 = vst.msk [vmem:[#allocation2 + $0x32] sm:$0x1] %vm89, %v289
    %s291 = sld [smem:[#allocation5 + $0x186]]
    %s292 = scalar_lea.vmem %s1, %s291
    %v293 = vld [vmem:[%s292] sm:$0x1]
    %294 = vst.msk [vmem:[#allocation2 + $0x33] sm:$0x1] %vm89, %v293
    %s295 = sld [smem:[#allocation5 + $0x206]]
    %s296 = scalar_lea.vmem %s1, %s295
    %v297 = vld [vmem:[%s296] sm:$0x1]
    %298 = vst.msk [vmem:[#allocation2 + $0x34] sm:$0x1] %vm89, %v297
    %s299 = sld [smem:[#allocation5 + $0x286]]
    %s300 = scalar_lea.vmem %s1, %s299
    %v301 = vld [vmem:[%s300] sm:$0x1]
    %302 = vst.msk [vmem:[#allocation2 + $0x35] sm:$0x1] %vm89, %v301
    %s303 = sld [smem:[#allocation5 + $0x306]]
    %s304 = scalar_lea.vmem %s1, %s303
    %v305 = vld [vmem:[%s304] sm:$0x1]
    %306 = vst.msk [vmem:[#allocation2 + $0x36] sm:$0x1] %vm89, %v305
    %s307 = sld [smem:[#allocation5 + $0x386]]
    %s308 = scalar_lea.vmem %s1, %s307
    %v309 = vld [vmem:[%s308] sm:$0x1]
    %310 = vst.msk [vmem:[#allocation2 + $0x37] sm:$0x1] %vm89, %v309
    %s311 = sld [smem:[#allocation5 + $0x7]]
    %s312 = scalar_lea.vmem %s1, %s311
    %v313 = vld [vmem:[%s312] sm:$0x1]
    %314 = vst.msk [vmem:[#allocation2 + $0x38] sm:$0x1] %vm89, %v313
    %s315 = sld [smem:[#allocation5 + $0x87]]
    %s316 = scalar_lea.vmem %s1, %s315
    %v317 = vld [vmem:[%s316] sm:$0x1]
    %318 = vst.msk [vmem:[#allocation2 + $0x39] sm:$0x1] %vm89, %v317
    %s319 = sld [smem:[#allocation5 + $0x107]]
    %s320 = scalar_lea.vmem %s1, %s319
    %v321 = vld [vmem:[%s320] sm:$0x1]
    %322 = vst.msk [vmem:[#allocation2 + $0x3a] sm:$0x1] %vm89, %v321
    %s323 = sld [smem:[#allocation5 + $0x187]]
    %s324 = scalar_lea.vmem %s1, %s323
    %v325 = vld [vmem:[%s324] sm:$0x1]
    %326 = vst.msk [vmem:[#allocation2 + $0x3b] sm:$0x1] %vm89, %v325
    %s327 = sld [smem:[#allocation5 + $0x207]]
    %s328 = scalar_lea.vmem %s1, %s327
    %v329 = vld [vmem:[%s328] sm:$0x1]
    %330 = vst.msk [vmem:[#allocation2 + $0x3c] sm:$0x1] %vm89, %v329
    %s331 = sld [smem:[#allocation5 + $0x287]]
    %s332 = scalar_lea.vmem %s1, %s331
    %v333 = vld [vmem:[%s332] sm:$0x1]
    %334 = vst.msk [vmem:[#allocation2 + $0x3d] sm:$0x1] %vm89, %v333
    %s335 = sld [smem:[#allocation5 + $0x307]]
    %s336 = scalar_lea.vmem %s1, %s335
    %v337 = vld [vmem:[%s336] sm:$0x1]
    %338 = vst.msk [vmem:[#allocation2 + $0x3e] sm:$0x1] %vm89, %v337
    %s339 = sld [smem:[#allocation5 + $0x387]]
    %s340 = scalar_lea.vmem %s1, %s339
    %v341 = vld [vmem:[%s340] sm:$0x1]
    %342 = vst.msk [vmem:[#allocation2 + $0x3f] sm:$0x1] %vm89, %v341
    %v343 = vld [vmem:[#allocation2] sm:$0xff]
    %v344 = vld [vmem:[#allocation2 + $0x8] sm:$0xff]
    %v345 = vld [vmem:[#allocation2 + $0x10] sm:$0xff]
    %v346 = vld [vmem:[#allocation2 + $0x18] sm:$0xff]
    %v347 = vld [vmem:[#allocation2 + $0x20] sm:$0xff]
    %v348 = vld [vmem:[#allocation2 + $0x28] sm:$0xff]
    %v349 = vld [vmem:[#allocation2 + $0x30] sm:$0xff]
    %v350 = vld [vmem:[#allocation2 + $0x38] sm:$0xff]
    %v351 = vpack.c.bf16 %v344, %v343
    %v352 = vpack.c.bf16 %v346, %v345
    %v353 = vpack.c.bf16 %v348, %v347
    %v354 = vpack.c.bf16 %v350, %v349
    %v355 = vld [vmem:[%s2] sm:$0xff]
    %v356 = vld [vmem:[%s2 + $0x8] sm:$0xff]
    %v357 = vld [vmem:[%s2 + $0x10] sm:$0xff]
    %v358 = vld [vmem:[%s2 + $0x18] sm:$0xff]
    %v359 = vld [vmem:[%s2 + $0x20] sm:$0xff]
    %v360 = vld [vmem:[%s2 + $0x28] sm:$0xff]
    %v361 = vld [vmem:[%s2 + $0x30] sm:$0xff]
    %v362 = vld [vmem:[%s2 + $0x38] sm:$0xff]
    %v363 = vld [vmem:[%s2 + $0x40] sm:$0xff]
    %v364 = vld [vmem:[%s2 + $0x48] sm:$0xff]
    %v365 = vld [vmem:[%s2 + $0x50] sm:$0xff]
    %v366 = vld [vmem:[%s2 + $0x58] sm:$0xff]
    %v367 = vld [vmem:[%s2 + $0x60] sm:$0xff]
    %v368 = vld [vmem:[%s2 + $0x68] sm:$0xff]
    %v369 = vld [vmem:[%s2 + $0x70] sm:$0xff]
    %v370 = vld [vmem:[%s2 + $0x78] sm:$0xff]
    %v371 = vld [vmem:[%s4] sm:$0xf]
    %v373 = vlaneseq
    %v374 = vshrl.u32 %v373, 7
    %v375 = vsub.s32 0, %v374
    %v376 = vrot.slane %v371, %v375
    %v377 = vlaneseq
    %v378 = vshrl.u32 %v377, 7
    %v379 = vsub.s32 1, %v378
    %v380 = vrot.slane %v371, %v379
    %v381 = vlaneseq
    %v382 = vshrl.u32 %v381, 7
    %v383 = vsub.s32 2, %v382
    %v384 = vrot.slane %v371, %v383
    %v385 = vlaneseq
    %v386 = vshrl.u32 %v385, 7
    %v387 = vsub.s32 3, %v386
    %v388 = vrot.slane %v371, %v387
    %v409 = vunpack.c.l.b16 %v355
    %v410 = vunpack.c.h.b16 %v355
    %v411 = vunpack.c.l.b16 %v356
    %v412 = vunpack.c.h.b16 %v356
    %v413 = vunpack.c.l.b16 %v357
    %v414 = vunpack.c.h.b16 %v357
    %v415 = vunpack.c.l.b16 %v358
    %v416 = vunpack.c.h.b16 %v358
    %v417 = vunpack.c.l.b16 %v359
    %v418 = vunpack.c.h.b16 %v359
    %v419 = vunpack.c.l.b16 %v360
    %v420 = vunpack.c.h.b16 %v360
    %v421 = vunpack.c.l.b16 %v361
    %v422 = vunpack.c.h.b16 %v361
    %v423 = vunpack.c.l.b16 %v362
    %v424 = vunpack.c.h.b16 %v362
    %v425 = vunpack.c.l.b16 %v363
    %v426 = vunpack.c.h.b16 %v363
    %v427 = vunpack.c.l.b16 %v364
    %v428 = vunpack.c.h.b16 %v364
    %v429 = vunpack.c.l.b16 %v365
    %v430 = vunpack.c.h.b16 %v365
    %v431 = vunpack.c.l.b16 %v366
    %v432 = vunpack.c.h.b16 %v366
    %v433 = vunpack.c.l.b16 %v367
    %v434 = vunpack.c.h.b16 %v367
    %v435 = vunpack.c.l.b16 %v368
    %v436 = vunpack.c.h.b16 %v368
    %v437 = vunpack.c.l.b16 %v369
    %v438 = vunpack.c.h.b16 %v369
    %v439 = vunpack.c.l.b16 %v370
    %v440 = vunpack.c.h.b16 %v370
    %v441 = vpack.c.b16 %v413, %v409
    %v442 = vpack.c.b16 %v414, %v410
    %v443 = vpack.c.b16 %v415, %v411
    %v444 = vpack.c.b16 %v416, %v412
    %v445 = vpack.c.b16 %v421, %v417
    %v446 = vpack.c.b16 %v422, %v418
    %v447 = vpack.c.b16 %v423, %v419
    %v448 = vpack.c.b16 %v424, %v420
    %v449 = vpack.c.b16 %v429, %v425
    %v450 = vpack.c.b16 %v430, %v426
    %v451 = vpack.c.b16 %v431, %v427
    %v452 = vpack.c.b16 %v432, %v428
    %v453 = vpack.c.b16 %v437, %v433
    %v454 = vpack.c.b16 %v438, %v434
    %v455 = vpack.c.b16 %v439, %v435
    %v456 = vpack.c.b16 %v440, %v436
    %vm473 = vcmask 523264
    %v475 = vsel %vm473, %v351, 0
    %v478 = vsel %vm473, %v352, 0
    %v481 = vsel %vm473, %v353, 0
    %v484 = vsel %vm473, %v354, 0
    %486 = vmatprep.subr.bf16.mxu0 0
    %487 = vmatpush1.bf16.msra.mxu0 0
    %488 = vmatprep.subr.bf16.mxu0 0
    %489 = vmatpush1.bf16.msra.mxu0 0
    %490 = vmatprep.subr.bf16.mxu0 0
    %491 = vmatpush1.bf16.msra.mxu0 0
    %492 = vmatprep.subr.bf16.mxu0 0
    %493 = vmatpush1.bf16.msra.mxu0 0
    %494 = vmatprep.subr.bf16.mxu0 %v454
    %495 = vmatpush1.bf16.msra.mxu0 %v453
    %496 = vmatprep.subr.bf16.mxu0 %v450
    %497 = vmatpush1.bf16.msra.mxu0 %v449
    %498 = vmatprep.subr.bf16.mxu0 %v446
    %499 = vmatpush1.bf16.msra.mxu0 %v445
    %500 = vmatprep.subr.bf16.mxu0 %v442
    %501 = vmatpush1.bf16.msra.mxu0 %v441
    %502 = vmatprep.subr.bf16.mxu0 0
    %503 = vmatpush2.bf16.msra.mxu0 0
    %504 = vmatprep.subr.bf16.mxu0 0
    %505 = vmatpush2.bf16.msra.mxu0 0
    %506 = vmatprep.subr.bf16.mxu0 0
    %507 = vmatpush2.bf16.msra.mxu0 0
    %508 = vmatprep.subr.bf16.mxu0 0
    %509 = vmatpush2.bf16.msra.mxu0 0
    %510 = vmatprep.subr.bf16.mxu0 0
    %511 = vmatpush2.bf16.msra.mxu0 0
    %512 = vmatprep.subr.bf16.mxu0 0
    %513 = vmatpush2.bf16.msra.mxu0 0
    %514 = vmatprep.subr.bf16.mxu0 0
    %515 = vmatpush2.bf16.msra.mxu0 0
    %516 = vmatprep.subr.bf16.mxu0 0
    %517 = vmatpush2.bf16.msra.mxu0 0
    %518 = vmatprep.mubr.bf16.mxu0 0
    %519 = vmatmul.mubr.bf16.gmra.mxu0 %v475
    %v520 = vpop.f32.mrf.mxu0
    %v521 = vadd.f32 %v376, %v520
    %v522 = vpop.f32.mrf.mxu0
    %v523 = vadd.f32 %v380, %v522
    %v524 = vpop.f32.mrf.mxu0
    %v525 = vadd.f32 %v376, %v524
    %v526 = vpop.f32.mrf.mxu0
    %v527 = vadd.f32 %v380, %v526
    %528 = vmatprep.mubr.bf16.mxu0 0
    %529 = vmatmul.mubr.bf16.gmra.mxu0 %v478
    %v530 = vpop.f32.mrf.mxu0
    %v531 = vadd.f32 %v376, %v530
    %v532 = vpop.f32.mrf.mxu0
    %v533 = vadd.f32 %v380, %v532
    %v534 = vpop.f32.mrf.mxu0
    %v535 = vadd.f32 %v376, %v534
    %v536 = vpop.f32.mrf.mxu0
    %v537 = vadd.f32 %v380, %v536
    %538 = vmatprep.mubr.bf16.mxu0 0
    %539 = vmatmul.mubr.bf16.gmra.mxu0 %v481
    %v540 = vpop.f32.mrf.mxu0
    %v541 = vadd.f32 %v376, %v540
    %v542 = vpop.f32.mrf.mxu0
    %v543 = vadd.f32 %v380, %v542
    %v544 = vpop.f32.mrf.mxu0
    %v545 = vadd.f32 %v376, %v544
    %v546 = vpop.f32.mrf.mxu0
    %v547 = vadd.f32 %v380, %v546
    %548 = vmatprep.mubr.bf16.mxu0 0
    %549 = vmatmul.mubr.bf16.gmra.mxu0 %v484
    %v550 = vpop.f32.mrf.mxu0
    %v551 = vadd.f32 %v376, %v550
    %v552 = vpop.f32.mrf.mxu0
    %v553 = vadd.f32 %v380, %v552
    %v554 = vpop.f32.mrf.mxu0
    %v555 = vadd.f32 %v376, %v554
    %v556 = vpop.f32.mrf.mxu0
    %v557 = vadd.f32 %v380, %v556
    %558 = vdwg.mxu0
    %559 = vmatprep.subr.bf16.mxu0 0
    %560 = vmatpush1.bf16.msra.mxu0 0
    %561 = vmatprep.subr.bf16.mxu0 0
    %562 = vmatpush1.bf16.msra.mxu0 0
    %563 = vmatprep.subr.bf16.mxu0 0
    %564 = vmatpush1.bf16.msra.mxu0 0
    %565 = vmatprep.subr.bf16.mxu0 0
    %566 = vmatpush1.bf16.msra.mxu0 0
    %567 = vmatprep.subr.bf16.mxu0 %v456
    %568 = vmatpush1.bf16.msra.mxu0 %v455
    %569 = vmatprep.subr.bf16.mxu0 %v452
    %570 = vmatpush1.bf16.msra.mxu0 %v451
    %571 = vmatprep.subr.bf16.mxu0 %v448
    %572 = vmatpush1.bf16.msra.mxu0 %v447
    %573 = vmatprep.subr.bf16.mxu0 %v444
    %574 = vmatpush1.bf16.msra.mxu0 %v443
    %575 = vmatprep.subr.bf16.mxu0 0
    %576 = vmatpush2.bf16.msra.mxu0 0
    %577 = vmatprep.subr.bf16.mxu0 0
    %578 = vmatpush2.bf16.msra.mxu0 0
    %579 = vmatprep.subr.bf16.mxu0 0
    %580 = vmatpush2.bf16.msra.mxu0 0
    %581 = vmatprep.subr.bf16.mxu0 0
    %582 = vmatpush2.bf16.msra.mxu0 0
    %583 = vmatprep.subr.bf16.mxu0 0
    %584 = vmatpush2.bf16.msra.mxu0 0
    %585 = vmatprep.subr.bf16.mxu0 0
    %586 = vmatpush2.bf16.msra.mxu0 0
    %587 = vmatprep.subr.bf16.mxu0 0
    %588 = vmatpush2.bf16.msra.mxu0 0
    %589 = vmatprep.subr.bf16.mxu0 0
    %590 = vmatpush2.bf16.msra.mxu0 0
    %591 = vmatprep.mubr.bf16.mxu0 0
    %592 = vmatmul.mubr.bf16.gmra.mxu0 %v475
    %v593 = vpop.f32.mrf.mxu0
    %v594 = vadd.f32 %v384, %v593
    %v595 = vpop.f32.mrf.mxu0
    %v596 = vadd.f32 %v388, %v595
    %v597 = vpop.f32.mrf.mxu0
    %v598 = vadd.f32 %v384, %v597
    %v599 = vpop.f32.mrf.mxu0
    %v600 = vadd.f32 %v388, %v599
    %601 = vmatprep.mubr.bf16.mxu0 0
    %602 = vmatmul.mubr.bf16.gmra.mxu0 %v478
    %v603 = vpop.f32.mrf.mxu0
    %v604 = vadd.f32 %v384, %v603
    %v605 = vpop.f32.mrf.mxu0
    %v606 = vadd.f32 %v388, %v605
    %v607 = vpop.f32.mrf.mxu0
    %v608 = vadd.f32 %v384, %v607
    %v609 = vpop.f32.mrf.mxu0
    %v610 = vadd.f32 %v388, %v609
    %611 = vmatprep.mubr.bf16.mxu0 0
    %612 = vmatmul.mubr.bf16.gmra.mxu0 %v481
    %v613 = vpop.f32.mrf.mxu0
    %v614 = vadd.f32 %v384, %v613
    %v615 = vpop.f32.mrf.mxu0
    %v616 = vadd.f32 %v388, %v615
    %v617 = vpop.f32.mrf.mxu0
    %v618 = vadd.f32 %v384, %v617
    %v619 = vpop.f32.mrf.mxu0
    %v620 = vadd.f32 %v388, %v619
    %621 = vmatprep.mubr.bf16.mxu0 0
    %622 = vmatmul.mubr.bf16.gmra.mxu0 %v484
    %v623 = vpop.f32.mrf.mxu0
    %v624 = vadd.f32 %v384, %v623
    %v625 = vpop.f32.mrf.mxu0
    %v626 = vadd.f32 %v388, %v625
    %v627 = vpop.f32.mrf.mxu0
    %v628 = vadd.f32 %v384, %v627
    %v629 = vpop.f32.mrf.mxu0
    %v630 = vadd.f32 %v388, %v629
    %631 = vdwg.mxu0
    %632 = vst [vmem:[#allocation3] sm:$0xff] %v521
    %633 = vst [vmem:[#allocation3 + $0x8] sm:$0xff] %v523
    %634 = vst [vmem:[#allocation3 + $0x10] sm:$0xff] %v594
    %635 = vst [vmem:[#allocation3 + $0x18] sm:$0xff] %v596
    %636 = vst [vmem:[#allocation3 + $0x20] sm:$0xff] %v525
    %637 = vst [vmem:[#allocation3 + $0x28] sm:$0xff] %v527
    %638 = vst [vmem:[#allocation3 + $0x30] sm:$0xff] %v598
    %639 = vst [vmem:[#allocation3 + $0x38] sm:$0xff] %v600
    %640 = vst [vmem:[#allocation3 + $0x40] sm:$0xff] %v531
    %641 = vst [vmem:[#allocation3 + $0x48] sm:$0xff] %v533
    %642 = vst [vmem:[#allocation3 + $0x50] sm:$0xff] %v604
    %643 = vst [vmem:[#allocation3 + $0x58] sm:$0xff] %v606
    %644 = vst [vmem:[#allocation3 + $0x60] sm:$0xff] %v535
    %645 = vst [vmem:[#allocation3 + $0x68] sm:$0xff] %v537
    %646 = vst [vmem:[#allocation3 + $0x70] sm:$0xff] %v608
    %647 = vst [vmem:[#allocation3 + $0x78] sm:$0xff] %v610
    %648 = vst [vmem:[#allocation3 + $0x80] sm:$0xff] %v541
    %649 = vst [vmem:[#allocation3 + $0x88] sm:$0xff] %v543
    %650 = vst [vmem:[#allocation3 + $0x90] sm:$0xff] %v614
    %651 = vst [vmem:[#allocation3 + $0x98] sm:$0xff] %v616
    %652 = vst [vmem:[#allocation3 + $0xa0] sm:$0xff] %v545
    %653 = vst [vmem:[#allocation3 + $0xa8] sm:$0xff] %v547
    %654 = vst [vmem:[#allocation3 + $0xb0] sm:$0xff] %v618
    %655 = vst [vmem:[#allocation3 + $0xb8] sm:$0xff] %v620
    %656 = vst [vmem:[#allocation3 + $0xc0] sm:$0xff] %v551
    %657 = vst [vmem:[#allocation3 + $0xc8] sm:$0xff] %v553
    %658 = vst [vmem:[#allocation3 + $0xd0] sm:$0xff] %v624
    %659 = vst [vmem:[#allocation3 + $0xd8] sm:$0xff] %v626
    %660 = vst [vmem:[#allocation3 + $0xe0] sm:$0xff] %v555
    %661 = vst [vmem:[#allocation3 + $0xe8] sm:$0xff] %v557
    %662 = vst [vmem:[#allocation3 + $0xf0] sm:$0xff] %v628
    %663 = vst [vmem:[#allocation3 + $0xf8] sm:$0xff] %v630
    %v664 = vld [vmem:[%s9] sm:$0xff]
    %v665 = vld [vmem:[%s10] sm:$0xff]
    %s666 = scalar_lea.vmem %s9, 8
    %v667 = vld [vmem:[%s666] sm:$0xff]
    %s668 = scalar_lea.vmem %s10, 8
    %v669 = vld [vmem:[%s668] sm:$0xff]
    %v670 = vld [vmem:[#allocation3] sm:$0xff]
    %v671 = vld [vmem:[#allocation3 + $0x8] sm:$0xff]
    %v672 = vld [vmem:[#allocation3 + $0x10] sm:$0xff]
    %v673 = vld [vmem:[#allocation3 + $0x18] sm:$0xff]
    %v674 = vpack.c.bf16 %v664, %v664
    %v675 = vld [vmem:[#allocation9] sm:$0xff]
    %v676 = vld [vmem:[#allocation9 + $0x8] sm:$0xff]
    %v677 = vld [vmem:[#allocation9 + $0x10] sm:$0xff]
    %v678 = vld [vmem:[#allocation9 + $0x18] sm:$0xff]
    %v679 = vld [vmem:[#allocation9 + $0x20] sm:$0xff]
    %v680 = vld [vmem:[#allocation9 + $0x28] sm:$0xff]
    %v681 = vld [vmem:[#allocation9 + $0x30] sm:$0xff]
    %v682 = vld [vmem:[#allocation9 + $0x38] sm:$0xff]
    %v683 = vld [vmem:[#allocation9 + $0x40] sm:$0xff]
    %v684 = vld [vmem:[#allocation9 + $0x48] sm:$0xff]
    %v685 = vld [vmem:[#allocation9 + $0x50] sm:$0xff]
    %v686 = vld [vmem:[#allocation9 + $0x58] sm:$0xff]
    %v687 = vld [vmem:[#allocation9 + $0x60] sm:$0xff]
    %v688 = vld [vmem:[#allocation9 + $0x68] sm:$0xff]
    %v689 = vld [vmem:[#allocation9 + $0x70] sm:$0xff]
    %v690 = vld [vmem:[#allocation9 + $0x78] sm:$0xff]
    %v691 = vld [vmem:[#allocation9 + $0x80] sm:$0xff]
    %v692 = vld [vmem:[#allocation9 + $0x88] sm:$0xff]
    %v693 = vld [vmem:[#allocation9 + $0x90] sm:$0xff]
    %v694 = vld [vmem:[#allocation9 + $0x98] sm:$0xff]
    %v695 = vld [vmem:[#allocation9 + $0xa0] sm:$0xff]
    %v696 = vld [vmem:[#allocation9 + $0xa8] sm:$0xff]
    %v697 = vld [vmem:[#allocation9 + $0xb0] sm:$0xff]
    %v698 = vld [vmem:[#allocation9 + $0xb8] sm:$0xff]
    %v699 = vld [vmem:[#allocation9 + $0xc0] sm:$0xff]
    %v700 = vld [vmem:[#allocation9 + $0xc8] sm:$0xff]
    %v701 = vld [vmem:[#allocation9 + $0xd0] sm:$0xff]
    %v702 = vld [vmem:[#allocation9 + $0xd8] sm:$0xff]
    %v703 = vld [vmem:[#allocation9 + $0xe0] sm:$0xff]
    %v704 = vld [vmem:[#allocation9 + $0xe8] sm:$0xff]
    %v705 = vld [vmem:[#allocation9 + $0xf0] sm:$0xff]
    %v706 = vld [vmem:[#allocation9 + $0xf8] sm:$0xff]
    %v739 = vunpack.c.l.b16 %v675
    %v740 = vunpack.c.h.b16 %v675
    %v741 = vunpack.c.l.b16 %v676
    %v742 = vunpack.c.h.b16 %v676
    %v743 = vunpack.c.l.b16 %v677
    %v744 = vunpack.c.h.b16 %v677
    %v745 = vunpack.c.l.b16 %v678
    %v746 = vunpack.c.h.b16 %v678
    %v747 = vunpack.c.l.b16 %v679
    %v748 = vunpack.c.h.b16 %v679
    %v749 = vunpack.c.l.b16 %v680
    %v750 = vunpack.c.h.b16 %v680
    %v751 = vunpack.c.l.b16 %v681
    %v752 = vunpack.c.h.b16 %v681
    %v753 = vunpack.c.l.b16 %v682
    %v754 = vunpack.c.h.b16 %v682
    %v755 = vunpack.c.l.b16 %v683
    %v756 = vunpack.c.h.b16 %v683
    %v757 = vunpack.c.l.b16 %v684
    %v758 = vunpack.c.h.b16 %v684
    %v759 = vunpack.c.l.b16 %v685
    %v760 = vunpack.c.h.b16 %v685
    %v761 = vunpack.c.l.b16 %v686
    %v762 = vunpack.c.h.b16 %v686
    %v763 = vunpack.c.l.b16 %v687
    %v764 = vunpack.c.h.b16 %v687
    %v765 = vunpack.c.l.b16 %v688
    %v766 = vunpack.c.h.b16 %v688
    %v767 = vunpack.c.l.b16 %v689
    %v768 = vunpack.c.h.b16 %v689
    %v769 = vunpack.c.l.b16 %v690
    %v770 = vunpack.c.h.b16 %v690
    %v771 = vunpack.c.l.b16 %v691
    %v772 = vunpack.c.h.b16 %v691
    %v773 = vunpack.c.l.b16 %v692
    %v774 = vunpack.c.h.b16 %v692
    %v775 = vunpack.c.l.b16 %v693
    %v776 = vunpack.c.h.b16 %v693
    %v777 = vunpack.c.l.b16 %v694
    %v778 = vunpack.c.h.b16 %v694
    %v779 = vunpack.c.l.b16 %v695
    %v780 = vunpack.c.h.b16 %v695
    %v781 = vunpack.c.l.b16 %v696
    %v782 = vunpack.c.h.b16 %v696
    %v783 = vunpack.c.l.b16 %v697
    %v784 = vunpack.c.h.b16 %v697
    %v785 = vunpack.c.l.b16 %v698
    %v786 = vunpack.c.h.b16 %v698
    %v787 = vunpack.c.l.b16 %v699
    %v788 = vunpack.c.h.b16 %v699
    %v789 = vunpack.c.l.b16 %v700
    %v790 = vunpack.c.h.b16 %v700
    %v791 = vunpack.c.l.b16 %v701
    %v792 = vunpack.c.h.b16 %v701
    %v793 = vunpack.c.l.b16 %v702
    %v794 = vunpack.c.h.b16 %v702
    %v795 = vunpack.c.l.b16 %v703
    %v796 = vunpack.c.h.b16 %v703
    %v797 = vunpack.c.l.b16 %v704
    %v798 = vunpack.c.h.b16 %v704
    %v799 = vunpack.c.l.b16 %v705
    %v800 = vunpack.c.h.b16 %v705
    %v801 = vunpack.c.l.b16 %v706
    %v802 = vunpack.c.h.b16 %v706
    %v803 = vpack.c.b16 %v743, %v739
    %v804 = vpack.c.b16 %v744, %v740
    %v805 = vpack.c.b16 %v745, %v741
    %v806 = vpack.c.b16 %v746, %v742
    %v807 = vpack.c.b16 %v751, %v747
    %v808 = vpack.c.b16 %v752, %v748
    %v809 = vpack.c.b16 %v753, %v749
    %v810 = vpack.c.b16 %v754, %v750
    %v811 = vpack.c.b16 %v759, %v755
    %v812 = vpack.c.b16 %v760, %v756
    %v813 = vpack.c.b16 %v761, %v757
    %v814 = vpack.c.b16 %v762, %v758
    %v815 = vpack.c.b16 %v767, %v763
    %v816 = vpack.c.b16 %v768, %v764
    %v817 = vpack.c.b16 %v769, %v765
    %v818 = vpack.c.b16 %v770, %v766
    %v819 = vpack.c.b16 %v775, %v771
    %v820 = vpack.c.b16 %v776, %v772
    %v821 = vpack.c.b16 %v777, %v773
    %v822 = vpack.c.b16 %v778, %v774
    %v823 = vpack.c.b16 %v783, %v779
    %v824 = vpack.c.b16 %v784, %v780
    %v825 = vpack.c.b16 %v785, %v781
    %v826 = vpack.c.b16 %v786, %v782
    %v827 = vpack.c.b16 %v791, %v787
    %v828 = vpack.c.b16 %v792, %v788
    %v829 = vpack.c.b16 %v793, %v789
    %v830 = vpack.c.b16 %v794, %v790
    %v831 = vpack.c.b16 %v799, %v795
    %v832 = vpack.c.b16 %v800, %v796
    %v833 = vpack.c.b16 %v801, %v797
    %v834 = vpack.c.b16 %v802, %v798
    %867 = vmatprep.subr.bf16.mxu0 %v832
    %868 = vmatpush1.bf16.msra.mxu0 %v831
    %869 = vmatprep.subr.bf16.mxu0 %v828
    %870 = vmatpush1.bf16.msra.mxu0 %v827
    %871 = vmatprep.subr.bf16.mxu0 %v824
    %872 = vmatpush1.bf16.msra.mxu0 %v823
    %873 = vmatprep.subr.bf16.mxu0 %v820
    %874 = vmatpush1.bf16.msra.mxu0 %v819
    %875 = vmatprep.subr.bf16.mxu0 %v816
    %876 = vmatpush1.bf16.msra.mxu0 %v815
    %877 = vmatprep.subr.bf16.mxu0 %v812
    %878 = vmatpush1.bf16.msra.mxu0 %v811
    %879 = vmatprep.subr.bf16.mxu0 %v808
    %880 = vmatpush1.bf16.msra.mxu0 %v807
    %881 = vmatprep.subr.bf16.mxu0 %v804
    %882 = vmatpush1.bf16.msra.mxu0 %v803
    %883 = vmatprep.subr.bf16.mxu0 0
    %884 = vmatpush2.bf16.msra.mxu0 0
    %885 = vmatprep.subr.bf16.mxu0 0
    %886 = vmatpush2.bf16.msra.mxu0 0
    %887 = vmatprep.subr.bf16.mxu0 0
    %888 = vmatpush2.bf16.msra.mxu0 0
    %889 = vmatprep.subr.bf16.mxu0 0
    %890 = vmatpush2.bf16.msra.mxu0 0
    %891 = vmatprep.subr.bf16.mxu0 0
    %892 = vmatpush2.bf16.msra.mxu0 0
    %893 = vmatprep.subr.bf16.mxu0 0
    %894 = vmatpush2.bf16.msra.mxu0 0
    %895 = vmatprep.subr.bf16.mxu0 0
    %896 = vmatpush2.bf16.msra.mxu0 0
    %897 = vmatprep.subr.bf16.mxu0 0
    %898 = vmatpush2.bf16.msra.mxu0 0
    %899 = vmatprep.mubr.bf16.mxu0 0
    %900 = vmatmul.mubr.bf16.gmra.mxu0 %v674
    %v901 = vpop.f32.mrf.mxu0
    %v902 = vadd.f32 0.0, %v901
    %v903 = vpop.f32.mrf.mxu0
    %v904 = vadd.f32 0.0, %v903
    %v905 = vpop.f32.mrf.mxu0
    %v906 = vpop.f32.mrf.mxu0
    %907 = vdwg.mxu0
    %908 = vmatprep.subr.bf16.mxu0 %v834
    %909 = vmatpush1.bf16.msra.mxu0 %v833
    %910 = vmatprep.subr.bf16.mxu0 %v830
    %911 = vmatpush1.bf16.msra.mxu0 %v829
    %912 = vmatprep.subr.bf16.mxu0 %v826
    %913 = vmatpush1.bf16.msra.mxu0 %v825
    %914 = vmatprep.subr.bf16.mxu0 %v822
    %915 = vmatpush1.bf16.msra.mxu0 %v821
    %916 = vmatprep.subr.bf16.mxu0 %v818
    %917 = vmatpush1.bf16.msra.mxu0 %v817
    %918 = vmatprep.subr.bf16.mxu0 %v814
    %919 = vmatpush1.bf16.msra.mxu0 %v813
    %920 = vmatprep.subr.bf16.mxu0 %v810
    %921 = vmatpush1.bf16.msra.mxu0 %v809
    %922 = vmatprep.subr.bf16.mxu0 %v806
    %923 = vmatpush1.bf16.msra.mxu0 %v805
    %924 = vmatprep.subr.bf16.mxu0 0
    %925 = vmatpush2.bf16.msra.mxu0 0
    %926 = vmatprep.subr.bf16.mxu0 0
    %927 = vmatpush2.bf16.msra.mxu0 0
    %928 = vmatprep.subr.bf16.mxu0 0
    %929 = vmatpush2.bf16.msra.mxu0 0
    %930 = vmatprep.subr.bf16.mxu0 0
    %931 = vmatpush2.bf16.msra.mxu0 0
    %932 = vmatprep.subr.bf16.mxu0 0
    %933 = vmatpush2.bf16.msra.mxu0 0
    %934 = vmatprep.subr.bf16.mxu0 0
    %935 = vmatpush2.bf16.msra.mxu0 0
    %936 = vmatprep.subr.bf16.mxu0 0
    %937 = vmatpush2.bf16.msra.mxu0 0
    %938 = vmatprep.subr.bf16.mxu0 0
    %939 = vmatpush2.bf16.msra.mxu0 0
    %940 = vmatprep.mubr.bf16.mxu0 0
    %941 = vmatmul.mubr.bf16.gmra.mxu0 %v674
    %v942 = vpop.f32.mrf.mxu0
    %v943 = vadd.f32 0.0, %v942
    %v944 = vpop.f32.mrf.mxu0
    %v945 = vadd.f32 0.0, %v944
    %v946 = vpop.f32.mrf.mxu0
    %v947 = vpop.f32.mrf.mxu0
    %948 = vdwg.mxu0
    %v949 = vadd.f32 %v670, %v902
    %v950 = vadd.f32 %v671, %v904
    %v951 = vadd.f32 %v672, %v943
    %v952 = vadd.f32 %v673, %v945
    %v953 = vxor.u32 %v949, 2147483648
    %v954 = vmul.f32 %v953, 1.442695
    %v955 = vpow.pop %v954
    %v956 = vadd.f32 %v955, 1.0
    %v957 = vrcp.pop %v956
    %v958 = vmul.f32 1.0, %v957
    %v959 = vxor.u32 %v950, 2147483648
    %v960 = vmul.f32 %v959, 1.442695
    %v961 = vpow.pop %v960
    %v962 = vadd.f32 %v961, 1.0
    %v963 = vrcp.pop %v962
    %v964 = vmul.f32 1.0, %v963
    %v965 = vtanh.pop %v951
    %v966 = vxor.u32 %v952, 2147483648
    %v967 = vmul.f32 %v966, 1.442695
    %v968 = vpow.pop %v967
    %v969 = vadd.f32 %v968, 1.0
    %v970 = vrcp.pop %v969
    %v971 = vmul.f32 1.0, %v970
    %v972 = vmul.f32 %v964, %v665
    %v973 = vmul.f32 %v958, %v965
    %v974 = vadd.f32 %v972, %v973
    %v975 = vtanh.pop %v974
    %v976 = vmul.f32 %v971, %v975
    %v977 = vld [vmem:[#allocation3 + $0x20] sm:$0xff]
    %v978 = vld [vmem:[#allocation3 + $0x28] sm:$0xff]
    %v979 = vld [vmem:[#allocation3 + $0x30] sm:$0xff]
    %v980 = vld [vmem:[#allocation3 + $0x38] sm:$0xff]
    %v981 = vpack.c.bf16 %v976, %v976
    %982 = vmatprep.subr.bf16.mxu0 %v832
    %983 = vmatpush1.bf16.msra.mxu0 %v831
    %984 = vmatprep.subr.bf16.mxu0 %v828
    %985 = vmatpush1.bf16.msra.mxu0 %v827
    %986 = vmatprep.subr.bf16.mxu0 %v824
    %987 = vmatpush1.bf16.msra.mxu0 %v823
    %988 = vmatprep.subr.bf16.mxu0 %v820
    %989 = vmatpush1.bf16.msra.mxu0 %v819
    %990 = vmatprep.subr.bf16.mxu0 %v816
    %991 = vmatpush1.bf16.msra.mxu0 %v815
    %992 = vmatprep.subr.bf16.mxu0 %v812
    %993 = vmatpush1.bf16.msra.mxu0 %v811
    %994 = vmatprep.subr.bf16.mxu0 %v808
    %995 = vmatpush1.bf16.msra.mxu0 %v807
    %996 = vmatprep.subr.bf16.mxu0 %v804
    %997 = vmatpush1.bf16.msra.mxu0 %v803
    %998 = vmatprep.subr.bf16.mxu0 0
    %999 = vmatpush2.bf16.msra.mxu0 0
    %1000 = vmatprep.subr.bf16.mxu0 0
    %1001 = vmatpush2.bf16.msra.mxu0 0
    %1002 = vmatprep.subr.bf16.mxu0 0
    %1003 = vmatpush2.bf16.msra.mxu0 0
    %1004 = vmatprep.subr.bf16.mxu0 0
    %1005 = vmatpush2.bf16.msra.mxu0 0
    %1006 = vmatprep.subr.bf16.mxu0 0
    %1007 = vmatpush2.bf16.msra.mxu0 0
    %1008 = vmatprep.subr.bf16.mxu0 0
    %1009 = vmatpush2.bf16.msra.mxu0 0
    %1010 = vmatprep.subr.bf16.mxu0 0
    %1011 = vmatpush2.bf16.msra.mxu0 0
    %1012 = vmatprep.subr.bf16.mxu0 0
    %1013 = vmatpush2.bf16.msra.mxu0 0
    %1014 = vmatprep.mubr.bf16.mxu0 0
    %1015 = vmatmul.mubr.bf16.gmra.mxu0 %v981
    %v1016 = vpop.f32.mrf.mxu0
    %v1017 = vadd.f32 0.0, %v1016
    %v1018 = vpop.f32.mrf.mxu0
    %v1019 = vadd.f32 0.0, %v1018
    %v1020 = vpop.f32.mrf.mxu0
    %v1021 = vpop.f32.mrf.mxu0
    %1022 = vdwg.mxu0
    %1023 = vmatprep.subr.bf16.mxu0 %v834
    %1024 = vmatpush1.bf16.msra.mxu0 %v833
    %1025 = vmatprep.subr.bf16.mxu0 %v830
    %1026 = vmatpush1.bf16.msra.mxu0 %v829
    %1027 = vmatprep.subr.bf16.mxu0 %v826
    %1028 = vmatpush1.bf16.msra.mxu0 %v825
    %1029 = vmatprep.subr.bf16.mxu0 %v822
    %1030 = vmatpush1.bf16.msra.mxu0 %v821
    %1031 = vmatprep.subr.bf16.mxu0 %v818
    %1032 = vmatpush1.bf16.msra.mxu0 %v817
    %1033 = vmatprep.subr.bf16.mxu0 %v814
    %1034 = vmatpush1.bf16.msra.mxu0 %v813
    %1035 = vmatprep.subr.bf16.mxu0 %v810
    %1036 = vmatpush1.bf16.msra.mxu0 %v809
    %1037 = vmatprep.subr.bf16.mxu0 %v806
    %1038 = vmatpush1.bf16.msra.mxu0 %v805
    %1039 = vmatprep.subr.bf16.mxu0 0
    %1040 = vmatpush2.bf16.msra.mxu0 0
    %1041 = vmatprep.subr.bf16.mxu0 0
    %1042 = vmatpush2.bf16.msra.mxu0 0
    %1043 = vmatprep.subr.bf16.mxu0 0
    %1044 = vmatpush2.bf16.msra.mxu0 0
    %1045 = vmatprep.subr.bf16.mxu0 0
    %1046 = vmatpush2.bf16.msra.mxu0 0
    %1047 = vmatprep.subr.bf16.mxu0 0
    %1048 = vmatpush2.bf16.msra.mxu0 0
    %1049 = vmatprep.subr.bf16.mxu0 0
    %1050 = vmatpush2.bf16.msra.mxu0 0
    %1051 = vmatprep.subr.bf16.mxu0 0
    %1052 = vmatpush2.bf16.msra.mxu0 0
    %1053 = vmatprep.subr.bf16.mxu0 0
    %1054 = vmatpush2.bf16.msra.mxu0 0
    %1055 = vmatprep.mubr.bf16.mxu0 0
    %1056 = vmatmul.mubr.bf16.gmra.mxu0 %v981
    %v1057 = vpop.f32.mrf.mxu0
    %v1058 = vadd.f32 0.0, %v1057
    %v1059 = vpop.f32.mrf.mxu0
    %v1060 = vadd.f32 0.0, %v1059
    %v1061 = vpop.f32.mrf.mxu0
    %v1062 = vpop.f32.mrf.mxu0
    %1063 = vdwg.mxu0
    %v1064 = vadd.f32 %v977, %v1017
    %v1065 = vadd.f32 %v978, %v1019
    %v1066 = vadd.f32 %v979, %v1058
    %v1067 = vadd.f32 %v980, %v1060
    %v1068 = vxor.u32 %v1064, 2147483648
    %v1069 = vmul.f32 %v1068, 1.442695
    %v1070 = vpow.pop %v1069
    %v1071 = vadd.f32 %v1070, 1.0
    %v1072 = vrcp.pop %v1071
    %v1073 = vmul.f32 1.0, %v1072
    %v1074 = vxor.u32 %v1065, 2147483648
    %v1075 = vmul.f32 %v1074, 1.442695
    %v1076 = vpow.pop %v1075
    %v1077 = vadd.f32 %v1076, 1.0
    %v1078 = vrcp.pop %v1077
    %v1079 = vmul.f32 1.0, %v1078
    %v1080 = vtanh.pop %v1066
    %v1081 = vxor.u32 %v1067, 2147483648
    %v1082 = vmul.f32 %v1081, 1.442695
    %v1083 = vpow.pop %v1082
    %v1084 = vadd.f32 %v1083, 1.0
    %v1085 = vrcp.pop %v1084
    %v1086 = vmul.f32 1.0, %v1085
    %v1087 = vmul.f32 %v1079, %v974
    %v1088 = vmul.f32 %v1073, %v1080
    %v1089 = vadd.f32 %v1087, %v1088
    %v1090 = vtanh.pop %v1089
    %v1091 = vmul.f32 %v1086, %v1090
    %v1092 = vpack.c.bf16 %v667, %v667
    %v1093 = vld [vmem:[#allocation10] sm:$0xff]
    %v1094 = vld [vmem:[#allocation10 + $0x8] sm:$0xff]
    %v1095 = vld [vmem:[#allocation10 + $0x10] sm:$0xff]
    %v1096 = vld [vmem:[#allocation10 + $0x18] sm:$0xff]
    %v1097 = vld [vmem:[#allocation10 + $0x20] sm:$0xff]
    %v1098 = vld [vmem:[#allocation10 + $0x28] sm:$0xff]
    %v1099 = vld [vmem:[#allocation10 + $0x30] sm:$0xff]
    %v1100 = vld [vmem:[#allocation10 + $0x38] sm:$0xff]
    %v1101 = vld [vmem:[#allocation10 + $0x40] sm:$0xff]
    %v1102 = vld [vmem:[#allocation10 + $0x48] sm:$0xff]
    %v1103 = vld [vmem:[#allocation10 + $0x50] sm:$0xff]
    %v1104 = vld [vmem:[#allocation10 + $0x58] sm:$0xff]
    %v1105 = vld [vmem:[#allocation10 + $0x60] sm:$0xff]
    %v1106 = vld [vmem:[#allocation10 + $0x68] sm:$0xff]
    %v1107 = vld [vmem:[#allocation10 + $0x70] sm:$0xff]
    %v1108 = vld [vmem:[#allocation10 + $0x78] sm:$0xff]
    %v1109 = vld [vmem:[#allocation10 + $0x80] sm:$0xff]
    %v1110 = vld [vmem:[#allocation10 + $0x88] sm:$0xff]
    %v1111 = vld [vmem:[#allocation10 + $0x90] sm:$0xff]
    %v1112 = vld [vmem:[#allocation10 + $0x98] sm:$0xff]
    %v1113 = vld [vmem:[#allocation10 + $0xa0] sm:$0xff]
    %v1114 = vld [vmem:[#allocation10 + $0xa8] sm:$0xff]
    %v1115 = vld [vmem:[#allocation10 + $0xb0] sm:$0xff]
    %v1116 = vld [vmem:[#allocation10 + $0xb8] sm:$0xff]
    %v1117 = vld [vmem:[#allocation10 + $0xc0] sm:$0xff]
    %v1118 = vld [vmem:[#allocation10 + $0xc8] sm:$0xff]
    %v1119 = vld [vmem:[#allocation10 + $0xd0] sm:$0xff]
    %v1120 = vld [vmem:[#allocation10 + $0xd8] sm:$0xff]
    %v1121 = vld [vmem:[#allocation10 + $0xe0] sm:$0xff]
    %v1122 = vld [vmem:[#allocation10 + $0xe8] sm:$0xff]
    %v1123 = vld [vmem:[#allocation10 + $0xf0] sm:$0xff]
    %v1124 = vld [vmem:[#allocation10 + $0xf8] sm:$0xff]
    %v1125 = vld [vmem:[#allocation10 + $0x100] sm:$0xff]
    %v1126 = vld [vmem:[#allocation10 + $0x108] sm:$0xff]
    %v1127 = vld [vmem:[#allocation10 + $0x110] sm:$0xff]
    %v1128 = vld [vmem:[#allocation10 + $0x118] sm:$0xff]
    %v1129 = vld [vmem:[#allocation10 + $0x120] sm:$0xff]
    %v1130 = vld [vmem:[#allocation10 + $0x128] sm:$0xff]
    %v1131 = vld [vmem:[#allocation10 + $0x130] sm:$0xff]
    %v1132 = vld [vmem:[#allocation10 + $0x138] sm:$0xff]
    %v1133 = vld [vmem:[#allocation10 + $0x140] sm:$0xff]
    %v1134 = vld [vmem:[#allocation10 + $0x148] sm:$0xff]
    %v1135 = vld [vmem:[#allocation10 + $0x150] sm:$0xff]
    %v1136 = vld [vmem:[#allocation10 + $0x158] sm:$0xff]
    %v1137 = vld [vmem:[#allocation10 + $0x160] sm:$0xff]
    %v1138 = vld [vmem:[#allocation10 + $0x168] sm:$0xff]
    %v1139 = vld [vmem:[#allocation10 + $0x170] sm:$0xff]
    %v1140 = vld [vmem:[#allocation10 + $0x178] sm:$0xff]
    %v1141 = vld [vmem:[#allocation10 + $0x180] sm:$0xff]
    %v1142 = vld [vmem:[#allocation10 + $0x188] sm:$0xff]
    %v1143 = vld [vmem:[#allocation10 + $0x190] sm:$0xff]
    %v1144 = vld [vmem:[#allocation10 + $0x198] sm:$0xff]
    %v1145 = vld [vmem:[#allocation10 + $0x1a0] sm:$0xff]
    %v1146 = vld [vmem:[#allocation10 + $0x1a8] sm:$0xff]
    %v1147 = vld [vmem:[#allocation10 + $0x1b0] sm:$0xff]
    %v1148 = vld [vmem:[#allocation10 + $0x1b8] sm:$0xff]
    %v1149 = vld [vmem:[#allocation10 + $0x1c0] sm:$0xff]
    %v1150 = vld [vmem:[#allocation10 + $0x1c8] sm:$0xff]
    %v1151 = vld [vmem:[#allocation10 + $0x1d0] sm:$0xff]
    %v1152 = vld [vmem:[#allocation10 + $0x1d8] sm:$0xff]
    %v1153 = vld [vmem:[#allocation10 + $0x1e0] sm:$0xff]
    %v1154 = vld [vmem:[#allocation10 + $0x1e8] sm:$0xff]
    %v1155 = vld [vmem:[#allocation10 + $0x1f0] sm:$0xff]
    %v1156 = vld [vmem:[#allocation10 + $0x1f8] sm:$0xff]
    %v1157 = vld [vmem:[%s6] sm:$0xf]
    %v1159 = vlaneseq
    %v1160 = vshrl.u32 %v1159, 7
    %v1161 = vsub.s32 0, %v1160
    %v1162 = vrot.slane %v1157, %v1161
    %v1163 = vlaneseq
    %v1164 = vshrl.u32 %v1163, 7
    %v1165 = vsub.s32 1, %v1164
    %v1166 = vrot.slane %v1157, %v1165
    %v1167 = vlaneseq
    %v1168 = vshrl.u32 %v1167, 7
    %v1169 = vsub.s32 2, %v1168
    %v1170 = vrot.slane %v1157, %v1169
    %v1171 = vlaneseq
    %v1172 = vshrl.u32 %v1171, 7
    %v1173 = vsub.s32 3, %v1172
    %v1174 = vrot.slane %v1157, %v1173
    %v1243 = vunpack.c.l.b16 %v1093
    %v1244 = vunpack.c.h.b16 %v1093
    %v1245 = vunpack.c.l.b16 %v1094
    %v1246 = vunpack.c.h.b16 %v1094
    %v1247 = vunpack.c.l.b16 %v1095
    %v1248 = vunpack.c.h.b16 %v1095
    %v1249 = vunpack.c.l.b16 %v1096
    %v1250 = vunpack.c.h.b16 %v1096
    %v1251 = vunpack.c.l.b16 %v1097
    %v1252 = vunpack.c.h.b16 %v1097
    %v1253 = vunpack.c.l.b16 %v1098
    %v1254 = vunpack.c.h.b16 %v1098
    %v1255 = vunpack.c.l.b16 %v1099
    %v1256 = vunpack.c.h.b16 %v1099
    %v1257 = vunpack.c.l.b16 %v1100
    %v1258 = vunpack.c.h.b16 %v1100
    %v1259 = vunpack.c.l.b16 %v1101
    %v1260 = vunpack.c.h.b16 %v1101
    %v1261 = vunpack.c.l.b16 %v1102
    %v1262 = vunpack.c.h.b16 %v1102
    %v1263 = vunpack.c.l.b16 %v1103
    %v1264 = vunpack.c.h.b16 %v1103
    %v1265 = vunpack.c.l.b16 %v1104
    %v1266 = vunpack.c.h.b16 %v1104
    %v1267 = vunpack.c.l.b16 %v1105
    %v1268 = vunpack.c.h.b16 %v1105
    %v1269 = vunpack.c.l.b16 %v1106
    %v1270 = vunpack.c.h.b16 %v1106
    %v1271 = vunpack.c.l.b16 %v1107
    %v1272 = vunpack.c.h.b16 %v1107
    %v1273 = vunpack.c.l.b16 %v1108
    %v1274 = vunpack.c.h.b16 %v1108
    %v1275 = vunpack.c.l.b16 %v1109
    %v1276 = vunpack.c.h.b16 %v1109
    %v1277 = vunpack.c.l.b16 %v1110
    %v1278 = vunpack.c.h.b16 %v1110
    %v1279 = vunpack.c.l.b16 %v1111
    %v1280 = vunpack.c.h.b16 %v1111
    %v1281 = vunpack.c.l.b16 %v1112
    %v1282 = vunpack.c.h.b16 %v1112
    %v1283 = vunpack.c.l.b16 %v1113
    %v1284 = vunpack.c.h.b16 %v1113
    %v1285 = vunpack.c.l.b16 %v1114
    %v1286 = vunpack.c.h.b16 %v1114
    %v1287 = vunpack.c.l.b16 %v1115
    %v1288 = vunpack.c.h.b16 %v1115
    %v1289 = vunpack.c.l.b16 %v1116
    %v1290 = vunpack.c.h.b16 %v1116
    %v1291 = vunpack.c.l.b16 %v1117
    %v1292 = vunpack.c.h.b16 %v1117
    %v1293 = vunpack.c.l.b16 %v1118
    %v1294 = vunpack.c.h.b16 %v1118
    %v1295 = vunpack.c.l.b16 %v1119
    %v1296 = vunpack.c.h.b16 %v1119
    %v1297 = vunpack.c.l.b16 %v1120
    %v1298 = vunpack.c.h.b16 %v1120
    %v1299 = vunpack.c.l.b16 %v1121
    %v1300 = vunpack.c.h.b16 %v1121
    %v1301 = vunpack.c.l.b16 %v1122
    %v1302 = vunpack.c.h.b16 %v1122
    %v1303 = vunpack.c.l.b16 %v1123
    %v1304 = vunpack.c.h.b16 %v1123
    %v1305 = vunpack.c.l.b16 %v1124
    %v1306 = vunpack.c.h.b16 %v1124
    %v1307 = vunpack.c.l.b16 %v1125
    %v1308 = vunpack.c.h.b16 %v1125
    %v1309 = vunpack.c.l.b16 %v1126
    %v1310 = vunpack.c.h.b16 %v1126
    %v1311 = vunpack.c.l.b16 %v1127
    %v1312 = vunpack.c.h.b16 %v1127
    %v1313 = vunpack.c.l.b16 %v1128
    %v1314 = vunpack.c.h.b16 %v1128
    %v1315 = vunpack.c.l.b16 %v1129
    %v1316 = vunpack.c.h.b16 %v1129
    %v1317 = vunpack.c.l.b16 %v1130
    %v1318 = vunpack.c.h.b16 %v1130
    %v1319 = vunpack.c.l.b16 %v1131
    %v1320 = vunpack.c.h.b16 %v1131
    %v1321 = vunpack.c.l.b16 %v1132
    %v1322 = vunpack.c.h.b16 %v1132
    %v1323 = vunpack.c.l.b16 %v1133
    %v1324 = vunpack.c.h.b16 %v1133
    %v1325 = vunpack.c.l.b16 %v1134
    %v1326 = vunpack.c.h.b16 %v1134
    %v1327 = vunpack.c.l.b16 %v1135
    %v1328 = vunpack.c.h.b16 %v1135
    %v1329 = vunpack.c.l.b16 %v1136
    %v1330 = vunpack.c.h.b16 %v1136
    %v1331 = vunpack.c.l.b16 %v1137
    %v1332 = vunpack.c.h.b16 %v1137
    %v1333 = vunpack.c.l.b16 %v1138
    %v1334 = vunpack.c.h.b16 %v1138
    %v1335 = vunpack.c.l.b16 %v1139
    %v1336 = vunpack.c.h.b16 %v1139
    %v1337 = vunpack.c.l.b16 %v1140
    %v1338 = vunpack.c.h.b16 %v1140
    %v1339 = vunpack.c.l.b16 %v1141
    %v1340 = vunpack.c.h.b16 %v1141
    %v1341 = vunpack.c.l.b16 %v1142
    %v1342 = vunpack.c.h.b16 %v1142
    %v1343 = vunpack.c.l.b16 %v1143
    %v1344 = vunpack.c.h.b16 %v1143
    %v1345 = vunpack.c.l.b16 %v1144
    %v1346 = vunpack.c.h.b16 %v1144
    %v1347 = vunpack.c.l.b16 %v1145
    %v1348 = vunpack.c.h.b16 %v1145
    %v1349 = vunpack.c.l.b16 %v1146
    %v1350 = vunpack.c.h.b16 %v1146
    %v1351 = vunpack.c.l.b16 %v1147
    %v1352 = vunpack.c.h.b16 %v1147
    %v1353 = vunpack.c.l.b16 %v1148
    %v1354 = vunpack.c.h.b16 %v1148
    %v1355 = vunpack.c.l.b16 %v1149
    %v1356 = vunpack.c.h.b16 %v1149
    %v1357 = vunpack.c.l.b16 %v1150
    %v1358 = vunpack.c.h.b16 %v1150
    %v1359 = vunpack.c.l.b16 %v1151
    %v1360 = vunpack.c.h.b16 %v1151
    %v1361 = vunpack.c.l.b16 %v1152
    %v1362 = vunpack.c.h.b16 %v1152
    %v1363 = vunpack.c.l.b16 %v1153
    %v1364 = vunpack.c.h.b16 %v1153
    %v1365 = vunpack.c.l.b16 %v1154
    %v1366 = vunpack.c.h.b16 %v1154
    %v1367 = vunpack.c.l.b16 %v1155
    %v1368 = vunpack.c.h.b16 %v1155
    %v1369 = vunpack.c.l.b16 %v1156
    %v1370 = vunpack.c.h.b16 %v1156
    %v1371 = vpack.c.b16 %v1247, %v1243
    %v1372 = vpack.c.b16 %v1248, %v1244
    %v1373 = vpack.c.b16 %v1249, %v1245
    %v1374 = vpack.c.b16 %v1250, %v1246
    %v1375 = vpack.c.b16 %v1255, %v1251
    %v1376 = vpack.c.b16 %v1256, %v1252
    %v1377 = vpack.c.b16 %v1257, %v1253
    %v1378 = vpack.c.b16 %v1258, %v1254
    %v1379 = vpack.c.b16 %v1263, %v1259
    %v1380 = vpack.c.b16 %v1264, %v1260
    %v1381 = vpack.c.b16 %v1265, %v1261
    %v1382 = vpack.c.b16 %v1266, %v1262
    %v1383 = vpack.c.b16 %v1271, %v1267
    %v1384 = vpack.c.b16 %v1272, %v1268
    %v1385 = vpack.c.b16 %v1273, %v1269
    %v1386 = vpack.c.b16 %v1274, %v1270
    %v1387 = vpack.c.b16 %v1279, %v1275
    %v1388 = vpack.c.b16 %v1280, %v1276
    %v1389 = vpack.c.b16 %v1281, %v1277
    %v1390 = vpack.c.b16 %v1282, %v1278
    %v1391 = vpack.c.b16 %v1287, %v1283
    %v1392 = vpack.c.b16 %v1288, %v1284
    %v1393 = vpack.c.b16 %v1289, %v1285
    %v1394 = vpack.c.b16 %v1290, %v1286
    %v1395 = vpack.c.b16 %v1295, %v1291
    %v1396 = vpack.c.b16 %v1296, %v1292
    %v1397 = vpack.c.b16 %v1297, %v1293
    %v1398 = vpack.c.b16 %v1298, %v1294
    %v1399 = vpack.c.b16 %v1303, %v1299
    %v1400 = vpack.c.b16 %v1304, %v1300
    %v1401 = vpack.c.b16 %v1305, %v1301
    %v1402 = vpack.c.b16 %v1306, %v1302
    %v1403 = vpack.c.b16 %v1311, %v1307
    %v1404 = vpack.c.b16 %v1312, %v1308
    %v1405 = vpack.c.b16 %v1313, %v1309
    %v1406 = vpack.c.b16 %v1314, %v1310
    %v1407 = vpack.c.b16 %v1319, %v1315
    %v1408 = vpack.c.b16 %v1320, %v1316
    %v1409 = vpack.c.b16 %v1321, %v1317
    %v1410 = vpack.c.b16 %v1322, %v1318
    %v1411 = vpack.c.b16 %v1327, %v1323
    %v1412 = vpack.c.b16 %v1328, %v1324
    %v1413 = vpack.c.b16 %v1329, %v1325
    %v1414 = vpack.c.b16 %v1330, %v1326
    %v1415 = vpack.c.b16 %v1335, %v1331
    %v1416 = vpack.c.b16 %v1336, %v1332
    %v1417 = vpack.c.b16 %v1337, %v1333
    %v1418 = vpack.c.b16 %v1338, %v1334
    %v1419 = vpack.c.b16 %v1343, %v1339
    %v1420 = vpack.c.b16 %v1344, %v1340
    %v1421 = vpack.c.b16 %v1345, %v1341
    %v1422 = vpack.c.b16 %v1346, %v1342
    %v1423 = vpack.c.b16 %v1351, %v1347
    %v1424 = vpack.c.b16 %v1352, %v1348
    %v1425 = vpack.c.b16 %v1353, %v1349
    %v1426 = vpack.c.b16 %v1354, %v1350
    %v1427 = vpack.c.b16 %v1359, %v1355
    %v1428 = vpack.c.b16 %v1360, %v1356
    %v1429 = vpack.c.b16 %v1361, %v1357
    %v1430 = vpack.c.b16 %v1362, %v1358
    %v1431 = vpack.c.b16 %v1367, %v1363
    %v1432 = vpack.c.b16 %v1368, %v1364
    %v1433 = vpack.c.b16 %v1369, %v1365
    %v1434 = vpack.c.b16 %v1370, %v1366
    %1499 = vmatprep.subr.bf16.mxu0 %v1400
    %1500 = vmatpush1.bf16.msra.mxu0 %v1399
    %1501 = vmatprep.subr.bf16.mxu0 %v1396
    %1502 = vmatpush1.bf16.msra.mxu0 %v1395
    %1503 = vmatprep.subr.bf16.mxu0 %v1392
    %1504 = vmatpush1.bf16.msra.mxu0 %v1391
    %1505 = vmatprep.subr.bf16.mxu0 %v1388
    %1506 = vmatpush1.bf16.msra.mxu0 %v1387
    %1507 = vmatprep.subr.bf16.mxu0 %v1384
    %1508 = vmatpush1.bf16.msra.mxu0 %v1383
    %1509 = vmatprep.subr.bf16.mxu0 %v1380
    %1510 = vmatpush1.bf16.msra.mxu0 %v1379
    %1511 = vmatprep.subr.bf16.mxu0 %v1376
    %1512 = vmatpush1.bf16.msra.mxu0 %v1375
    %1513 = vmatprep.subr.bf16.mxu0 %v1372
    %1514 = vmatpush1.bf16.msra.mxu0 %v1371
    %1515 = vmatprep.subr.bf16.mxu0 %v1432
    %1516 = vmatpush2.bf16.msra.mxu0 %v1431
    %1517 = vmatprep.subr.bf16.mxu0 %v1428
    %1518 = vmatpush2.bf16.msra.mxu0 %v1427
    %1519 = vmatprep.subr.bf16.mxu0 %v1424
    %1520 = vmatpush2.bf16.msra.mxu0 %v1423
    %1521 = vmatprep.subr.bf16.mxu0 %v1420
    %1522 = vmatpush2.bf16.msra.mxu0 %v1419
    %1523 = vmatprep.subr.bf16.mxu0 %v1416
    %1524 = vmatpush2.bf16.msra.mxu0 %v1415
    %1525 = vmatprep.subr.bf16.mxu0 %v1412
    %1526 = vmatpush2.bf16.msra.mxu0 %v1411
    %1527 = vmatprep.subr.bf16.mxu0 %v1408
    %1528 = vmatpush2.bf16.msra.mxu0 %v1407
    %1529 = vmatprep.subr.bf16.mxu0 %v1404
    %1530 = vmatpush2.bf16.msra.mxu0 %v1403
    %1531 = vmatprep.mubr.bf16.mxu0 %v1092
    %1532 = vmatmul.mubr.bf16.gmra.mxu0 %v981
    %v1533 = vpop.f32.mrf.mxu0
    %v1534 = vadd.f32 %v1162, %v1533
    %v1535 = vpop.f32.mrf.mxu0
    %v1536 = vadd.f32 %v1166, %v1535
    %v1537 = vpop.f32.mrf.mxu0
    %v1538 = vpop.f32.mrf.mxu0
    %1539 = vdwg.mxu0
    %1540 = vmatprep.subr.bf16.mxu0 %v1402
    %1541 = vmatpush1.bf16.msra.mxu0 %v1401
    %1542 = vmatprep.subr.bf16.mxu0 %v1398
    %1543 = vmatpush1.bf16.msra.mxu0 %v1397
    %1544 = vmatprep.subr.bf16.mxu0 %v1394
    %1545 = vmatpush1.bf16.msra.mxu0 %v1393
    %1546 = vmatprep.subr.bf16.mxu0 %v1390
    %1547 = vmatpush1.bf16.msra.mxu0 %v1389
    %1548 = vmatprep.subr.bf16.mxu0 %v1386
    %1549 = vmatpush1.bf16.msra.mxu0 %v1385
    %1550 = vmatprep.subr.bf16.mxu0 %v1382
    %1551 = vmatpush1.bf16.msra.mxu0 %v1381
    %1552 = vmatprep.subr.bf16.mxu0 %v1378
    %1553 = vmatpush1.bf16.msra.mxu0 %v1377
    %1554 = vmatprep.subr.bf16.mxu0 %v1374
    %1555 = vmatpush1.bf16.msra.mxu0 %v1373
    %1556 = vmatprep.subr.bf16.mxu0 %v1434
    %1557 = vmatpush2.bf16.msra.mxu0 %v1433
    %1558 = vmatprep.subr.bf16.mxu0 %v1430
    %1559 = vmatpush2.bf16.msra.mxu0 %v1429
    %1560 = vmatprep.subr.bf16.mxu0 %v1426
    %1561 = vmatpush2.bf16.msra.mxu0 %v1425
    %1562 = vmatprep.subr.bf16.mxu0 %v1422
    %1563 = vmatpush2.bf16.msra.mxu0 %v1421
    %1564 = vmatprep.subr.bf16.mxu0 %v1418
    %1565 = vmatpush2.bf16.msra.mxu0 %v1417
    %1566 = vmatprep.subr.bf16.mxu0 %v1414
    %1567 = vmatpush2.bf16.msra.mxu0 %v1413
    %1568 = vmatprep.subr.bf16.mxu0 %v1410
    %1569 = vmatpush2.bf16.msra.mxu0 %v1409
    %1570 = vmatprep.subr.bf16.mxu0 %v1406
    %1571 = vmatpush2.bf16.msra.mxu0 %v1405
    %1572 = vmatprep.mubr.bf16.mxu0 %v1092
    %1573 = vmatmul.mubr.bf16.gmra.mxu0 %v981
    %v1574 = vpop.f32.mrf.mxu0
    %v1575 = vadd.f32 %v1170, %v1574
    %v1576 = vpop.f32.mrf.mxu0
    %v1577 = vadd.f32 %v1174, %v1576
    %v1578 = vpop.f32.mrf.mxu0
    %v1579 = vpop.f32.mrf.mxu0
    %1580 = vdwg.mxu0
    %v1581 = vxor.u32 %v1534, 2147483648
    %v1582 = vmul.f32 %v1581, 1.442695
    %v1583 = vpow.pop %v1582
    %v1584 = vadd.f32 %v1583, 1.0
    %v1585 = vrcp.pop %v1584
    %v1586 = vmul.f32 1.0, %v1585
    %v1587 = vxor.u32 %v1536, 2147483648
    %v1588 = vmul.f32 %v1587, 1.442695
    %v1589 = vpow.pop %v1588
    %v1590 = vadd.f32 %v1589, 1.0
    %v1591 = vrcp.pop %v1590
    %v1592 = vmul.f32 1.0, %v1591
    %v1593 = vtanh.pop %v1575
    %v1594 = vxor.u32 %v1577, 2147483648
    %v1595 = vmul.f32 %v1594, 1.442695
    %v1596 = vpow.pop %v1595
    %v1597 = vadd.f32 %v1596, 1.0
    %v1598 = vrcp.pop %v1597
    %v1599 = vmul.f32 1.0, %v1598
    %v1600 = vmul.f32 %v1592, %v669
    %v1601 = vmul.f32 %v1586, %v1593
    %v1602 = vadd.f32 %v1600, %v1601
    %v1603 = vtanh.pop %v1602
    %v1604 = vmul.f32 %v1599, %v1603
    %v1605 = vld [vmem:[#allocation3 + $0x40] sm:$0xff]
    %v1606 = vld [vmem:[#allocation3 + $0x48] sm:$0xff]
    %v1607 = vld [vmem:[#allocation3 + $0x50] sm:$0xff]
    %v1608 = vld [vmem:[#allocation3 + $0x58] sm:$0xff]
    %v1609 = vpack.c.bf16 %v1091, %v1091
    %1610 = vmatprep.subr.bf16.mxu0 %v832
    %1611 = vmatpush1.bf16.msra.mxu0 %v831
    %1612 = vmatprep.subr.bf16.mxu0 %v828
    %1613 = vmatpush1.bf16.msra.mxu0 %v827
    %1614 = vmatprep.subr.bf16.mxu0 %v824
    %1615 = vmatpush1.bf16.msra.mxu0 %v823
    %1616 = vmatprep.subr.bf16.mxu0 %v820
    %1617 = vmatpush1.bf16.msra.mxu0 %v819
    %1618 = vmatprep.subr.bf16.mxu0 %v816
    %1619 = vmatpush1.bf16.msra.mxu0 %v815
    %1620 = vmatprep.subr.bf16.mxu0 %v812
    %1621 = vmatpush1.bf16.msra.mxu0 %v811
    %1622 = vmatprep.subr.bf16.mxu0 %v808
    %1623 = vmatpush1.bf16.msra.mxu0 %v807
    %1624 = vmatprep.subr.bf16.mxu0 %v804
    %1625 = vmatpush1.bf16.msra.mxu0 %v803
    %1626 = vmatprep.subr.bf16.mxu0 0
    %1627 = vmatpush2.bf16.msra.mxu0 0
    %1628 = vmatprep.subr.bf16.mxu0 0
    %1629 = vmatpush2.bf16.msra.mxu0 0
    %1630 = vmatprep.subr.bf16.mxu0 0
    %1631 = vmatpush2.bf16.msra.mxu0 0
    %1632 = vmatprep.subr.bf16.mxu0 0
    %1633 = vmatpush2.bf16.msra.mxu0 0
    %1634 = vmatprep.subr.bf16.mxu0 0
    %1635 = vmatpush2.bf16.msra.mxu0 0
    %1636 = vmatprep.subr.bf16.mxu0 0
    %1637 = vmatpush2.bf16.msra.mxu0 0
    %1638 = vmatprep.subr.bf16.mxu0 0
    %1639 = vmatpush2.bf16.msra.mxu0 0
    %1640 = vmatprep.subr.bf16.mxu0 0
    %1641 = vmatpush2.bf16.msra.mxu0 0
    %1642 = vmatprep.mubr.bf16.mxu0 0
    %1643 = vmatmul.mubr.bf16.gmra.mxu0 %v1609
    %v1644 = vpop.f32.mrf.mxu0
    %v1645 = vadd.f32 0.0, %v1644
    %v1646 = vpop.f32.mrf.mxu0
    %v1647 = vadd.f32 0.0, %v1646
    %v1648 = vpop.f32.mrf.mxu0
    %v1649 = vpop.f32.mrf.mxu0
    %1650 = vdwg.mxu0
    %1651 = vmatprep.subr.bf16.mxu0 %v834
    %1652 = vmatpush1.bf16.msra.mxu0 %v833
    %1653 = vmatprep.subr.bf16.mxu0 %v830
    %1654 = vmatpush1.bf16.msra.mxu0 %v829
    %1655 = vmatprep.subr.bf16.mxu0 %v826
    %1656 = vmatpush1.bf16.msra.mxu0 %v825
    %1657 = vmatprep.subr.bf16.mxu0 %v822
    %1658 = vmatpush1.bf16.msra.mxu0 %v821
    %1659 = vmatprep.subr.bf16.mxu0 %v818
    %1660 = vmatpush1.bf16.msra.mxu0 %v817
    %1661 = vmatprep.subr.bf16.mxu0 %v814
    %1662 = vmatpush1.bf16.msra.mxu0 %v813
    %1663 = vmatprep.subr.bf16.mxu0 %v810
    %1664 = vmatpush1.bf16.msra.mxu0 %v809
    %1665 = vmatprep.subr.bf16.mxu0 %v806
    %1666 = vmatpush1.bf16.msra.mxu0 %v805
    %1667 = vmatprep.subr.bf16.mxu0 0
    %1668 = vmatpush2.bf16.msra.mxu0 0
    %1669 = vmatprep.subr.bf16.mxu0 0
    %1670 = vmatpush2.bf16.msra.mxu0 0
    %1671 = vmatprep.subr.bf16.mxu0 0
    %1672 = vmatpush2.bf16.msra.mxu0 0
    %1673 = vmatprep.subr.bf16.mxu0 0
    %1674 = vmatpush2.bf16.msra.mxu0 0
    %1675 = vmatprep.subr.bf16.mxu0 0
    %1676 = vmatpush2.bf16.msra.mxu0 0
    %1677 = vmatprep.subr.bf16.mxu0 0
    %1678 = vmatpush2.bf16.msra.mxu0 0
    %1679 = vmatprep.subr.bf16.mxu0 0
    %1680 = vmatpush2.bf16.msra.mxu0 0
    %1681 = vmatprep.subr.bf16.mxu0 0
    %1682 = vmatpush2.bf16.msra.mxu0 0
    %1683 = vmatprep.mubr.bf16.mxu0 0
    %1684 = vmatmul.mubr.bf16.gmra.mxu0 %v1609
    %v1685 = vpop.f32.mrf.mxu0
    %v1686 = vadd.f32 0.0, %v1685
    %v1687 = vpop.f32.mrf.mxu0
    %v1688 = vadd.f32 0.0, %v1687
    %v1689 = vpop.f32.mrf.mxu0
    %v1690 = vpop.f32.mrf.mxu0
    %1691 = vdwg.mxu0
    %v1692 = vadd.f32 %v1605, %v1645
    %v1693 = vadd.f32 %v1606, %v1647
    %v1694 = vadd.f32 %v1607, %v1686
    %v1695 = vadd.f32 %v1608, %v1688
    %v1696 = vxor.u32 %v1692, 2147483648
    %v1697 = vmul.f32 %v1696, 1.442695
    %v1698 = vpow.pop %v1697
    %v1699 = vadd.f32 %v1698, 1.0
    %v1700 = vrcp.pop %v1699
    %v1701 = vmul.f32 1.0, %v1700
    %v1702 = vxor.u32 %v1693, 2147483648
    %v1703 = vmul.f32 %v1702, 1.442695
    %v1704 = vpow.pop %v1703
    %v1705 = vadd.f32 %v1704, 1.0
    %v1706 = vrcp.pop %v1705
    %v1707 = vmul.f32 1.0, %v1706
    %v1708 = vtanh.pop %v1694
    %v1709 = vxor.u32 %v1695, 2147483648
    %v1710 = vmul.f32 %v1709, 1.442695
    %v1711 = vpow.pop %v1710
    %v1712 = vadd.f32 %v1711, 1.0
    %v1713 = vrcp.pop %v1712
    %v1714 = vmul.f32 1.0, %v1713
    %v1715 = vmul.f32 %v1707, %v1089
    %v1716 = vmul.f32 %v1701, %v1708
    %v1717 = vadd.f32 %v1715, %v1716
    %v1718 = vtanh.pop %v1717
    %v1719 = vmul.f32 %v1714, %v1718
    %v1720 = vpack.c.bf16 %v1604, %v1604
    %1721 = vmatprep.subr.bf16.mxu0 %v1400
    %1722 = vmatpush1.bf16.msra.mxu0 %v1399
    %1723 = vmatprep.subr.bf16.mxu0 %v1396
    %1724 = vmatpush1.bf16.msra.mxu0 %v1395
    %1725 = vmatprep.subr.bf16.mxu0 %v1392
    %1726 = vmatpush1.bf16.msra.mxu0 %v1391
    %1727 = vmatprep.subr.bf16.mxu0 %v1388
    %1728 = vmatpush1.bf16.msra.mxu0 %v1387
    %1729 = vmatprep.subr.bf16.mxu0 %v1384
    %1730 = vmatpush1.bf16.msra.mxu0 %v1383
    %1731 = vmatprep.subr.bf16.mxu0 %v1380
    %1732 = vmatpush1.bf16.msra.mxu0 %v1379
    %1733 = vmatprep.subr.bf16.mxu0 %v1376
    %1734 = vmatpush1.bf16.msra.mxu0 %v1375
    %1735 = vmatprep.subr.bf16.mxu0 %v1372
    %1736 = vmatpush1.bf16.msra.mxu0 %v1371
    %1737 = vmatprep.subr.bf16.mxu0 %v1432
    %1738 = vmatpush2.bf16.msra.mxu0 %v1431
    %1739 = vmatprep.subr.bf16.mxu0 %v1428
    %1740 = vmatpush2.bf16.msra.mxu0 %v1427
    %1741 = vmatprep.subr.bf16.mxu0 %v1424
    %1742 = vmatpush2.bf16.msra.mxu0 %v1423
    %1743 = vmatprep.subr.bf16.mxu0 %v1420
    %1744 = vmatpush2.bf16.msra.mxu0 %v1419
    %1745 = vmatprep.subr.bf16.mxu0 %v1416
    %1746 = vmatpush2.bf16.msra.mxu0 %v1415
    %1747 = vmatprep.subr.bf16.mxu0 %v1412
    %1748 = vmatpush2.bf16.msra.mxu0 %v1411
    %1749 = vmatprep.subr.bf16.mxu0 %v1408
    %1750 = vmatpush2.bf16.msra.mxu0 %v1407
    %1751 = vmatprep.subr.bf16.mxu0 %v1404
    %1752 = vmatpush2.bf16.msra.mxu0 %v1403
    %1753 = vmatprep.mubr.bf16.mxu0 %v1720
    %1754 = vmatmul.mubr.bf16.gmra.mxu0 %v1609
    %v1755 = vpop.f32.mrf.mxu0
    %v1756 = vadd.f32 %v1162, %v1755
    %v1757 = vpop.f32.mrf.mxu0
    %v1758 = vadd.f32 %v1166, %v1757
    %v1759 = vpop.f32.mrf.mxu0
    %v1760 = vpop.f32.mrf.mxu0
    %1761 = vdwg.mxu0
    %1762 = vmatprep.subr.bf16.mxu0 %v1402
    %1763 = vmatpush1.bf16.msra.mxu0 %v1401
    %1764 = vmatprep.subr.bf16.mxu0 %v1398
    %1765 = vmatpush1.bf16.msra.mxu0 %v1397
    %1766 = vmatprep.subr.bf16.mxu0 %v1394
    %1767 = vmatpush1.bf16.msra.mxu0 %v1393
    %1768 = vmatprep.subr.bf16.mxu0 %v1390
    %1769 = vmatpush1.bf16.msra.mxu0 %v1389
    %1770 = vmatprep.subr.bf16.mxu0 %v1386
    %1771 = vmatpush1.bf16.msra.mxu0 %v1385
    %1772 = vmatprep.subr.bf16.mxu0 %v1382
    %1773 = vmatpush1.bf16.msra.mxu0 %v1381
    %1774 = vmatprep.subr.bf16.mxu0 %v1378
    %1775 = vmatpush1.bf16.msra.mxu0 %v1377
    %1776 = vmatprep.subr.bf16.mxu0 %v1374
    %1777 = vmatpush1.bf16.msra.mxu0 %v1373
    %1778 = vmatprep.subr.bf16.mxu0 %v1434
    %1779 = vmatpush2.bf16.msra.mxu0 %v1433
    %1780 = vmatprep.subr.bf16.mxu0 %v1430
    %1781 = vmatpush2.bf16.msra.mxu0 %v1429
    %1782 = vmatprep.subr.bf16.mxu0 %v1426
    %1783 = vmatpush2.bf16.msra.mxu0 %v1425
    %1784 = vmatprep.subr.bf16.mxu0 %v1422
    %1785 = vmatpush2.bf16.msra.mxu0 %v1421
    %1786 = vmatprep.subr.bf16.mxu0 %v1418
    %1787 = vmatpush2.bf16.msra.mxu0 %v1417
    %1788 = vmatprep.subr.bf16.mxu0 %v1414
    %1789 = vmatpush2.bf16.msra.mxu0 %v1413
    %1790 = vmatprep.subr.bf16.mxu0 %v1410
    %1791 = vmatpush2.bf16.msra.mxu0 %v1409
    %1792 = vmatprep.subr.bf16.mxu0 %v1406
    %1793 = vmatpush2.bf16.msra.mxu0 %v1405
    %1794 = vmatprep.mubr.bf16.mxu0 %v1720
    %1795 = vmatmul.mubr.bf16.gmra.mxu0 %v1609
    %v1796 = vpop.f32.mrf.mxu0
    %v1797 = vadd.f32 %v1170, %v1796
    %v1798 = vpop.f32.mrf.mxu0
    %v1799 = vadd.f32 %v1174, %v1798
    %v1800 = vpop.f32.mrf.mxu0
    %v1801 = vpop.f32.mrf.mxu0
    %1802 = vdwg.mxu0
    %v1803 = vxor.u32 %v1756, 2147483648
    %v1804 = vmul.f32 %v1803, 1.442695
    %v1805 = vpow.pop %v1804
    %v1806 = vadd.f32 %v1805, 1.0
    %v1807 = vrcp.pop %v1806
    %v1808 = vmul.f32 1.0, %v1807
    %v1809 = vxor.u32 %v1758, 2147483648
    %v1810 = vmul.f32 %v1809, 1.442695
    %v1811 = vpow.pop %v1810
    %v1812 = vadd.f32 %v1811, 1.0
    %v1813 = vrcp.pop %v1812
    %v1814 = vmul.f32 1.0, %v1813
    %v1815 = vtanh.pop %v1797
    %v1816 = vxor.u32 %v1799, 2147483648
    %v1817 = vmul.f32 %v1816, 1.442695
    %v1818 = vpow.pop %v1817
    %v1819 = vadd.f32 %v1818, 1.0
    %v1820 = vrcp.pop %v1819
    %v1821 = vmul.f32 1.0, %v1820
    %v1822 = vmul.f32 %v1814, %v1602
    %v1823 = vmul.f32 %v1808, %v1815
    %v1824 = vadd.f32 %v1822, %v1823
    %v1825 = vtanh.pop %v1824
    %v1826 = vmul.f32 %v1821, %v1825
    %v1827 = vld [vmem:[#allocation3 + $0x60] sm:$0xff]
    %v1828 = vld [vmem:[#allocation3 + $0x68] sm:$0xff]
    %v1829 = vld [vmem:[#allocation3 + $0x70] sm:$0xff]
    %v1830 = vld [vmem:[#allocation3 + $0x78] sm:$0xff]
    %v1831 = vpack.c.bf16 %v1719, %v1719
    %1832 = vmatprep.subr.bf16.mxu0 %v832
    %1833 = vmatpush1.bf16.msra.mxu0 %v831
    %1834 = vmatprep.subr.bf16.mxu0 %v828
    %1835 = vmatpush1.bf16.msra.mxu0 %v827
    %1836 = vmatprep.subr.bf16.mxu0 %v824
    %1837 = vmatpush1.bf16.msra.mxu0 %v823
    %1838 = vmatprep.subr.bf16.mxu0 %v820
    %1839 = vmatpush1.bf16.msra.mxu0 %v819
    %1840 = vmatprep.subr.bf16.mxu0 %v816
    %1841 = vmatpush1.bf16.msra.mxu0 %v815
    %1842 = vmatprep.subr.bf16.mxu0 %v812
    %1843 = vmatpush1.bf16.msra.mxu0 %v811
    %1844 = vmatprep.subr.bf16.mxu0 %v808
    %1845 = vmatpush1.bf16.msra.mxu0 %v807
    %1846 = vmatprep.subr.bf16.mxu0 %v804
    %1847 = vmatpush1.bf16.msra.mxu0 %v803
    %1848 = vmatprep.subr.bf16.mxu0 0
    %1849 = vmatpush2.bf16.msra.mxu0 0
    %1850 = vmatprep.subr.bf16.mxu0 0
    %1851 = vmatpush2.bf16.msra.mxu0 0
    %1852 = vmatprep.subr.bf16.mxu0 0
    %1853 = vmatpush2.bf16.msra.mxu0 0
    %1854 = vmatprep.subr.bf16.mxu0 0
    %1855 = vmatpush2.bf16.msra.mxu0 0
    %1856 = vmatprep.subr.bf16.mxu0 0
    %1857 = vmatpush2.bf16.msra.mxu0 0
    %1858 = vmatprep.subr.bf16.mxu0 0
    %1859 = vmatpush2.bf16.msra.mxu0 0
    %1860 = vmatprep.subr.bf16.mxu0 0
    %1861 = vmatpush2.bf16.msra.mxu0 0
    %1862 = vmatprep.subr.bf16.mxu0 0
    %1863 = vmatpush2.bf16.msra.mxu0 0
    %1864 = vmatprep.mubr.bf16.mxu0 0
    %1865 = vmatmul.mubr.bf16.gmra.mxu0 %v1831
    %v1866 = vpop.f32.mrf.mxu0
    %v1867 = vadd.f32 0.0, %v1866
    %v1868 = vpop.f32.mrf.mxu0
    %v1869 = vadd.f32 0.0, %v1868
    %v1870 = vpop.f32.mrf.mxu0
    %v1871 = vpop.f32.mrf.mxu0
    %1872 = vdwg.mxu0
    %1873 = vmatprep.subr.bf16.mxu0 %v834
    %1874 = vmatpush1.bf16.msra.mxu0 %v833
    %1875 = vmatprep.subr.bf16.mxu0 %v830
    %1876 = vmatpush1.bf16.msra.mxu0 %v829
    %1877 = vmatprep.subr.bf16.mxu0 %v826
    %1878 = vmatpush1.bf16.msra.mxu0 %v825
    %1879 = vmatprep.subr.bf16.mxu0 %v822
    %1880 = vmatpush1.bf16.msra.mxu0 %v821
    %1881 = vmatprep.subr.bf16.mxu0 %v818
    %1882 = vmatpush1.bf16.msra.mxu0 %v817
    %1883 = vmatprep.subr.bf16.mxu0 %v814
    %1884 = vmatpush1.bf16.msra.mxu0 %v813
    %1885 = vmatprep.subr.bf16.mxu0 %v810
    %1886 = vmatpush1.bf16.msra.mxu0 %v809
    %1887 = vmatprep.subr.bf16.mxu0 %v806
    %1888 = vmatpush1.bf16.msra.mxu0 %v805
    %1889 = vmatprep.subr.bf16.mxu0 0
    %1890 = vmatpush2.bf16.msra.mxu0 0
    %1891 = vmatprep.subr.bf16.mxu0 0
    %1892 = vmatpush2.bf16.msra.mxu0 0
    %1893 = vmatprep.subr.bf16.mxu0 0
    %1894 = vmatpush2.bf16.msra.mxu0 0
    %1895 = vmatprep.subr.bf16.mxu0 0
    %1896 = vmatpush2.bf16.msra.mxu0 0
    %1897 = vmatprep.subr.bf16.mxu0 0
    %1898 = vmatpush2.bf16.msra.mxu0 0
    %1899 = vmatprep.subr.bf16.mxu0 0
    %1900 = vmatpush2.bf16.msra.mxu0 0
    %1901 = vmatprep.subr.bf16.mxu0 0
    %1902 = vmatpush2.bf16.msra.mxu0 0
    %1903 = vmatprep.subr.bf16.mxu0 0
    %1904 = vmatpush2.bf16.msra.mxu0 0
    %1905 = vmatprep.mubr.bf16.mxu0 0
    %1906 = vmatmul.mubr.bf16.gmra.mxu0 %v1831
    %v1907 = vpop.f32.mrf.mxu0
    %v1908 = vadd.f32 0.0, %v1907
    %v1909 = vpop.f32.mrf.mxu0
    %v1910 = vadd.f32 0.0, %v1909
    %v1911 = vpop.f32.mrf.mxu0
    %v1912 = vpop.f32.mrf.mxu0
    %1913 = vdwg.mxu0
    %v1914 = vadd.f32 %v1827, %v1867
    %v1915 = vadd.f32 %v1828, %v1869
    %v1916 = vadd.f32 %v1829, %v1908
    %v1917 = vadd.f32 %v1830, %v1910
    %v1918 = vxor.u32 %v1914, 2147483648
    %v1919 = vmul.f32 %v1918, 1.442695
    %v1920 = vpow.pop %v1919
    %v1921 = vadd.f32 %v1920, 1.0
    %v1922 = vrcp.pop %v1921
    %v1923 = vmul.f32 1.0, %v1922
    %v1924 = vxor.u32 %v1915, 2147483648
    %v1925 = vmul.f32 %v1924, 1.442695
    %v1926 = vpow.pop %v1925
    %v1927 = vadd.f32 %v1926, 1.0
    %v1928 = vrcp.pop %v1927
    %v1929 = vmul.f32 1.0, %v1928
    %v1930 = vtanh.pop %v1916
    %v1931 = vxor.u32 %v1917, 2147483648
    %v1932 = vmul.f32 %v1931, 1.442695
    %v1933 = vpow.pop %v1932
    %v1934 = vadd.f32 %v1933, 1.0
    %v1935 = vrcp.pop %v1934
    %v1936 = vmul.f32 1.0, %v1935
    %v1937 = vmul.f32 %v1929, %v1717
    %v1938 = vmul.f32 %v1923, %v1930
    %v1939 = vadd.f32 %v1937, %v1938
    %v1940 = vtanh.pop %v1939
    %v1941 = vmul.f32 %v1936, %v1940
    %v1942 = vpack.c.bf16 %v1826, %v1826
    %1943 = vmatprep.subr.bf16.mxu0 %v1400
    %1944 = vmatpush1.bf16.msra.mxu0 %v1399
    %1945 = vmatprep.subr.bf16.mxu0 %v1396
    %1946 = vmatpush1.bf16.msra.mxu0 %v1395
    %1947 = vmatprep.subr.bf16.mxu0 %v1392
    %1948 = vmatpush1.bf16.msra.mxu0 %v1391
    %1949 = vmatprep.subr.bf16.mxu0 %v1388
    %1950 = vmatpush1.bf16.msra.mxu0 %v1387
    %1951 = vmatprep.subr.bf16.mxu0 %v1384
    %1952 = vmatpush1.bf16.msra.mxu0 %v1383
    %1953 = vmatprep.subr.bf16.mxu0 %v1380
    %1954 = vmatpush1.bf16.msra.mxu0 %v1379
    %1955 = vmatprep.subr.bf16.mxu0 %v1376
    %1956 = vmatpush1.bf16.msra.mxu0 %v1375
    %1957 = vmatprep.subr.bf16.mxu0 %v1372
    %1958 = vmatpush1.bf16.msra.mxu0 %v1371
    %1959 = vmatprep.subr.bf16.mxu0 %v1432
    %1960 = vmatpush2.bf16.msra.mxu0 %v1431
    %1961 = vmatprep.subr.bf16.mxu0 %v1428
    %1962 = vmatpush2.bf16.msra.mxu0 %v1427
    %1963 = vmatprep.subr.bf16.mxu0 %v1424
    %1964 = vmatpush2.bf16.msra.mxu0 %v1423
    %1965 = vmatprep.subr.bf16.mxu0 %v1420
    %1966 = vmatpush2.bf16.msra.mxu0 %v1419
    %1967 = vmatprep.subr.bf16.mxu0 %v1416
    %1968 = vmatpush2.bf16.msra.mxu0 %v1415
    %1969 = vmatprep.subr.bf16.mxu0 %v1412
    %1970 = vmatpush2.bf16.msra.mxu0 %v1411
    %1971 = vmatprep.subr.bf16.mxu0 %v1408
    %1972 = vmatpush2.bf16.msra.mxu0 %v1407
    %1973 = vmatprep.subr.bf16.mxu0 %v1404
    %1974 = vmatpush2.bf16.msra.mxu0 %v1403
    %1975 = vmatprep.mubr.bf16.mxu0 %v1942
    %1976 = vmatmul.mubr.bf16.gmra.mxu0 %v1831
    %v1977 = vpop.f32.mrf.mxu0
    %v1978 = vadd.f32 %v1162, %v1977
    %v1979 = vpop.f32.mrf.mxu0
    %v1980 = vadd.f32 %v1166, %v1979
    %v1981 = vpop.f32.mrf.mxu0
    %v1982 = vpop.f32.mrf.mxu0
    %1983 = vdwg.mxu0
    %1984 = vmatprep.subr.bf16.mxu0 %v1402
    %1985 = vmatpush1.bf16.msra.mxu0 %v1401
    %1986 = vmatprep.subr.bf16.mxu0 %v1398
    %1987 = vmatpush1.bf16.msra.mxu0 %v1397
    %1988 = vmatprep.subr.bf16.mxu0 %v1394
    %1989 = vmatpush1.bf16.msra.mxu0 %v1393
    %1990 = vmatprep.subr.bf16.mxu0 %v1390
    %1991 = vmatpush1.bf16.msra.mxu0 %v1389
    %1992 = vmatprep.subr.bf16.mxu0 %v1386
    %1993 = vmatpush1.bf16.msra.mxu0 %v1385
    %1994 = vmatprep.subr.bf16.mxu0 %v1382
    %1995 = vmatpush1.bf16.msra.mxu0 %v1381
    %1996 = vmatprep.subr.bf16.mxu0 %v1378
    %1997 = vmatpush1.bf16.msra.mxu0 %v1377
    %1998 = vmatprep.subr.bf16.mxu0 %v1374
    %1999 = vmatpush1.bf16.msra.mxu0 %v1373
    %2000 = vmatprep.subr.bf16.mxu0 %v1434
    %2001 = vmatpush2.bf16.msra.mxu0 %v1433
    %2002 = vmatprep.subr.bf16.mxu0 %v1430
    %2003 = vmatpush2.bf16.msra.mxu0 %v1429
    %2004 = vmatprep.subr.bf16.mxu0 %v1426
    %2005 = vmatpush2.bf16.msra.mxu0 %v1425
    %2006 = vmatprep.subr.bf16.mxu0 %v1422
    %2007 = vmatpush2.bf16.msra.mxu0 %v1421
    %2008 = vmatprep.subr.bf16.mxu0 %v1418
    %2009 = vmatpush2.bf16.msra.mxu0 %v1417
    %2010 = vmatprep.subr.bf16.mxu0 %v1414
    %2011 = vmatpush2.bf16.msra.mxu0 %v1413
    %2012 = vmatprep.subr.bf16.mxu0 %v1410
    %2013 = vmatpush2.bf16.msra.mxu0 %v1409
    %2014 = vmatprep.subr.bf16.mxu0 %v1406
    %2015 = vmatpush2.bf16.msra.mxu0 %v1405
    %2016 = vmatprep.mubr.bf16.mxu0 %v1942
    %2017 = vmatmul.mubr.bf16.gmra.mxu0 %v1831
    %v2018 = vpop.f32.mrf.mxu0
    %v2019 = vadd.f32 %v1170, %v2018
    %v2020 = vpop.f32.mrf.mxu0
    %v2021 = vadd.f32 %v1174, %v2020
    %v2022 = vpop.f32.mrf.mxu0
    %v2023 = vpop.f32.mrf.mxu0
    %2024 = vdwg.mxu0
    %v2025 = vxor.u32 %v1978, 2147483648
    %v2026 = vmul.f32 %v2025, 1.442695
    %v2027 = vpow.pop %v2026
    %v2028 = vadd.f32 %v2027, 1.0
    %v2029 = vrcp.pop %v2028
    %v2030 = vmul.f32 1.0, %v2029
    %v2031 = vxor.u32 %v1980, 2147483648
    %v2032 = vmul.f32 %v2031, 1.442695
    %v2033 = vpow.pop %v2032
    %v2034 = vadd.f32 %v2033, 1.0
    %v2035 = vrcp.pop %v2034
    %v2036 = vmul.f32 1.0, %v2035
    %v2037 = vtanh.pop %v2019
    %v2038 = vxor.u32 %v2021, 2147483648
    %v2039 = vmul.f32 %v2038, 1.442695
    %v2040 = vpow.pop %v2039
    %v2041 = vadd.f32 %v2040, 1.0
    %v2042 = vrcp.pop %v2041
    %v2043 = vmul.f32 1.0, %v2042
    %v2044 = vmul.f32 %v2036, %v1824
    %v2045 = vmul.f32 %v2030, %v2037
    %v2046 = vadd.f32 %v2044, %v2045
    %v2047 = vtanh.pop %v2046
    %v2048 = vmul.f32 %v2043, %v2047
    %v2049 = vld [vmem:[#allocation3 + $0x80] sm:$0xff]
    %v2050 = vld [vmem:[#allocation3 + $0x88] sm:$0xff]
    %v2051 = vld [vmem:[#allocation3 + $0x90] sm:$0xff]
    %v2052 = vld [vmem:[#allocation3 + $0x98] sm:$0xff]
    %v2053 = vpack.c.bf16 %v1941, %v1941
    %2054 = vmatprep.subr.bf16.mxu0 %v832
    %2055 = vmatpush1.bf16.msra.mxu0 %v831
    %2056 = vmatprep.subr.bf16.mxu0 %v828
    %2057 = vmatpush1.bf16.msra.mxu0 %v827
    %2058 = vmatprep.subr.bf16.mxu0 %v824
    %2059 = vmatpush1.bf16.msra.mxu0 %v823
    %2060 = vmatprep.subr.bf16.mxu0 %v820
    %2061 = vmatpush1.bf16.msra.mxu0 %v819
    %2062 = vmatprep.subr.bf16.mxu0 %v816
    %2063 = vmatpush1.bf16.msra.mxu0 %v815
    %2064 = vmatprep.subr.bf16.mxu0 %v812
    %2065 = vmatpush1.bf16.msra.mxu0 %v811
    %2066 = vmatprep.subr.bf16.mxu0 %v808
    %2067 = vmatpush1.bf16.msra.mxu0 %v807
    %2068 = vmatprep.subr.bf16.mxu0 %v804
    %2069 = vmatpush1.bf16.msra.mxu0 %v803
    %2070 = vmatprep.subr.bf16.mxu0 0
    %2071 = vmatpush2.bf16.msra.mxu0 0
    %2072 = vmatprep.subr.bf16.mxu0 0
    %2073 = vmatpush2.bf16.msra.mxu0 0
    %2074 = vmatprep.subr.bf16.mxu0 0
    %2075 = vmatpush2.bf16.msra.mxu0 0
    %2076 = vmatprep.subr.bf16.mxu0 0
    %2077 = vmatpush2.bf16.msra.mxu0 0
    %2078 = vmatprep.subr.bf16.mxu0 0
    %2079 = vmatpush2.bf16.msra.mxu0 0
    %2080 = vmatprep.subr.bf16.mxu0 0
    %2081 = vmatpush2.bf16.msra.mxu0 0
    %2082 = vmatprep.subr.bf16.mxu0 0
    %2083 = vmatpush2.bf16.msra.mxu0 0
    %2084 = vmatprep.subr.bf16.mxu0 0
    %2085 = vmatpush2.bf16.msra.mxu0 0
    %2086 = vmatprep.mubr.bf16.mxu0 0
    %2087 = vmatmul.mubr.bf16.gmra.mxu0 %v2053
    %v2088 = vpop.f32.mrf.mxu0
    %v2089 = vadd.f32 0.0, %v2088
    %v2090 = vpop.f32.mrf.mxu0
    %v2091 = vadd.f32 0.0, %v2090
    %v2092 = vpop.f32.mrf.mxu0
    %v2093 = vpop.f32.mrf.mxu0
    %2094 = vdwg.mxu0
    %2095 = vmatprep.subr.bf16.mxu0 %v834
    %2096 = vmatpush1.bf16.msra.mxu0 %v833
    %2097 = vmatprep.subr.bf16.mxu0 %v830
    %2098 = vmatpush1.bf16.msra.mxu0 %v829
    %2099 = vmatprep.subr.bf16.mxu0 %v826
    %2100 = vmatpush1.bf16.msra.mxu0 %v825
    %2101 = vmatprep.subr.bf16.mxu0 %v822
    %2102 = vmatpush1.bf16.msra.mxu0 %v821
    %2103 = vmatprep.subr.bf16.mxu0 %v818
    %2104 = vmatpush1.bf16.msra.mxu0 %v817
    %2105 = vmatprep.subr.bf16.mxu0 %v814
    %2106 = vmatpush1.bf16.msra.mxu0 %v813
    %2107 = vmatprep.subr.bf16.mxu0 %v810
    %2108 = vmatpush1.bf16.msra.mxu0 %v809
    %2109 = vmatprep.subr.bf16.mxu0 %v806
    %2110 = vmatpush1.bf16.msra.mxu0 %v805
    %2111 = vmatprep.subr.bf16.mxu0 0
    %2112 = vmatpush2.bf16.msra.mxu0 0
    %2113 = vmatprep.subr.bf16.mxu0 0
    %2114 = vmatpush2.bf16.msra.mxu0 0
    %2115 = vmatprep.subr.bf16.mxu0 0
    %2116 = vmatpush2.bf16.msra.mxu0 0
    %2117 = vmatprep.subr.bf16.mxu0 0
    %2118 = vmatpush2.bf16.msra.mxu0 0
    %2119 = vmatprep.subr.bf16.mxu0 0
    %2120 = vmatpush2.bf16.msra.mxu0 0
    %2121 = vmatprep.subr.bf16.mxu0 0
    %2122 = vmatpush2.bf16.msra.mxu0 0
    %2123 = vmatprep.subr.bf16.mxu0 0
    %2124 = vmatpush2.bf16.msra.mxu0 0
    %2125 = vmatprep.subr.bf16.mxu0 0
    %2126 = vmatpush2.bf16.msra.mxu0 0
    %2127 = vmatprep.mubr.bf16.mxu0 0
    %2128 = vmatmul.mubr.bf16.gmra.mxu0 %v2053
    %v2129 = vpop.f32.mrf.mxu0
    %v2130 = vadd.f32 0.0, %v2129
    %v2131 = vpop.f32.mrf.mxu0
    %v2132 = vadd.f32 0.0, %v2131
    %v2133 = vpop.f32.mrf.mxu0
    %v2134 = vpop.f32.mrf.mxu0
    %2135 = vdwg.mxu0
    %v2136 = vadd.f32 %v2049, %v2089
    %v2137 = vadd.f32 %v2050, %v2091
    %v2138 = vadd.f32 %v2051, %v2130
    %v2139 = vadd.f32 %v2052, %v2132
    %v2140 = vxor.u32 %v2136, 2147483648
    %v2141 = vmul.f32 %v2140, 1.442695
    %v2142 = vpow.pop %v2141
    %v2143 = vadd.f32 %v2142, 1.0
    %v2144 = vrcp.pop %v2143
    %v2145 = vmul.f32 1.0, %v2144
    %v2146 = vxor.u32 %v2137, 2147483648
    %v2147 = vmul.f32 %v2146, 1.442695
    %v2148 = vpow.pop %v2147
    %v2149 = vadd.f32 %v2148, 1.0
    %v2150 = vrcp.pop %v2149
    %v2151 = vmul.f32 1.0, %v2150
    %v2152 = vtanh.pop %v2138
    %v2153 = vxor.u32 %v2139, 2147483648
    %v2154 = vmul.f32 %v2153, 1.442695
    %v2155 = vpow.pop %v2154
    %v2156 = vadd.f32 %v2155, 1.0
    %v2157 = vrcp.pop %v2156
    %v2158 = vmul.f32 1.0, %v2157
    %v2159 = vmul.f32 %v2151, %v1939
    %v2160 = vmul.f32 %v2145, %v2152
    %v2161 = vadd.f32 %v2159, %v2160
    %v2162 = vtanh.pop %v2161
    %v2163 = vmul.f32 %v2158, %v2162
    %v2164 = vpack.c.bf16 %v2048, %v2048
    %2165 = vmatprep.subr.bf16.mxu0 %v1400
    %2166 = vmatpush1.bf16.msra.mxu0 %v1399
    %2167 = vmatprep.subr.bf16.mxu0 %v1396
    %2168 = vmatpush1.bf16.msra.mxu0 %v1395
    %2169 = vmatprep.subr.bf16.mxu0 %v1392
    %2170 = vmatpush1.bf16.msra.mxu0 %v1391
    %2171 = vmatprep.subr.bf16.mxu0 %v1388
    %2172 = vmatpush1.bf16.msra.mxu0 %v1387
    %2173 = vmatprep.subr.bf16.mxu0 %v1384
    %2174 = vmatpush1.bf16.msra.mxu0 %v1383
    %2175 = vmatprep.subr.bf16.mxu0 %v1380
    %2176 = vmatpush1.bf16.msra.mxu0 %v1379
    %2177 = vmatprep.subr.bf16.mxu0 %v1376
    %2178 = vmatpush1.bf16.msra.mxu0 %v1375
    %2179 = vmatprep.subr.bf16.mxu0 %v1372
    %2180 = vmatpush1.bf16.msra.mxu0 %v1371
    %2181 = vmatprep.subr.bf16.mxu0 %v1432
    %2182 = vmatpush2.bf16.msra.mxu0 %v1431
    %2183 = vmatprep.subr.bf16.mxu0 %v1428
    %2184 = vmatpush2.bf16.msra.mxu0 %v1427
    %2185 = vmatprep.subr.bf16.mxu0 %v1424
    %2186 = vmatpush2.bf16.msra.mxu0 %v1423
    %2187 = vmatprep.subr.bf16.mxu0 %v1420
    %2188 = vmatpush2.bf16.msra.mxu0 %v1419
    %2189 = vmatprep.subr.bf16.mxu0 %v1416
    %2190 = vmatpush2.bf16.msra.mxu0 %v1415
    %2191 = vmatprep.subr.bf16.mxu0 %v1412
    %2192 = vmatpush2.bf16.msra.mxu0 %v1411
    %2193 = vmatprep.subr.bf16.mxu0 %v1408
    %2194 = vmatpush2.bf16.msra.mxu0 %v1407
    %2195 = vmatprep.subr.bf16.mxu0 %v1404
    %2196 = vmatpush2.bf16.msra.mxu0 %v1403
    %2197 = vmatprep.mubr.bf16.mxu0 %v2164
    %2198 = vmatmul.mubr.bf16.gmra.mxu0 %v2053
    %v2199 = vpop.f32.mrf.mxu0
    %v2200 = vadd.f32 %v1162, %v2199
    %v2201 = vpop.f32.mrf.mxu0
    %v2202 = vadd.f32 %v1166, %v2201
    %v2203 = vpop.f32.mrf.mxu0
    %v2204 = vpop.f32.mrf.mxu0
    %2205 = vdwg.mxu0
    %2206 = vmatprep.subr.bf16.mxu0 %v1402
    %2207 = vmatpush1.bf16.msra.mxu0 %v1401
    %2208 = vmatprep.subr.bf16.mxu0 %v1398
    %2209 = vmatpush1.bf16.msra.mxu0 %v1397
    %2210 = vmatprep.subr.bf16.mxu0 %v1394
    %2211 = vmatpush1.bf16.msra.mxu0 %v1393
    %2212 = vmatprep.subr.bf16.mxu0 %v1390
    %2213 = vmatpush1.bf16.msra.mxu0 %v1389
    %2214 = vmatprep.subr.bf16.mxu0 %v1386
    %2215 = vmatpush1.bf16.msra.mxu0 %v1385
    %2216 = vmatprep.subr.bf16.mxu0 %v1382
    %2217 = vmatpush1.bf16.msra.mxu0 %v1381
    %2218 = vmatprep.subr.bf16.mxu0 %v1378
    %2219 = vmatpush1.bf16.msra.mxu0 %v1377
    %2220 = vmatprep.subr.bf16.mxu0 %v1374
    %2221 = vmatpush1.bf16.msra.mxu0 %v1373
    %2222 = vmatprep.subr.bf16.mxu0 %v1434
    %2223 = vmatpush2.bf16.msra.mxu0 %v1433
    %2224 = vmatprep.subr.bf16.mxu0 %v1430
    %2225 = vmatpush2.bf16.msra.mxu0 %v1429
    %2226 = vmatprep.subr.bf16.mxu0 %v1426
    %2227 = vmatpush2.bf16.msra.mxu0 %v1425
    %2228 = vmatprep.subr.bf16.mxu0 %v1422
    %2229 = vmatpush2.bf16.msra.mxu0 %v1421
    %2230 = vmatprep.subr.bf16.mxu0 %v1418
    %2231 = vmatpush2.bf16.msra.mxu0 %v1417
    %2232 = vmatprep.subr.bf16.mxu0 %v1414
    %2233 = vmatpush2.bf16.msra.mxu0 %v1413
    %2234 = vmatprep.subr.bf16.mxu0 %v1410
    %2235 = vmatpush2.bf16.msra.mxu0 %v1409
    %2236 = vmatprep.subr.bf16.mxu0 %v1406
    %2237 = vmatpush2.bf16.msra.mxu0 %v1405
    %2238 = vmatprep.mubr.bf16.mxu0 %v2164
    %2239 = vmatmul.mubr.bf16.gmra.mxu0 %v2053
    %v2240 = vpop.f32.mrf.mxu0
    %v2241 = vadd.f32 %v1170, %v2240
    %v2242 = vpop.f32.mrf.mxu0
    %v2243 = vadd.f32 %v1174, %v2242
    %v2244 = vpop.f32.mrf.mxu0
    %v2245 = vpop.f32.mrf.mxu0
    %2246 = vdwg.mxu0
    %v2247 = vxor.u32 %v2200, 2147483648
    %v2248 = vmul.f32 %v2247, 1.442695
    %v2249 = vpow.pop %v2248
    %v2250 = vadd.f32 %v2249, 1.0
    %v2251 = vrcp.pop %v2250
    %v2252 = vmul.f32 1.0, %v2251
    %v2253 = vxor.u32 %v2202, 2147483648
    %v2254 = vmul.f32 %v2253, 1.442695
    %v2255 = vpow.pop %v2254
    %v2256 = vadd.f32 %v2255, 1.0
    %v2257 = vrcp.pop %v2256
    %v2258 = vmul.f32 1.0, %v2257
    %v2259 = vtanh.pop %v2241
    %v2260 = vxor.u32 %v2243, 2147483648
    %v2261 = vmul.f32 %v2260, 1.442695
    %v2262 = vpow.pop %v2261
    %v2263 = vadd.f32 %v2262, 1.0
    %v2264 = vrcp.pop %v2263
    %v2265 = vmul.f32 1.0, %v2264
    %v2266 = vmul.f32 %v2258, %v2046
    %v2267 = vmul.f32 %v2252, %v2259
    %v2268 = vadd.f32 %v2266, %v2267
    %v2269 = vtanh.pop %v2268
    %v2270 = vmul.f32 %v2265, %v2269
    %v2271 = vld [vmem:[#allocation3 + $0xa0] sm:$0xff]
    %v2272 = vld [vmem:[#allocation3 + $0xa8] sm:$0xff]
    %v2273 = vld [vmem:[#allocation3 + $0xb0] sm:$0xff]
    %v2274 = vld [vmem:[#allocation3 + $0xb8] sm:$0xff]
    %v2275 = vpack.c.bf16 %v2163, %v2163
    %2276 = vmatprep.subr.bf16.mxu0 %v832
    %2277 = vmatpush1.bf16.msra.mxu0 %v831
    %2278 = vmatprep.subr.bf16.mxu0 %v828
    %2279 = vmatpush1.bf16.msra.mxu0 %v827
    %2280 = vmatprep.subr.bf16.mxu0 %v824
    %2281 = vmatpush1.bf16.msra.mxu0 %v823
    %2282 = vmatprep.subr.bf16.mxu0 %v820
    %2283 = vmatpush1.bf16.msra.mxu0 %v819
    %2284 = vmatprep.subr.bf16.mxu0 %v816
    %2285 = vmatpush1.bf16.msra.mxu0 %v815
    %2286 = vmatprep.subr.bf16.mxu0 %v812
    %2287 = vmatpush1.bf16.msra.mxu0 %v811
    %2288 = vmatprep.subr.bf16.mxu0 %v808
    %2289 = vmatpush1.bf16.msra.mxu0 %v807
    %2290 = vmatprep.subr.bf16.mxu0 %v804
    %2291 = vmatpush1.bf16.msra.mxu0 %v803
    %2292 = vmatprep.subr.bf16.mxu0 0
    %2293 = vmatpush2.bf16.msra.mxu0 0
    %2294 = vmatprep.subr.bf16.mxu0 0
    %2295 = vmatpush2.bf16.msra.mxu0 0
    %2296 = vmatprep.subr.bf16.mxu0 0
    %2297 = vmatpush2.bf16.msra.mxu0 0
    %2298 = vmatprep.subr.bf16.mxu0 0
    %2299 = vmatpush2.bf16.msra.mxu0 0
    %2300 = vmatprep.subr.bf16.mxu0 0
    %2301 = vmatpush2.bf16.msra.mxu0 0
    %2302 = vmatprep.subr.bf16.mxu0 0
    %2303 = vmatpush2.bf16.msra.mxu0 0
    %2304 = vmatprep.subr.bf16.mxu0 0
    %2305 = vmatpush2.bf16.msra.mxu0 0
    %2306 = vmatprep.subr.bf16.mxu0 0
    %2307 = vmatpush2.bf16.msra.mxu0 0
    %2308 = vmatprep.mubr.bf16.mxu0 0
    %2309 = vmatmul.mubr.bf16.gmra.mxu0 %v2275
    %v2310 = vpop.f32.mrf.mxu0
    %v2311 = vadd.f32 0.0, %v2310
    %v2312 = vpop.f32.mrf.mxu0
    %v2313 = vadd.f32 0.0, %v2312
    %v2314 = vpop.f32.mrf.mxu0
    %v2315 = vpop.f32.mrf.mxu0
    %2316 = vdwg.mxu0
    %2317 = vmatprep.subr.bf16.mxu0 %v834
    %2318 = vmatpush1.bf16.msra.mxu0 %v833
    %2319 = vmatprep.subr.bf16.mxu0 %v830
    %2320 = vmatpush1.bf16.msra.mxu0 %v829
    %2321 = vmatprep.subr.bf16.mxu0 %v826
    %2322 = vmatpush1.bf16.msra.mxu0 %v825
    %2323 = vmatprep.subr.bf16.mxu0 %v822
    %2324 = vmatpush1.bf16.msra.mxu0 %v821
    %2325 = vmatprep.subr.bf16.mxu0 %v818
    %2326 = vmatpush1.bf16.msra.mxu0 %v817
    %2327 = vmatprep.subr.bf16.mxu0 %v814
    %2328 = vmatpush1.bf16.msra.mxu0 %v813
    %2329 = vmatprep.subr.bf16.mxu0 %v810
    %2330 = vmatpush1.bf16.msra.mxu0 %v809
    %2331 = vmatprep.subr.bf16.mxu0 %v806
    %2332 = vmatpush1.bf16.msra.mxu0 %v805
    %2333 = vmatprep.subr.bf16.mxu0 0
    %2334 = vmatpush2.bf16.msra.mxu0 0
    %2335 = vmatprep.subr.bf16.mxu0 0
    %2336 = vmatpush2.bf16.msra.mxu0 0
    %2337 = vmatprep.subr.bf16.mxu0 0
    %2338 = vmatpush2.bf16.msra.mxu0 0
    %2339 = vmatprep.subr.bf16.mxu0 0
    %2340 = vmatpush2.bf16.msra.mxu0 0
    %2341 = vmatprep.subr.bf16.mxu0 0
    %2342 = vmatpush2.bf16.msra.mxu0 0
    %2343 = vmatprep.subr.bf16.mxu0 0
    %2344 = vmatpush2.bf16.msra.mxu0 0
    %2345 = vmatprep.subr.bf16.mxu0 0
    %2346 = vmatpush2.bf16.msra.mxu0 0
    %2347 = vmatprep.subr.bf16.mxu0 0
    %2348 = vmatpush2.bf16.msra.mxu0 0
    %2349 = vmatprep.mubr.bf16.mxu0 0
    %2350 = vmatmul.mubr.bf16.gmra.mxu0 %v2275
    %v2351 = vpop.f32.mrf.mxu0
    %v2352 = vadd.f32 0.0, %v2351
    %v2353 = vpop.f32.mrf.mxu0
    %v2354 = vadd.f32 0.0, %v2353
    %v2355 = vpop.f32.mrf.mxu0
    %v2356 = vpop.f32.mrf.mxu0
    %2357 = vdwg.mxu0
    %v2358 = vadd.f32 %v2271, %v2311
    %v2359 = vadd.f32 %v2272, %v2313
    %v2360 = vadd.f32 %v2273, %v2352
    %v2361 = vadd.f32 %v2274, %v2354
    %v2362 = vxor.u32 %v2358, 2147483648
    %v2363 = vmul.f32 %v2362, 1.442695
    %v2364 = vpow.pop %v2363
    %v2365 = vadd.f32 %v2364, 1.0
    %v2366 = vrcp.pop %v2365
    %v2367 = vmul.f32 1.0, %v2366
    %v2368 = vxor.u32 %v2359, 2147483648
    %v2369 = vmul.f32 %v2368, 1.442695
    %v2370 = vpow.pop %v2369
    %v2371 = vadd.f32 %v2370, 1.0
    %v2372 = vrcp.pop %v2371
    %v2373 = vmul.f32 1.0, %v2372
    %v2374 = vtanh.pop %v2360
    %v2375 = vxor.u32 %v2361, 2147483648
    %v2376 = vmul.f32 %v2375, 1.442695
    %v2377 = vpow.pop %v2376
    %v2378 = vadd.f32 %v2377, 1.0
    %v2379 = vrcp.pop %v2378
    %v2380 = vmul.f32 1.0, %v2379
    %v2381 = vmul.f32 %v2373, %v2161
    %v2382 = vmul.f32 %v2367, %v2374
    %v2383 = vadd.f32 %v2381, %v2382
    %v2384 = vtanh.pop %v2383
    %v2385 = vmul.f32 %v2380, %v2384
    %v2386 = vpack.c.bf16 %v2270, %v2270
    %2387 = vmatprep.subr.bf16.mxu0 %v1400
    %2388 = vmatpush1.bf16.msra.mxu0 %v1399
    %2389 = vmatprep.subr.bf16.mxu0 %v1396
    %2390 = vmatpush1.bf16.msra.mxu0 %v1395
    %2391 = vmatprep.subr.bf16.mxu0 %v1392
    %2392 = vmatpush1.bf16.msra.mxu0 %v1391
    %2393 = vmatprep.subr.bf16.mxu0 %v1388
    %2394 = vmatpush1.bf16.msra.mxu0 %v1387
    %2395 = vmatprep.subr.bf16.mxu0 %v1384
    %2396 = vmatpush1.bf16.msra.mxu0 %v1383
    %2397 = vmatprep.subr.bf16.mxu0 %v1380
    %2398 = vmatpush1.bf16.msra.mxu0 %v1379
    %2399 = vmatprep.subr.bf16.mxu0 %v1376
    %2400 = vmatpush1.bf16.msra.mxu0 %v1375
    %2401 = vmatprep.subr.bf16.mxu0 %v1372
    %2402 = vmatpush1.bf16.msra.mxu0 %v1371
    %2403 = vmatprep.subr.bf16.mxu0 %v1432
    %2404 = vmatpush2.bf16.msra.mxu0 %v1431
    %2405 = vmatprep.subr.bf16.mxu0 %v1428
    %2406 = vmatpush2.bf16.msra.mxu0 %v1427
    %2407 = vmatprep.subr.bf16.mxu0 %v1424
    %2408 = vmatpush2.bf16.msra.mxu0 %v1423
    %2409 = vmatprep.subr.bf16.mxu0 %v1420
    %2410 = vmatpush2.bf16.msra.mxu0 %v1419
    %2411 = vmatprep.subr.bf16.mxu0 %v1416
    %2412 = vmatpush2.bf16.msra.mxu0 %v1415
    %2413 = vmatprep.subr.bf16.mxu0 %v1412
    %2414 = vmatpush2.bf16.msra.mxu0 %v1411
    %2415 = vmatprep.subr.bf16.mxu0 %v1408
    %2416 = vmatpush2.bf16.msra.mxu0 %v1407
    %2417 = vmatprep.subr.bf16.mxu0 %v1404
    %2418 = vmatpush2.bf16.msra.mxu0 %v1403
    %2419 = vmatprep.mubr.bf16.mxu0 %v2386
    %2420 = vmatmul.mubr.bf16.gmra.mxu0 %v2275
    %v2421 = vpop.f32.mrf.mxu0
    %v2422 = vadd.f32 %v1162, %v2421
    %v2423 = vpop.f32.mrf.mxu0
    %v2424 = vadd.f32 %v1166, %v2423
    %v2425 = vpop.f32.mrf.mxu0
    %v2426 = vpop.f32.mrf.mxu0
    %2427 = vdwg.mxu0
    %2428 = vmatprep.subr.bf16.mxu0 %v1402
    %2429 = vmatpush1.bf16.msra.mxu0 %v1401
    %2430 = vmatprep.subr.bf16.mxu0 %v1398
    %2431 = vmatpush1.bf16.msra.mxu0 %v1397
    %2432 = vmatprep.subr.bf16.mxu0 %v1394
    %2433 = vmatpush1.bf16.msra.mxu0 %v1393
    %2434 = vmatprep.subr.bf16.mxu0 %v1390
    %2435 = vmatpush1.bf16.msra.mxu0 %v1389
    %2436 = vmatprep.subr.bf16.mxu0 %v1386
    %2437 = vmatpush1.bf16.msra.mxu0 %v1385
    %2438 = vmatprep.subr.bf16.mxu0 %v1382
    %2439 = vmatpush1.bf16.msra.mxu0 %v1381
    %2440 = vmatprep.subr.bf16.mxu0 %v1378
    %2441 = vmatpush1.bf16.msra.mxu0 %v1377
    %2442 = vmatprep.subr.bf16.mxu0 %v1374
    %2443 = vmatpush1.bf16.msra.mxu0 %v1373
    %2444 = vmatprep.subr.bf16.mxu0 %v1434
    %2445 = vmatpush2.bf16.msra.mxu0 %v1433
    %2446 = vmatprep.subr.bf16.mxu0 %v1430
    %2447 = vmatpush2.bf16.msra.mxu0 %v1429
    %2448 = vmatprep.subr.bf16.mxu0 %v1426
    %2449 = vmatpush2.bf16.msra.mxu0 %v1425
    %2450 = vmatprep.subr.bf16.mxu0 %v1422
    %2451 = vmatpush2.bf16.msra.mxu0 %v1421
    %2452 = vmatprep.subr.bf16.mxu0 %v1418
    %2453 = vmatpush2.bf16.msra.mxu0 %v1417
    %2454 = vmatprep.subr.bf16.mxu0 %v1414
    %2455 = vmatpush2.bf16.msra.mxu0 %v1413
    %2456 = vmatprep.subr.bf16.mxu0 %v1410
    %2457 = vmatpush2.bf16.msra.mxu0 %v1409
    %2458 = vmatprep.subr.bf16.mxu0 %v1406
    %2459 = vmatpush2.bf16.msra.mxu0 %v1405
    %2460 = vmatprep.mubr.bf16.mxu0 %v2386
    %2461 = vmatmul.mubr.bf16.gmra.mxu0 %v2275
    %v2462 = vpop.f32.mrf.mxu0
    %v2463 = vadd.f32 %v1170, %v2462
    %v2464 = vpop.f32.mrf.mxu0
    %v2465 = vadd.f32 %v1174, %v2464
    %v2466 = vpop.f32.mrf.mxu0
    %v2467 = vpop.f32.mrf.mxu0
    %2468 = vdwg.mxu0
    %v2469 = vxor.u32 %v2422, 2147483648
    %v2470 = vmul.f32 %v2469, 1.442695
    %v2471 = vpow.pop %v2470
    %v2472 = vadd.f32 %v2471, 1.0
    %v2473 = vrcp.pop %v2472
    %v2474 = vmul.f32 1.0, %v2473
    %v2475 = vxor.u32 %v2424, 2147483648
    %v2476 = vmul.f32 %v2475, 1.442695
    %v2477 = vpow.pop %v2476
    %v2478 = vadd.f32 %v2477, 1.0
    %v2479 = vrcp.pop %v2478
    %v2480 = vmul.f32 1.0, %v2479
    %v2481 = vtanh.pop %v2463
    %v2482 = vxor.u32 %v2465, 2147483648
    %v2483 = vmul.f32 %v2482, 1.442695
    %v2484 = vpow.pop %v2483
    %v2485 = vadd.f32 %v2484, 1.0
    %v2486 = vrcp.pop %v2485
    %v2487 = vmul.f32 1.0, %v2486
    %v2488 = vmul.f32 %v2480, %v2268
    %v2489 = vmul.f32 %v2474, %v2481
    %v2490 = vadd.f32 %v2488, %v2489
    %v2491 = vtanh.pop %v2490
    %v2492 = vmul.f32 %v2487, %v2491
    %v2493 = vld [vmem:[#allocation3 + $0xc0] sm:$0xff]
    %v2494 = vld [vmem:[#allocation3 + $0xc8] sm:$0xff]
    %v2495 = vld [vmem:[#allocation3 + $0xd0] sm:$0xff]
    %v2496 = vld [vmem:[#allocation3 + $0xd8] sm:$0xff]
    %v2497 = vpack.c.bf16 %v2385, %v2385
    %2498 = vmatprep.subr.bf16.mxu0 %v832
    %2499 = vmatpush1.bf16.msra.mxu0 %v831
    %2500 = vmatprep.subr.bf16.mxu0 %v828
    %2501 = vmatpush1.bf16.msra.mxu0 %v827
    %2502 = vmatprep.subr.bf16.mxu0 %v824
    %2503 = vmatpush1.bf16.msra.mxu0 %v823
    %2504 = vmatprep.subr.bf16.mxu0 %v820
    %2505 = vmatpush1.bf16.msra.mxu0 %v819
    %2506 = vmatprep.subr.bf16.mxu0 %v816
    %2507 = vmatpush1.bf16.msra.mxu0 %v815
    %2508 = vmatprep.subr.bf16.mxu0 %v812
    %2509 = vmatpush1.bf16.msra.mxu0 %v811
    %2510 = vmatprep.subr.bf16.mxu0 %v808
    %2511 = vmatpush1.bf16.msra.mxu0 %v807
    %2512 = vmatprep.subr.bf16.mxu0 %v804
    %2513 = vmatpush1.bf16.msra.mxu0 %v803
    %2514 = vmatprep.subr.bf16.mxu0 0
    %2515 = vmatpush2.bf16.msra.mxu0 0
    %2516 = vmatprep.subr.bf16.mxu0 0
    %2517 = vmatpush2.bf16.msra.mxu0 0
    %2518 = vmatprep.subr.bf16.mxu0 0
    %2519 = vmatpush2.bf16.msra.mxu0 0
    %2520 = vmatprep.subr.bf16.mxu0 0
    %2521 = vmatpush2.bf16.msra.mxu0 0
    %2522 = vmatprep.subr.bf16.mxu0 0
    %2523 = vmatpush2.bf16.msra.mxu0 0
    %2524 = vmatprep.subr.bf16.mxu0 0
    %2525 = vmatpush2.bf16.msra.mxu0 0
    %2526 = vmatprep.subr.bf16.mxu0 0
    %2527 = vmatpush2.bf16.msra.mxu0 0
    %2528 = vmatprep.subr.bf16.mxu0 0
    %2529 = vmatpush2.bf16.msra.mxu0 0
    %2530 = vmatprep.mubr.bf16.mxu0 0
    %2531 = vmatmul.mubr.bf16.gmra.mxu0 %v2497
    %v2532 = vpop.f32.mrf.mxu0
    %v2533 = vadd.f32 0.0, %v2532
    %v2534 = vpop.f32.mrf.mxu0
    %v2535 = vadd.f32 0.0, %v2534
    %v2536 = vpop.f32.mrf.mxu0
    %v2537 = vpop.f32.mrf.mxu0
    %2538 = vdwg.mxu0
    %2539 = vmatprep.subr.bf16.mxu0 %v834
    %2540 = vmatpush1.bf16.msra.mxu0 %v833
    %2541 = vmatprep.subr.bf16.mxu0 %v830
    %2542 = vmatpush1.bf16.msra.mxu0 %v829
    %2543 = vmatprep.subr.bf16.mxu0 %v826
    %2544 = vmatpush1.bf16.msra.mxu0 %v825
    %2545 = vmatprep.subr.bf16.mxu0 %v822
    %2546 = vmatpush1.bf16.msra.mxu0 %v821
    %2547 = vmatprep.subr.bf16.mxu0 %v818
    %2548 = vmatpush1.bf16.msra.mxu0 %v817
    %2549 = vmatprep.subr.bf16.mxu0 %v814
    %2550 = vmatpush1.bf16.msra.mxu0 %v813
    %2551 = vmatprep.subr.bf16.mxu0 %v810
    %2552 = vmatpush1.bf16.msra.mxu0 %v809
    %2553 = vmatprep.subr.bf16.mxu0 %v806
    %2554 = vmatpush1.bf16.msra.mxu0 %v805
    %2555 = vmatprep.subr.bf16.mxu0 0
    %2556 = vmatpush2.bf16.msra.mxu0 0
    %2557 = vmatprep.subr.bf16.mxu0 0
    %2558 = vmatpush2.bf16.msra.mxu0 0
    %2559 = vmatprep.subr.bf16.mxu0 0
    %2560 = vmatpush2.bf16.msra.mxu0 0
    %2561 = vmatprep.subr.bf16.mxu0 0
    %2562 = vmatpush2.bf16.msra.mxu0 0
    %2563 = vmatprep.subr.bf16.mxu0 0
    %2564 = vmatpush2.bf16.msra.mxu0 0
    %2565 = vmatprep.subr.bf16.mxu0 0
    %2566 = vmatpush2.bf16.msra.mxu0 0
    %2567 = vmatprep.subr.bf16.mxu0 0
    %2568 = vmatpush2.bf16.msra.mxu0 0
    %2569 = vmatprep.subr.bf16.mxu0 0
    %2570 = vmatpush2.bf16.msra.mxu0 0
    %2571 = vmatprep.mubr.bf16.mxu0 0
    %2572 = vmatmul.mubr.bf16.gmra.mxu0 %v2497
    %v2573 = vpop.f32.mrf.mxu0
    %v2574 = vadd.f32 0.0, %v2573
    %v2575 = vpop.f32.mrf.mxu0
    %v2576 = vadd.f32 0.0, %v2575
    %v2577 = vpop.f32.mrf.mxu0
    %v2578 = vpop.f32.mrf.mxu0
    %2579 = vdwg.mxu0
    %v2580 = vadd.f32 %v2493, %v2533
    %v2581 = vadd.f32 %v2494, %v2535
    %v2582 = vadd.f32 %v2495, %v2574
    %v2583 = vadd.f32 %v2496, %v2576
    %v2584 = vxor.u32 %v2580, 2147483648
    %v2585 = vmul.f32 %v2584, 1.442695
    %v2586 = vpow.pop %v2585
    %v2587 = vadd.f32 %v2586, 1.0
    %v2588 = vrcp.pop %v2587
    %v2589 = vmul.f32 1.0, %v2588
    %v2590 = vxor.u32 %v2581, 2147483648
    %v2591 = vmul.f32 %v2590, 1.442695
    %v2592 = vpow.pop %v2591
    %v2593 = vadd.f32 %v2592, 1.0
    %v2594 = vrcp.pop %v2593
    %v2595 = vmul.f32 1.0, %v2594
    %v2596 = vtanh.pop %v2582
    %v2597 = vxor.u32 %v2583, 2147483648
    %v2598 = vmul.f32 %v2597, 1.442695
    %v2599 = vpow.pop %v2598
    %v2600 = vadd.f32 %v2599, 1.0
    %v2601 = vrcp.pop %v2600
    %v2602 = vmul.f32 1.0, %v2601
    %v2603 = vmul.f32 %v2595, %v2383
    %v2604 = vmul.f32 %v2589, %v2596
    %v2605 = vadd.f32 %v2603, %v2604
    %v2606 = vtanh.pop %v2605
    %v2607 = vmul.f32 %v2602, %v2606
    %v2608 = vpack.c.bf16 %v2492, %v2492
    %2609 = vmatprep.subr.bf16.mxu0 %v1400
    %2610 = vmatpush1.bf16.msra.mxu0 %v1399
    %2611 = vmatprep.subr.bf16.mxu0 %v1396
    %2612 = vmatpush1.bf16.msra.mxu0 %v1395
    %2613 = vmatprep.subr.bf16.mxu0 %v1392
    %2614 = vmatpush1.bf16.msra.mxu0 %v1391
    %2615 = vmatprep.subr.bf16.mxu0 %v1388
    %2616 = vmatpush1.bf16.msra.mxu0 %v1387
    %2617 = vmatprep.subr.bf16.mxu0 %v1384
    %2618 = vmatpush1.bf16.msra.mxu0 %v1383
    %2619 = vmatprep.subr.bf16.mxu0 %v1380
    %2620 = vmatpush1.bf16.msra.mxu0 %v1379
    %2621 = vmatprep.subr.bf16.mxu0 %v1376
    %2622 = vmatpush1.bf16.msra.mxu0 %v1375
    %2623 = vmatprep.subr.bf16.mxu0 %v1372
    %2624 = vmatpush1.bf16.msra.mxu0 %v1371
    %2625 = vmatprep.subr.bf16.mxu0 %v1432
    %2626 = vmatpush2.bf16.msra.mxu0 %v1431
    %2627 = vmatprep.subr.bf16.mxu0 %v1428
    %2628 = vmatpush2.bf16.msra.mxu0 %v1427
    %2629 = vmatprep.subr.bf16.mxu0 %v1424
    %2630 = vmatpush2.bf16.msra.mxu0 %v1423
    %2631 = vmatprep.subr.bf16.mxu0 %v1420
    %2632 = vmatpush2.bf16.msra.mxu0 %v1419
    %2633 = vmatprep.subr.bf16.mxu0 %v1416
    %2634 = vmatpush2.bf16.msra.mxu0 %v1415
    %2635 = vmatprep.subr.bf16.mxu0 %v1412
    %2636 = vmatpush2.bf16.msra.mxu0 %v1411
    %2637 = vmatprep.subr.bf16.mxu0 %v1408
    %2638 = vmatpush2.bf16.msra.mxu0 %v1407
    %2639 = vmatprep.subr.bf16.mxu0 %v1404
    %2640 = vmatpush2.bf16.msra.mxu0 %v1403
    %2641 = vmatprep.mubr.bf16.mxu0 %v2608
    %2642 = vmatmul.mubr.bf16.gmra.mxu0 %v2497
    %v2643 = vpop.f32.mrf.mxu0
    %v2644 = vadd.f32 %v1162, %v2643
    %v2645 = vpop.f32.mrf.mxu0
    %v2646 = vadd.f32 %v1166, %v2645
    %v2647 = vpop.f32.mrf.mxu0
    %v2648 = vpop.f32.mrf.mxu0
    %2649 = vdwg.mxu0
    %2650 = vmatprep.subr.bf16.mxu0 %v1402
    %2651 = vmatpush1.bf16.msra.mxu0 %v1401
    %2652 = vmatprep.subr.bf16.mxu0 %v1398
    %2653 = vmatpush1.bf16.msra.mxu0 %v1397
    %2654 = vmatprep.subr.bf16.mxu0 %v1394
    %2655 = vmatpush1.bf16.msra.mxu0 %v1393
    %2656 = vmatprep.subr.bf16.mxu0 %v1390
    %2657 = vmatpush1.bf16.msra.mxu0 %v1389
    %2658 = vmatprep.subr.bf16.mxu0 %v1386
    %2659 = vmatpush1.bf16.msra.mxu0 %v1385
    %2660 = vmatprep.subr.bf16.mxu0 %v1382
    %2661 = vmatpush1.bf16.msra.mxu0 %v1381
    %2662 = vmatprep.subr.bf16.mxu0 %v1378
    %2663 = vmatpush1.bf16.msra.mxu0 %v1377
    %2664 = vmatprep.subr.bf16.mxu0 %v1374
    %2665 = vmatpush1.bf16.msra.mxu0 %v1373
    %2666 = vmatprep.subr.bf16.mxu0 %v1434
    %2667 = vmatpush2.bf16.msra.mxu0 %v1433
    %2668 = vmatprep.subr.bf16.mxu0 %v1430
    %2669 = vmatpush2.bf16.msra.mxu0 %v1429
    %2670 = vmatprep.subr.bf16.mxu0 %v1426
    %2671 = vmatpush2.bf16.msra.mxu0 %v1425
    %2672 = vmatprep.subr.bf16.mxu0 %v1422
    %2673 = vmatpush2.bf16.msra.mxu0 %v1421
    %2674 = vmatprep.subr.bf16.mxu0 %v1418
    %2675 = vmatpush2.bf16.msra.mxu0 %v1417
    %2676 = vmatprep.subr.bf16.mxu0 %v1414
    %2677 = vmatpush2.bf16.msra.mxu0 %v1413
    %2678 = vmatprep.subr.bf16.mxu0 %v1410
    %2679 = vmatpush2.bf16.msra.mxu0 %v1409
    %2680 = vmatprep.subr.bf16.mxu0 %v1406
    %2681 = vmatpush2.bf16.msra.mxu0 %v1405
    %2682 = vmatprep.mubr.bf16.mxu0 %v2608
    %2683 = vmatmul.mubr.bf16.gmra.mxu0 %v2497
    %v2684 = vpop.f32.mrf.mxu0
    %v2685 = vadd.f32 %v1170, %v2684
    %v2686 = vpop.f32.mrf.mxu0
    %v2687 = vadd.f32 %v1174, %v2686
    %v2688 = vpop.f32.mrf.mxu0
    %v2689 = vpop.f32.mrf.mxu0
    %2690 = vdwg.mxu0
    %v2691 = vxor.u32 %v2644, 2147483648
    %v2692 = vmul.f32 %v2691, 1.442695
    %v2693 = vpow.pop %v2692
    %v2694 = vadd.f32 %v2693, 1.0
    %v2695 = vrcp.pop %v2694
    %v2696 = vmul.f32 1.0, %v2695
    %v2697 = vxor.u32 %v2646, 2147483648
    %v2698 = vmul.f32 %v2697, 1.442695
    %v2699 = vpow.pop %v2698
    %v2700 = vadd.f32 %v2699, 1.0
    %v2701 = vrcp.pop %v2700
    %v2702 = vmul.f32 1.0, %v2701
    %v2703 = vtanh.pop %v2685
    %v2704 = vxor.u32 %v2687, 2147483648
    %v2705 = vmul.f32 %v2704, 1.442695
    %v2706 = vpow.pop %v2705
    %v2707 = vadd.f32 %v2706, 1.0
    %v2708 = vrcp.pop %v2707
    %v2709 = vmul.f32 1.0, %v2708
    %v2710 = vmul.f32 %v2702, %v2490
    %v2711 = vmul.f32 %v2696, %v2703
    %v2712 = vadd.f32 %v2710, %v2711
    %v2713 = vtanh.pop %v2712
    %v2714 = vmul.f32 %v2709, %v2713
    %v2715 = vld [vmem:[#allocation3 + $0xe0] sm:$0xff]
    %v2716 = vld [vmem:[#allocation3 + $0xe8] sm:$0xff]
    %v2717 = vld [vmem:[#allocation3 + $0xf0] sm:$0xff]
    %v2718 = vld [vmem:[#allocation3 + $0xf8] sm:$0xff]
    %v2719 = vpack.c.bf16 %v2607, %v2607
    %2720 = vmatprep.subr.bf16.mxu0 %v832
    %2721 = vmatpush1.bf16.msra.mxu0 %v831
    %2722 = vmatprep.subr.bf16.mxu0 %v828
    %2723 = vmatpush1.bf16.msra.mxu0 %v827
    %2724 = vmatprep.subr.bf16.mxu0 %v824
    %2725 = vmatpush1.bf16.msra.mxu0 %v823
    %2726 = vmatprep.subr.bf16.mxu0 %v820
    %2727 = vmatpush1.bf16.msra.mxu0 %v819
    %2728 = vmatprep.subr.bf16.mxu0 %v816
    %2729 = vmatpush1.bf16.msra.mxu0 %v815
    %2730 = vmatprep.subr.bf16.mxu0 %v812
    %2731 = vmatpush1.bf16.msra.mxu0 %v811
    %2732 = vmatprep.subr.bf16.mxu0 %v808
    %2733 = vmatpush1.bf16.msra.mxu0 %v807
    %2734 = vmatprep.subr.bf16.mxu0 %v804
    %2735 = vmatpush1.bf16.msra.mxu0 %v803
    %2736 = vmatprep.subr.bf16.mxu0 0
    %2737 = vmatpush2.bf16.msra.mxu0 0
    %2738 = vmatprep.subr.bf16.mxu0 0
    %2739 = vmatpush2.bf16.msra.mxu0 0
    %2740 = vmatprep.subr.bf16.mxu0 0
    %2741 = vmatpush2.bf16.msra.mxu0 0
    %2742 = vmatprep.subr.bf16.mxu0 0
    %2743 = vmatpush2.bf16.msra.mxu0 0
    %2744 = vmatprep.subr.bf16.mxu0 0
    %2745 = vmatpush2.bf16.msra.mxu0 0
    %2746 = vmatprep.subr.bf16.mxu0 0
    %2747 = vmatpush2.bf16.msra.mxu0 0
    %2748 = vmatprep.subr.bf16.mxu0 0
    %2749 = vmatpush2.bf16.msra.mxu0 0
    %2750 = vmatprep.subr.bf16.mxu0 0
    %2751 = vmatpush2.bf16.msra.mxu0 0
    %2752 = vmatprep.mubr.bf16.mxu0 0
    %2753 = vmatmul.mubr.bf16.gmra.mxu0 %v2719
    %v2754 = vpop.f32.mrf.mxu0
    %v2755 = vadd.f32 0.0, %v2754
    %v2756 = vpop.f32.mrf.mxu0
    %v2757 = vadd.f32 0.0, %v2756
    %v2758 = vpop.f32.mrf.mxu0
    %v2759 = vpop.f32.mrf.mxu0
    %2760 = vdwg.mxu0
    %2761 = vmatprep.subr.bf16.mxu0 %v834
    %2762 = vmatpush1.bf16.msra.mxu0 %v833
    %2763 = vmatprep.subr.bf16.mxu0 %v830
    %2764 = vmatpush1.bf16.msra.mxu0 %v829
    %2765 = vmatprep.subr.bf16.mxu0 %v826
    %2766 = vmatpush1.bf16.msra.mxu0 %v825
    %2767 = vmatprep.subr.bf16.mxu0 %v822
    %2768 = vmatpush1.bf16.msra.mxu0 %v821
    %2769 = vmatprep.subr.bf16.mxu0 %v818
    %2770 = vmatpush1.bf16.msra.mxu0 %v817
    %2771 = vmatprep.subr.bf16.mxu0 %v814
    %2772 = vmatpush1.bf16.msra.mxu0 %v813
    %2773 = vmatprep.subr.bf16.mxu0 %v810
    %2774 = vmatpush1.bf16.msra.mxu0 %v809
    %2775 = vmatprep.subr.bf16.mxu0 %v806
    %2776 = vmatpush1.bf16.msra.mxu0 %v805
    %2777 = vmatprep.subr.bf16.mxu0 0
    %2778 = vmatpush2.bf16.msra.mxu0 0
    %2779 = vmatprep.subr.bf16.mxu0 0
    %2780 = vmatpush2.bf16.msra.mxu0 0
    %2781 = vmatprep.subr.bf16.mxu0 0
    %2782 = vmatpush2.bf16.msra.mxu0 0
    %2783 = vmatprep.subr.bf16.mxu0 0
    %2784 = vmatpush2.bf16.msra.mxu0 0
    %2785 = vmatprep.subr.bf16.mxu0 0
    %2786 = vmatpush2.bf16.msra.mxu0 0
    %2787 = vmatprep.subr.bf16.mxu0 0
    %2788 = vmatpush2.bf16.msra.mxu0 0
    %2789 = vmatprep.subr.bf16.mxu0 0
    %2790 = vmatpush2.bf16.msra.mxu0 0
    %2791 = vmatprep.subr.bf16.mxu0 0
    %2792 = vmatpush2.bf16.msra.mxu0 0
    %2793 = vmatprep.mubr.bf16.mxu0 0
    %2794 = vmatmul.mubr.bf16.gmra.mxu0 %v2719
    %v2795 = vpop.f32.mrf.mxu0
    %v2796 = vadd.f32 0.0, %v2795
    %v2797 = vpop.f32.mrf.mxu0
    %v2798 = vadd.f32 0.0, %v2797
    %v2799 = vpop.f32.mrf.mxu0
    %v2800 = vpop.f32.mrf.mxu0
    %2801 = vdwg.mxu0
    %v2802 = vadd.f32 %v2715, %v2755
    %v2803 = vadd.f32 %v2716, %v2757
    %v2804 = vadd.f32 %v2717, %v2796
    %v2805 = vadd.f32 %v2718, %v2798
    %v2806 = vxor.u32 %v2802, 2147483648
    %v2807 = vmul.f32 %v2806, 1.442695
    %v2808 = vpow.pop %v2807
    %v2809 = vadd.f32 %v2808, 1.0
    %v2810 = vrcp.pop %v2809
    %v2811 = vmul.f32 1.0, %v2810
    %v2812 = vxor.u32 %v2803, 2147483648
    %v2813 = vmul.f32 %v2812, 1.442695
    %v2814 = vpow.pop %v2813
    %v2815 = vadd.f32 %v2814, 1.0
    %v2816 = vrcp.pop %v2815
    %v2817 = vmul.f32 1.0, %v2816
    %v2818 = vtanh.pop %v2804
    %v2819 = vxor.u32 %v2805, 2147483648
    %v2820 = vmul.f32 %v2819, 1.442695
    %v2821 = vpow.pop %v2820
    %v2822 = vadd.f32 %v2821, 1.0
    %v2823 = vrcp.pop %v2822
    %v2824 = vmul.f32 1.0, %v2823
    %v2825 = vmul.f32 %v2817, %v2605
    %v2826 = vmul.f32 %v2811, %v2818
    %v2827 = vadd.f32 %v2825, %v2826
    %v2828 = vtanh.pop %v2827
    %v2829 = vmul.f32 %v2824, %v2828
    %v2830 = vpack.c.bf16 %v2714, %v2714
    %2831 = vmatprep.subr.bf16.mxu0 %v1400
    %2832 = vmatpush1.bf16.msra.mxu0 %v1399
    %2833 = vmatprep.subr.bf16.mxu0 %v1396
    %2834 = vmatpush1.bf16.msra.mxu0 %v1395
    %2835 = vmatprep.subr.bf16.mxu0 %v1392
    %2836 = vmatpush1.bf16.msra.mxu0 %v1391
    %2837 = vmatprep.subr.bf16.mxu0 %v1388
    %2838 = vmatpush1.bf16.msra.mxu0 %v1387
    %2839 = vmatprep.subr.bf16.mxu0 %v1384
    %2840 = vmatpush1.bf16.msra.mxu0 %v1383
    %2841 = vmatprep.subr.bf16.mxu0 %v1380
    %2842 = vmatpush1.bf16.msra.mxu0 %v1379
    %2843 = vmatprep.subr.bf16.mxu0 %v1376
    %2844 = vmatpush1.bf16.msra.mxu0 %v1375
    %2845 = vmatprep.subr.bf16.mxu0 %v1372
    %2846 = vmatpush1.bf16.msra.mxu0 %v1371
    %2847 = vmatprep.subr.bf16.mxu0 %v1432
    %2848 = vmatpush2.bf16.msra.mxu0 %v1431
    %2849 = vmatprep.subr.bf16.mxu0 %v1428
    %2850 = vmatpush2.bf16.msra.mxu0 %v1427
    %2851 = vmatprep.subr.bf16.mxu0 %v1424
    %2852 = vmatpush2.bf16.msra.mxu0 %v1423
    %2853 = vmatprep.subr.bf16.mxu0 %v1420
    %2854 = vmatpush2.bf16.msra.mxu0 %v1419
    %2855 = vmatprep.subr.bf16.mxu0 %v1416
    %2856 = vmatpush2.bf16.msra.mxu0 %v1415
    %2857 = vmatprep.subr.bf16.mxu0 %v1412
    %2858 = vmatpush2.bf16.msra.mxu0 %v1411
    %2859 = vmatprep.subr.bf16.mxu0 %v1408
    %2860 = vmatpush2.bf16.msra.mxu0 %v1407
    %2861 = vmatprep.subr.bf16.mxu0 %v1404
    %2862 = vmatpush2.bf16.msra.mxu0 %v1403
    %2863 = vmatprep.mubr.bf16.mxu0 %v2830
    %2864 = vmatmul.mubr.bf16.gmra.mxu0 %v2719
    %v2865 = vpop.f32.mrf.mxu0
    %v2866 = vadd.f32 %v1162, %v2865
    %v2867 = vpop.f32.mrf.mxu0
    %v2868 = vadd.f32 %v1166, %v2867
    %v2869 = vpop.f32.mrf.mxu0
    %v2870 = vpop.f32.mrf.mxu0
    %2871 = vdwg.mxu0
    %2872 = vmatprep.subr.bf16.mxu0 %v1402
    %2873 = vmatpush1.bf16.msra.mxu0 %v1401
    %2874 = vmatprep.subr.bf16.mxu0 %v1398
    %2875 = vmatpush1.bf16.msra.mxu0 %v1397
    %2876 = vmatprep.subr.bf16.mxu0 %v1394
    %2877 = vmatpush1.bf16.msra.mxu0 %v1393
    %2878 = vmatprep.subr.bf16.mxu0 %v1390
    %2879 = vmatpush1.bf16.msra.mxu0 %v1389
    %2880 = vmatprep.subr.bf16.mxu0 %v1386
    %2881 = vmatpush1.bf16.msra.mxu0 %v1385
    %2882 = vmatprep.subr.bf16.mxu0 %v1382
    %2883 = vmatpush1.bf16.msra.mxu0 %v1381
    %2884 = vmatprep.subr.bf16.mxu0 %v1378
    %2885 = vmatpush1.bf16.msra.mxu0 %v1377
    %2886 = vmatprep.subr.bf16.mxu0 %v1374
    %2887 = vmatpush1.bf16.msra.mxu0 %v1373
    %2888 = vmatprep.subr.bf16.mxu0 %v1434
    %2889 = vmatpush2.bf16.msra.mxu0 %v1433
    %2890 = vmatprep.subr.bf16.mxu0 %v1430
    %2891 = vmatpush2.bf16.msra.mxu0 %v1429
    %2892 = vmatprep.subr.bf16.mxu0 %v1426
    %2893 = vmatpush2.bf16.msra.mxu0 %v1425
    %2894 = vmatprep.subr.bf16.mxu0 %v1422
    %2895 = vmatpush2.bf16.msra.mxu0 %v1421
    %2896 = vmatprep.subr.bf16.mxu0 %v1418
    %2897 = vmatpush2.bf16.msra.mxu0 %v1417
    %2898 = vmatprep.subr.bf16.mxu0 %v1414
    %2899 = vmatpush2.bf16.msra.mxu0 %v1413
    %2900 = vmatprep.subr.bf16.mxu0 %v1410
    %2901 = vmatpush2.bf16.msra.mxu0 %v1409
    %2902 = vmatprep.subr.bf16.mxu0 %v1406
    %2903 = vmatpush2.bf16.msra.mxu0 %v1405
    %2904 = vmatprep.mubr.bf16.mxu0 %v2830
    %2905 = vmatmul.mubr.bf16.gmra.mxu0 %v2719
    %v2906 = vpop.f32.mrf.mxu0
    %v2907 = vadd.f32 %v1170, %v2906
    %v2908 = vpop.f32.mrf.mxu0
    %v2909 = vadd.f32 %v1174, %v2908
    %v2910 = vpop.f32.mrf.mxu0
    %v2911 = vpop.f32.mrf.mxu0
    %2912 = vdwg.mxu0
    %v2913 = vxor.u32 %v2866, 2147483648
    %v2914 = vmul.f32 %v2913, 1.442695
    %v2915 = vpow.pop %v2914
    %v2916 = vadd.f32 %v2915, 1.0
    %v2917 = vrcp.pop %v2916
    %v2918 = vmul.f32 1.0, %v2917
    %v2919 = vxor.u32 %v2868, 2147483648
    %v2920 = vmul.f32 %v2919, 1.442695
    %v2921 = vpow.pop %v2920
    %v2922 = vadd.f32 %v2921, 1.0
    %v2923 = vrcp.pop %v2922
    %v2924 = vmul.f32 1.0, %v2923
    %v2925 = vtanh.pop %v2907
    %v2926 = vxor.u32 %v2909, 2147483648
    %v2927 = vmul.f32 %v2926, 1.442695
    %v2928 = vpow.pop %v2927
    %v2929 = vadd.f32 %v2928, 1.0
    %v2930 = vrcp.pop %v2929
    %v2931 = vmul.f32 1.0, %v2930
    %v2932 = vmul.f32 %v2924, %v2712
    %v2933 = vmul.f32 %v2918, %v2925
    %v2934 = vadd.f32 %v2932, %v2933
    %v2935 = vtanh.pop %v2934
    %v2936 = vmul.f32 %v2931, %v2935
    %v2937 = vpack.c.bf16 %v2829, %v2829
    %v2938 = vpack.c.bf16 %v2936, %v2936
    %2939 = vmatprep.subr.bf16.mxu0 %v1400
    %2940 = vmatpush1.bf16.msra.mxu0 %v1399
    %2941 = vmatprep.subr.bf16.mxu0 %v1396
    %2942 = vmatpush1.bf16.msra.mxu0 %v1395
    %2943 = vmatprep.subr.bf16.mxu0 %v1392
    %2944 = vmatpush1.bf16.msra.mxu0 %v1391
    %2945 = vmatprep.subr.bf16.mxu0 %v1388
    %2946 = vmatpush1.bf16.msra.mxu0 %v1387
    %2947 = vmatprep.subr.bf16.mxu0 %v1384
    %2948 = vmatpush1.bf16.msra.mxu0 %v1383
    %2949 = vmatprep.subr.bf16.mxu0 %v1380
    %2950 = vmatpush1.bf16.msra.mxu0 %v1379
    %2951 = vmatprep.subr.bf16.mxu0 %v1376
    %2952 = vmatpush1.bf16.msra.mxu0 %v1375
    %2953 = vmatprep.subr.bf16.mxu0 %v1372
    %2954 = vmatpush1.bf16.msra.mxu0 %v1371
    %2955 = vmatprep.subr.bf16.mxu0 %v1432
    %2956 = vmatpush2.bf16.msra.mxu0 %v1431
    %2957 = vmatprep.subr.bf16.mxu0 %v1428
    %2958 = vmatpush2.bf16.msra.mxu0 %v1427
    %2959 = vmatprep.subr.bf16.mxu0 %v1424
    %2960 = vmatpush2.bf16.msra.mxu0 %v1423
    %2961 = vmatprep.subr.bf16.mxu0 %v1420
    %2962 = vmatpush2.bf16.msra.mxu0 %v1419
    %2963 = vmatprep.subr.bf16.mxu0 %v1416
    %2964 = vmatpush2.bf16.msra.mxu0 %v1415
    %2965 = vmatprep.subr.bf16.mxu0 %v1412
    %2966 = vmatpush2.bf16.msra.mxu0 %v1411
    %2967 = vmatprep.subr.bf16.mxu0 %v1408
    %2968 = vmatpush2.bf16.msra.mxu0 %v1407
    %2969 = vmatprep.subr.bf16.mxu0 %v1404
    %2970 = vmatpush2.bf16.msra.mxu0 %v1403
    %2971 = vmatprep.mubr.bf16.mxu0 %v2938
    %2972 = vmatmul.mubr.bf16.gmra.mxu0 %v2937
    %v2973 = vpop.f32.mrf.mxu0
    %v2974 = vadd.f32 %v1162, %v2973
    %v2975 = vpop.f32.mrf.mxu0
    %v2976 = vadd.f32 %v1166, %v2975
    %v2977 = vpop.f32.mrf.mxu0
    %v2978 = vpop.f32.mrf.mxu0
    %2979 = vdwg.mxu0
    %2980 = vmatprep.subr.bf16.mxu0 %v1402
    %2981 = vmatpush1.bf16.msra.mxu0 %v1401
    %2982 = vmatprep.subr.bf16.mxu0 %v1398
    %2983 = vmatpush1.bf16.msra.mxu0 %v1397
    %2984 = vmatprep.subr.bf16.mxu0 %v1394
    %2985 = vmatpush1.bf16.msra.mxu0 %v1393
    %2986 = vmatprep.subr.bf16.mxu0 %v1390
    %2987 = vmatpush1.bf16.msra.mxu0 %v1389
    %2988 = vmatprep.subr.bf16.mxu0 %v1386
    %2989 = vmatpush1.bf16.msra.mxu0 %v1385
    %2990 = vmatprep.subr.bf16.mxu0 %v1382
    %2991 = vmatpush1.bf16.msra.mxu0 %v1381
    %2992 = vmatprep.subr.bf16.mxu0 %v1378
    %2993 = vmatpush1.bf16.msra.mxu0 %v1377
    %2994 = vmatprep.subr.bf16.mxu0 %v1374
    %2995 = vmatpush1.bf16.msra.mxu0 %v1373
    %2996 = vmatprep.subr.bf16.mxu0 %v1434
    %2997 = vmatpush2.bf16.msra.mxu0 %v1433
    %2998 = vmatprep.subr.bf16.mxu0 %v1430
    %2999 = vmatpush2.bf16.msra.mxu0 %v1429
    %3000 = vmatprep.subr.bf16.mxu0 %v1426
    %3001 = vmatpush2.bf16.msra.mxu0 %v1425
    %3002 = vmatprep.subr.bf16.mxu0 %v1422
    %3003 = vmatpush2.bf16.msra.mxu0 %v1421
    %3004 = vmatprep.subr.bf16.mxu0 %v1418
    %3005 = vmatpush2.bf16.msra.mxu0 %v1417
    %3006 = vmatprep.subr.bf16.mxu0 %v1414
    %3007 = vmatpush2.bf16.msra.mxu0 %v1413
    %3008 = vmatprep.subr.bf16.mxu0 %v1410
    %3009 = vmatpush2.bf16.msra.mxu0 %v1409
    %3010 = vmatprep.subr.bf16.mxu0 %v1406
    %3011 = vmatpush2.bf16.msra.mxu0 %v1405
    %3012 = vmatprep.mubr.bf16.mxu0 %v2938
    %3013 = vmatmul.mubr.bf16.gmra.mxu0 %v2937
    %v3014 = vpop.f32.mrf.mxu0
    %v3015 = vadd.f32 %v1170, %v3014
    %v3016 = vpop.f32.mrf.mxu0
    %v3017 = vadd.f32 %v1174, %v3016
    %v3018 = vpop.f32.mrf.mxu0
    %v3019 = vpop.f32.mrf.mxu0
    %3020 = vdwg.mxu0
    %v3021 = vxor.u32 %v2974, 2147483648
    %v3022 = vmul.f32 %v3021, 1.442695
    %v3023 = vpow.pop %v3022
    %v3024 = vadd.f32 %v3023, 1.0
    %v3025 = vrcp.pop %v3024
    %v3026 = vmul.f32 1.0, %v3025
    %v3027 = vxor.u32 %v2976, 2147483648
    %v3028 = vmul.f32 %v3027, 1.442695
    %v3029 = vpow.pop %v3028
    %v3030 = vadd.f32 %v3029, 1.0
    %v3031 = vrcp.pop %v3030
    %v3032 = vmul.f32 1.0, %v3031
    %v3033 = vtanh.pop %v3015
    %v3034 = vxor.u32 %v3017, 2147483648
    %v3035 = vmul.f32 %v3034, 1.442695
    %v3036 = vpow.pop %v3035
    %v3037 = vadd.f32 %v3036, 1.0
    %v3038 = vrcp.pop %v3037
    %v3039 = vmul.f32 1.0, %v3038
    %v3040 = vmul.f32 %v3032, %v2934
    %v3041 = vmul.f32 %v3026, %v3033
    %v3042 = vadd.f32 %v3040, %v3041
    %v3043 = vtanh.pop %v3042
    %v3044 = vmul.f32 %v3039, %v3043
    %3045 = vst [vmem:[#allocation12] sm:$0xff] %v2829
    %3046 = vst [vmem:[#allocation13] sm:$0xff] %v2827
    %s3047 = scalar_lea.vmem [#allocation12], 8
    %3048 = vst [vmem:[%s3047] sm:$0xff] %v3044
    %s3049 = scalar_lea.vmem [#allocation13], 8
    %3050 = vst [vmem:[%s3049] sm:$0xff] %v3042
    %v3051 = vld [vmem:[%s7] sm:$0x1]
    %v3053 = vlaneseq
    %v3054 = vshrl.u32 %v3053, 7
    %v3055 = vsub.s32 0, %v3054
    %v3056 = vrot.slane %v3051, %v3055
    %v3058 = vmul.f32 %v3044, %v3056
    %3059 = vadd.xlane.f32.xlu0 %v3058
    %v3060 = vpop.xlane.xlu0 %3059
    %s3061 = sld [smem:[#allocation4]]
    %v3062 = vstv %s3061
    %v3063 = vadd.f32 %v3060, %v3062
    %v3064 = vxor.u32 %v3063, 2147483648
    %v3065 = vmul.f32 %v3064, 1.442695
    %v3066 = vpow.pop %v3065
    %v3067 = vadd.f32 %v3066, 1.0
    %v3068 = vrcp.pop %v3067
    %v3069 = vmul.f32 1.0, %v3068
    %vm3070 = vcmask 7168
    %3071 = vst.msk [vmem:[%s11] sm:$0xff] %vm3070, %v3069
    // Predicated region
    $region58: #{sentiment_rnn_forward.1} parent=1 // pred_check
      _
    $region59: #{sentiment_rnn_forward.1} parent=1 // pred_check_branch
      %3073 = sbr.rel (0) target = $region61
    $region60: #{sentiment_rnn_forward.1} parent=1 // pred_region
      _
    $region61: #{sentiment_rnn_forward.1} parent=1 // pred_fallthru
      _
    // Predicated region
    $region62: #{sentiment_rnn_forward.1} parent=1 // pred_check
      _
    $region63: #{sentiment_rnn_forward.1} parent=1 // pred_check_branch
      %3075 = sbr.rel (0) target = $region65
    $region64: #{sentiment_rnn_forward.1} parent=1 // pred_region
      %s3077 = ssub.s32 256, 256
      %3078 = vsyncadd [#allocation7], %s3077
      %s3079 = sshll.u32 [#allocation12], 4
      %s3080 = int_to_ptr.vmem [resolvable:$true] %s3079
      %3085 = dma.vmem_to_hbm [thread:$0]  %s3080, 256, %s12, [#allocation7], 128, 128, 8
    $region65: #{sentiment_rnn_forward.1} parent=1 // pred_fallthru
      _
    // Predicated region
    $region66: #{sentiment_rnn_forward.1} parent=1 // pred_check
      _
    $region67: #{sentiment_rnn_forward.1} parent=1 // pred_check_branch
      %3087 = sbr.rel (0) target = $region69
    $region68: #{sentiment_rnn_forward.1} parent=1 // pred_region
      %s3089 = ssub.s32 256, 256
      %3090 = vsyncadd [#allocation14], %s3089
      %s3091 = sshll.u32 [#allocation13], 4
      %s3092 = int_to_ptr.vmem [resolvable:$true] %s3091
      %3097 = dma.vmem_to_hbm [thread:$0]  %s3092, 256, %s13, [#allocation14], 128, 128, 8
    $region69: #{sentiment_rnn_forward.1} parent=1 // pred_fallthru
      _
    // Predicated region
    $region70: #{sentiment_rnn_forward.1} parent=1 // pred_check
      _
    $region71: #{sentiment_rnn_forward.1} parent=1 // pred_check_branch
      %3099 = sbr.rel (0) target = $region73
    $region72: #{sentiment_rnn_forward.1} parent=1 // pred_region
      _
    $region73: #{sentiment_rnn_forward.1} parent=1 // pred_fallthru
      _
    // Predicated region
    $region74: #{sentiment_rnn_forward.1} parent=1 // pred_check
      _
    $region75: #{sentiment_rnn_forward.1} parent=1 // pred_check_branch
      %3101 = sbr.rel (0) target = $region77
    $region76: #{sentiment_rnn_forward.1} parent=1 // pred_region
      %3102 = dma.done [#allocation7], 256
    $region77: #{sentiment_rnn_forward.1} parent=1 // pred_fallthru
      _
    // Predicated region
    $region78: #{sentiment_rnn_forward.1} parent=1 // pred_check
      _
    $region79: #{sentiment_rnn_forward.1} parent=1 // pred_check_branch
      %3104 = sbr.rel (0) target = $region81
    $region80: #{sentiment_rnn_forward.1} parent=1 // pred_region
      %3105 = dma.done [#allocation14], 256
    $region81: #{sentiment_rnn_forward.1} parent=1 // pred_fallthru
      _
    %3106 = vsyncpa [#allocation6], 1
    %3107 = vsyncpa [#allocation11], 1
    %3108 = vsyncpa [#allocation7], 1
    %3109 = vsyncpa [#allocation14], 1
    %3110 = vsyncpa [#allocation8], 1

</llo_original>
